<compile_context>
chip_gen: v6e
topology: v6e:2x2x1
jax: 0.10.0
libtpu: 0.0.40
codegen_flags: <defaults>
</compile_context>

<pallas_src>
import jax
import jax.numpy as jnp
from jax.experimental import pallas as pl
from jax.experimental.pallas import tpu as pltpu


_HALVINGS = 9                  # nine stride-2 convs
_Q = 11                        # leftover time extent after all halvings (352 = 32*11)
_L = _Q * (2 ** _HALVINGS)     # 5632: input length implied by Linear(352, 127)
_LANES = 128                   # lane-dense width for the scalar output slab


# ----------------------------------------------------------------------------
# Fused kernel: whole network for one batch element, resident in VMEM.
# ----------------------------------------------------------------------------
def _fused_kernel(x_ref, w01_ref, w11_ref, b1_ref,
                  w0s_ref, w1s_ref, bs_ref, weff_ref, beff_ref, o_ref):
    x = x_ref[0]                       # (3, 5632) f32, time-in-lanes (bitrev layout)
    width = x.shape[-1]
    half = width // 2

    # --- cnn1 (C_in = 3): VPU broadcast-FMAs ---------------------------------
    xe = x[:, :half]                   # even input times of each output step
    xo = x[:, half:]                   # odd input times
    acc = w01_ref[0] * xe[0:1, :] + w11_ref[0] * xo[0:1, :]
    for ci in range(1, 3):
        acc = acc + w01_ref[ci] * xe[ci:ci + 1, :] + w11_ref[ci] * xo[ci:ci + 1, :]
    h = jnp.maximum(acc + b1_ref[...], 0.0)          # (32, 2816)
    width = half

    # --- cnn2 .. cnn9: (32,32) @ (32,T) MXU matmuls, T in lanes --------------
    for l in range(8):
        half = width // 2
        xe = h[:, :half]
        xo = h[:, half:width]
        y = (jnp.dot(w0s_ref[l], xe, preferred_element_type=jnp.float32)
             + jnp.dot(w1s_ref[l], xo, preferred_element_type=jnp.float32)
             + bs_ref[l])
        h = jnp.maximum(y, 0.0) if l < 7 else y      # no ReLU after cnn9
        width = half

    # --- linear + mean(cols 52:72), pre-folded into (32,11) weights ----------
    s = jnp.sum(h * weff_ref[...], keepdims=True) + beff_ref[...]   # (1, 1)
    o_ref[...] = jnp.broadcast_to(s, o_ref.shape)                   # (1, 128)


# ----------------------------------------------------------------------------
# Parameter / layout preparation (done once, hoisted out of the forward pass)
# ----------------------------------------------------------------------------
def init_params(key):
    """Deterministic synthetic weights matching the torch module's shapes."""
    params = {"convs": [], "linear": None}
    conv_shapes = [(32, 3, 2)] + [(32, 32, 2)] * 8   # (C_out, C_in, k)
    for shape in conv_shapes:
        key, kw, kb = jax.random.split(key, 3)
        fan_in = shape[1] * shape[2]
        bound = 1.0 / jnp.sqrt(fan_in)
        w = jax.random.uniform(kw, shape, jnp.float32, -bound, bound)
        b = jax.random.uniform(kb, (shape[0],), jnp.float32, -bound, bound)
        params["convs"].append((w, b))
    key, kw, kb = jax.random.split(key, 3)
    bound = 1.0 / jnp.sqrt(352.0)
    wl = jax.random.uniform(kw, (127, 352), jnp.float32, -bound, bound)
    bl = jax.random.uniform(kb, (127,), jnp.float32, -bound, bound)
    params["linear"] = (wl, bl)
    return params


def prepare_params(params):
    convs = params["convs"]
    w1, b1 = convs[0]                                         # (32,3,2), (32,)
    prep = {
        # cnn1 weights as per-input-channel (32,1) columns for VPU broadcasts.
        "w0_1": jnp.transpose(w1[:, :, 0], (1, 0))[:, :, None],   # (3,32,1)
        "w1_1": jnp.transpose(w1[:, :, 1], (1, 0))[:, :, None],   # (3,32,1)
        "b_1": b1[:, None],                                       # (32,1)
        # cnn2..cnn9 stacked: tap-0 / tap-1 matrices and biases.
        "w0_s": jnp.stack([convs[i][0][:, :, 0] for i in range(1, 9)]),    # (8,32,32)
        "w1_s": jnp.stack([convs[i][0][:, :, 1] for i in range(1, 9)]),    # (8,32,32)
        "b_s": jnp.stack([convs[i][1] for i in range(1, 9)])[:, :, None],  # (8,32,1)
    }
    wl, bl = params["linear"]                                  # (127,352), (127,)
    w_eff = jnp.mean(wl[52:72, :], axis=0)                     # (352,)
    prep["w_eff"] = w_eff.reshape(32, _Q)                      # NCW flatten: c*11+t
    prep["b_eff"] = jnp.mean(bl[52:72]).reshape(1, 1)
    return prep


def _bitrev_time_layout(x):
    """(B, C, L) natural time order -> bit-reversed-block lane layout.

    Stored position p = rev*11 + q holds time t = q*512 + bitrev9(rev), so
    every stride-2 conv pairs lane p with lane p + T/2 (contiguous halves) and
    after the 9th conv the layout is exactly natural time order.  This is a
    pure reshape + axis-reversal transpose of the (q, b8..b0) mixed-radix
    digits of the time index — no gather.
    """
    B, C = x.shape[0], x.shape[1]
    x_nd = x.reshape(B, C, _Q, *([2] * _HALVINGS))
    axes = (0, 1) + tuple(range(2 + _HALVINGS, 1, -1))   # reverse trailing 10 axes
    return jnp.transpose(x_nd, axes).reshape(B, C, _L)


# ----------------------------------------------------------------------------
# Forward pass
# ----------------------------------------------------------------------------
@jax.jit
def convnet_quake_ingv_forward(x, prep):
    """x: (B, 3, 5632) NCW f32 -> (B,) f32."""
    B = x.shape[0]
    x_perm = _bitrev_time_layout(x)                            # (B, 3, 5632)
    out2d = pl.pallas_call(
        _fused_kernel,
        out_shape=jax.ShapeDtypeStruct((1, B * _LANES), jnp.float32),
        grid=(B,),
        in_specs=[
            pl.BlockSpec((1, 3, _L), lambda b: (b, 0, 0)),
            pl.BlockSpec((3, 32, 1), lambda b: (0, 0, 0)),
            pl.BlockSpec((3, 32, 1), lambda b: (0, 0, 0)),
            pl.BlockSpec((32, 1), lambda b: (0, 0)),
            pl.BlockSpec((8, 32, 32), lambda b: (0, 0, 0)),
            pl.BlockSpec((8, 32, 32), lambda b: (0, 0, 0)),
            pl.BlockSpec((8, 32, 1), lambda b: (0, 0, 0)),
            pl.BlockSpec((32, _Q), lambda b: (0, 0)),
            pl.BlockSpec((1, 1), lambda b: (0, 0)),
        ],
        out_specs=pl.BlockSpec((1, _LANES), lambda b: (0, b)),
        compiler_params=pltpu.CompilerParams(
            dimension_semantics=("parallel",)),
    )(x_perm, prep["w0_1"], prep["w1_1"], prep["b_1"],
      prep["w0_s"], prep["w1_s"], prep["b_s"],
      prep["w_eff"], prep["b_eff"])
    return out2d.reshape(B, _LANES)[:, 0]


# ----------------------------------------------------------------------------
# Pure-JAX reference (mirrors the PyTorch module) for a correctness check.
# ----------------------------------------------------------------------------
def reference_forward(x, params):
    h = x                                                      # (B, 3, L)
    for i, (w, b) in enumerate(params["convs"]):
        Bc, Cin, Lc = h.shape
        hr = h.reshape(Bc, Cin, Lc // 2, 2)
        y = jnp.einsum("bitk,oik->bot", hr, w) + b[None, :, None]
        h = jnp.maximum(y, 0.0) if i < 8 else y                # no ReLU on cnn9
    flat = h.reshape(h.shape[0], -1)                           # (B, 352), NCW flatten
    wl, bl = params["linear"]
    out = flat @ wl.T + bl
    return jnp.mean(out[:, 52:72], axis=1)


# ----------------------------------------------------------------------------
# Main
# ----------------------------------------------------------------------------
if __name__ == "__main__":
    key = jax.random.PRNGKey(0)
    key, kparams, kx = jax.random.split(key, 3)

    params = init_params(kparams)
    prep = prepare_params(params)

    B, C_IN = 2, 3
    x = jax.random.normal(kx, (B, C_IN, _L), dtype=jnp.float32)

    out = convnet_quake_ingv_forward(x, prep)
    out = jax.block_until_ready(out)
    assert out.shape == (B,)

    ref = jax.block_until_ready(reference_forward(x, params))
    err = float(jnp.max(jnp.abs(out - ref)))
    scale = float(jnp.max(jnp.abs(ref))) + 1e-6
    assert err <= 5e-2 * scale + 1e-6, (err, scale)

    print("KERNEL_OK")
</pallas_src>

<mosaic_0001>
module attributes {stable_mosaic.version = 11 : i64} {
  func.func @_fused_kernel(%arg0: i32, %arg1: memref<1x3x5632xf32, #tpu.memory_space<vmem>>, %arg2: memref<3x32x1xf32, #tpu.memory_space<vmem>>, %arg3: memref<3x32x1xf32, #tpu.memory_space<vmem>>, %arg4: memref<32x1xf32, #tpu.memory_space<vmem>>, %arg5: memref<8x32x32xf32, #tpu.memory_space<vmem>>, %arg6: memref<8x32x32xf32, #tpu.memory_space<vmem>>, %arg7: memref<8x32x1xf32, #tpu.memory_space<vmem>>, %arg8: memref<32x11xf32, #tpu.memory_space<vmem>>, %arg9: memref<1x1xf32, #tpu.memory_space<vmem>>, %arg10: memref<1x128xf32, #tpu.memory_space<vmem>>) attributes {dimension_semantics = [#tpu.dimension_semantics<parallel>], iteration_bounds = array<i64: 2>, scalar_prefetch = 0 : i64, scratch_operands = 0 : i64, tpu.core_type = #tpu.core_type<tc>, window_params = [{transform_indices = @transform_0, window_bounds = array<i64: 1, 3, 5632>}, {pipeline_mode = #tpu.pipeline_mode<synchronous>, transform_indices = @transform_1, window_bounds = array<i64: 3, 32, 1>}, {pipeline_mode = #tpu.pipeline_mode<synchronous>, transform_indices = @transform_2, window_bounds = array<i64: 3, 32, 1>}, {pipeline_mode = #tpu.pipeline_mode<synchronous>, transform_indices = @transform_3, window_bounds = array<i64: 32, 1>}, {pipeline_mode = #tpu.pipeline_mode<synchronous>, transform_indices = @transform_4, window_bounds = array<i64: 8, 32, 32>}, {pipeline_mode = #tpu.pipeline_mode<synchronous>, transform_indices = @transform_5, window_bounds = array<i64: 8, 32, 32>}, {pipeline_mode = #tpu.pipeline_mode<synchronous>, transform_indices = @transform_6, window_bounds = array<i64: 8, 32, 1>}, {pipeline_mode = #tpu.pipeline_mode<synchronous>, transform_indices = @transform_7, window_bounds = array<i64: 32, 11>}, {pipeline_mode = #tpu.pipeline_mode<synchronous>, transform_indices = @transform_8, window_bounds = array<i64: 1, 1>}, {transform_indices = @transform_9, window_bounds = array<i64: 1, 128>}]} {
    %c0 = arith.constant 0 : index
    %c0_0 = arith.constant 0 : index
    %c0_1 = arith.constant 0 : index
    %0 = vector.load %arg1[%c0, %c0_0, %c0_1] : memref<1x3x5632xf32, #tpu.memory_space<vmem>>, vector<1x3x5632xf32>
    %1 = vector.shape_cast %0 : vector<1x3x5632xf32> to vector<3x5632xf32>
    %2 = vector.extract_strided_slice %1 {offsets = [0, 0], sizes = [3, 2816], strides = [1, 1]} : vector<3x5632xf32> to vector<3x2816xf32>
    %3 = vector.extract_strided_slice %1 {offsets = [0, 2816], sizes = [3, 2816], strides = [1, 1]} : vector<3x5632xf32> to vector<3x2816xf32>
    %c0_2 = arith.constant 0 : index
    %c0_3 = arith.constant 0 : index
    %c0_4 = arith.constant 0 : index
    %4 = vector.load %arg2[%c0_2, %c0_3, %c0_4] : memref<3x32x1xf32, #tpu.memory_space<vmem>>, vector<1x32x1xf32>
    %5 = vector.shape_cast %4 : vector<1x32x1xf32> to vector<32x1xf32>
    %6 = vector.extract_strided_slice %2 {offsets = [0, 0], sizes = [1, 2816], strides = [1, 1]} : vector<3x2816xf32> to vector<1x2816xf32>
    %7 = vector.broadcast %5 : vector<32x1xf32> to vector<32x2816xf32>
    %8 = vector.broadcast %6 : vector<1x2816xf32> to vector<32x2816xf32>
    %9 = arith.mulf %7, %8 : vector<32x2816xf32>
    %c0_5 = arith.constant 0 : index
    %c0_6 = arith.constant 0 : index
    %c0_7 = arith.constant 0 : index
    %10 = vector.load %arg3[%c0_5, %c0_6, %c0_7] : memref<3x32x1xf32, #tpu.memory_space<vmem>>, vector<1x32x1xf32>
    %11 = vector.shape_cast %10 : vector<1x32x1xf32> to vector<32x1xf32>
    %12 = vector.extract_strided_slice %3 {offsets = [0, 0], sizes = [1, 2816], strides = [1, 1]} : vector<3x2816xf32> to vector<1x2816xf32>
    %13 = vector.broadcast %11 : vector<32x1xf32> to vector<32x2816xf32>
    %14 = vector.broadcast %12 : vector<1x2816xf32> to vector<32x2816xf32>
    %15 = arith.mulf %13, %14 : vector<32x2816xf32>
    %16 = arith.addf %9, %15 : vector<32x2816xf32>
    %c1 = arith.constant 1 : index
    %c0_8 = arith.constant 0 : index
    %c0_9 = arith.constant 0 : index
    %17 = vector.load %arg2[%c1, %c0_8, %c0_9] : memref<3x32x1xf32, #tpu.memory_space<vmem>>, vector<1x32x1xf32>
    %18 = vector.shape_cast %17 : vector<1x32x1xf32> to vector<32x1xf32>
    %19 = vector.extract_strided_slice %2 {offsets = [1, 0], sizes = [1, 2816], strides = [1, 1]} : vector<3x2816xf32> to vector<1x2816xf32>
    %20 = vector.broadcast %18 : vector<32x1xf32> to vector<32x2816xf32>
    %21 = vector.broadcast %19 : vector<1x2816xf32> to vector<32x2816xf32>
    %22 = arith.mulf %20, %21 : vector<32x2816xf32>
    %23 = arith.addf %16, %22 : vector<32x2816xf32>
    %c1_10 = arith.constant 1 : index
    %c0_11 = arith.constant 0 : index
    %c0_12 = arith.constant 0 : index
    %24 = vector.load %arg3[%c1_10, %c0_11, %c0_12] : memref<3x32x1xf32, #tpu.memory_space<vmem>>, vector<1x32x1xf32>
    %25 = vector.shape_cast %24 : vector<1x32x1xf32> to vector<32x1xf32>
    %26 = vector.extract_strided_slice %3 {offsets = [1, 0], sizes = [1, 2816], strides = [1, 1]} : vector<3x2816xf32> to vector<1x2816xf32>
    %27 = vector.broadcast %25 : vector<32x1xf32> to vector<32x2816xf32>
    %28 = vector.broadcast %26 : vector<1x2816xf32> to vector<32x2816xf32>
    %29 = arith.mulf %27, %28 : vector<32x2816xf32>
    %30 = arith.addf %23, %29 : vector<32x2816xf32>
    %c2 = arith.constant 2 : index
    %c0_13 = arith.constant 0 : index
    %c0_14 = arith.constant 0 : index
    %31 = vector.load %arg2[%c2, %c0_13, %c0_14] : memref<3x32x1xf32, #tpu.memory_space<vmem>>, vector<1x32x1xf32>
    %32 = vector.shape_cast %31 : vector<1x32x1xf32> to vector<32x1xf32>
    %33 = vector.extract_strided_slice %2 {offsets = [2, 0], sizes = [1, 2816], strides = [1, 1]} : vector<3x2816xf32> to vector<1x2816xf32>
    %34 = vector.broadcast %32 : vector<32x1xf32> to vector<32x2816xf32>
    %35 = vector.broadcast %33 : vector<1x2816xf32> to vector<32x2816xf32>
    %36 = arith.mulf %34, %35 : vector<32x2816xf32>
    %37 = arith.addf %30, %36 : vector<32x2816xf32>
    %c2_15 = arith.constant 2 : index
    %c0_16 = arith.constant 0 : index
    %c0_17 = arith.constant 0 : index
    %38 = vector.load %arg3[%c2_15, %c0_16, %c0_17] : memref<3x32x1xf32, #tpu.memory_space<vmem>>, vector<1x32x1xf32>
    %39 = vector.shape_cast %38 : vector<1x32x1xf32> to vector<32x1xf32>
    %40 = vector.extract_strided_slice %3 {offsets = [2, 0], sizes = [1, 2816], strides = [1, 1]} : vector<3x2816xf32> to vector<1x2816xf32>
    %41 = vector.broadcast %39 : vector<32x1xf32> to vector<32x2816xf32>
    %42 = vector.broadcast %40 : vector<1x2816xf32> to vector<32x2816xf32>
    %43 = arith.mulf %41, %42 : vector<32x2816xf32>
    %44 = arith.addf %37, %43 : vector<32x2816xf32>
    %c0_18 = arith.constant 0 : index
    %c0_19 = arith.constant 0 : index
    %45 = vector.load %arg4[%c0_18, %c0_19] : memref<32x1xf32, #tpu.memory_space<vmem>>, vector<32x1xf32>
    %46 = vector.broadcast %45 : vector<32x1xf32> to vector<32x2816xf32>
    %47 = arith.addf %44, %46 : vector<32x2816xf32>
    %cst = arith.constant 0.000000e+00 : f32
    %48 = vector.broadcast %cst : f32 to vector<32x2816xf32>
    %49 = arith.maximumf %47, %48 : vector<32x2816xf32>
    %50 = vector.extract_strided_slice %49 {offsets = [0, 0], sizes = [32, 1408], strides = [1, 1]} : vector<32x2816xf32> to vector<32x1408xf32>
    %51 = vector.extract_strided_slice %49 {offsets = [0, 1408], sizes = [32, 1408], strides = [1, 1]} : vector<32x2816xf32> to vector<32x1408xf32>
    %c0_20 = arith.constant 0 : index
    %c0_21 = arith.constant 0 : index
    %c0_22 = arith.constant 0 : index
    %52 = vector.load %arg5[%c0_20, %c0_21, %c0_22] : memref<8x32x32xf32, #tpu.memory_space<vmem>>, vector<1x32x32xf32>
    %53 = vector.shape_cast %52 : vector<1x32x32xf32> to vector<32x32xf32>
    %cst_23 = arith.constant dense<0.000000e+00> : vector<32x1408xf32>
    %54 = tpu.matmul %53, %50, %cst_23 {dimension_numbers = #tpu.dot_dimension_numbers<[1], [0], [0], [1], [0, 0, 1, 1], [], []>} : vector<32x32xf32>, vector<32x1408xf32>, vector<32x1408xf32> -> vector<32x1408xf32>
    %c0_24 = arith.constant 0 : index
    %c0_25 = arith.constant 0 : index
    %c0_26 = arith.constant 0 : index
    %55 = vector.load %arg6[%c0_24, %c0_25, %c0_26] : memref<8x32x32xf32, #tpu.memory_space<vmem>>, vector<1x32x32xf32>
    %56 = vector.shape_cast %55 : vector<1x32x32xf32> to vector<32x32xf32>
    %cst_27 = arith.constant dense<0.000000e+00> : vector<32x1408xf32>
    %57 = tpu.matmul %56, %51, %cst_27 {dimension_numbers = #tpu.dot_dimension_numbers<[1], [0], [0], [1], [0, 0, 1, 1], [], []>} : vector<32x32xf32>, vector<32x1408xf32>, vector<32x1408xf32> -> vector<32x1408xf32>
    %58 = arith.addf %54, %57 : vector<32x1408xf32>
    %c0_28 = arith.constant 0 : index
    %c0_29 = arith.constant 0 : index
    %c0_30 = arith.constant 0 : index
    %59 = vector.load %arg7[%c0_28, %c0_29, %c0_30] : memref<8x32x1xf32, #tpu.memory_space<vmem>>, vector<1x32x1xf32>
    %60 = vector.shape_cast %59 : vector<1x32x1xf32> to vector<32x1xf32>
    %61 = vector.broadcast %60 : vector<32x1xf32> to vector<32x1408xf32>
    %62 = arith.addf %58, %61 : vector<32x1408xf32>
    %cst_31 = arith.constant 0.000000e+00 : f32
    %63 = vector.broadcast %cst_31 : f32 to vector<32x1408xf32>
    %64 = arith.maximumf %62, %63 : vector<32x1408xf32>
    %65 = vector.extract_strided_slice %64 {offsets = [0, 0], sizes = [32, 704], strides = [1, 1]} : vector<32x1408xf32> to vector<32x704xf32>
    %66 = vector.extract_strided_slice %64 {offsets = [0, 704], sizes = [32, 704], strides = [1, 1]} : vector<32x1408xf32> to vector<32x704xf32>
    %c1_32 = arith.constant 1 : index
    %c0_33 = arith.constant 0 : index
    %c0_34 = arith.constant 0 : index
    %67 = vector.load %arg5[%c1_32, %c0_33, %c0_34] : memref<8x32x32xf32, #tpu.memory_space<vmem>>, vector<1x32x32xf32>
    %68 = vector.shape_cast %67 : vector<1x32x32xf32> to vector<32x32xf32>
    %cst_35 = arith.constant dense<0.000000e+00> : vector<32x704xf32>
    %69 = tpu.matmul %68, %65, %cst_35 {dimension_numbers = #tpu.dot_dimension_numbers<[1], [0], [0], [1], [0, 0, 1, 1], [], []>} : vector<32x32xf32>, vector<32x704xf32>, vector<32x704xf32> -> vector<32x704xf32>
    %c1_36 = arith.constant 1 : index
    %c0_37 = arith.constant 0 : index
    %c0_38 = arith.constant 0 : index
    %70 = vector.load %arg6[%c1_36, %c0_37, %c0_38] : memref<8x32x32xf32, #tpu.memory_space<vmem>>, vector<1x32x32xf32>
    %71 = vector.shape_cast %70 : vector<1x32x32xf32> to vector<32x32xf32>
    %cst_39 = arith.constant dense<0.000000e+00> : vector<32x704xf32>
    %72 = tpu.matmul %71, %66, %cst_39 {dimension_numbers = #tpu.dot_dimension_numbers<[1], [0], [0], [1], [0, 0, 1, 1], [], []>} : vector<32x32xf32>, vector<32x704xf32>, vector<32x704xf32> -> vector<32x704xf32>
    %73 = arith.addf %69, %72 : vector<32x704xf32>
    %c1_40 = arith.constant 1 : index
    %c0_41 = arith.constant 0 : index
    %c0_42 = arith.constant 0 : index
    %74 = vector.load %arg7[%c1_40, %c0_41, %c0_42] : memref<8x32x1xf32, #tpu.memory_space<vmem>>, vector<1x32x1xf32>
    %75 = vector.shape_cast %74 : vector<1x32x1xf32> to vector<32x1xf32>
    %76 = vector.broadcast %75 : vector<32x1xf32> to vector<32x704xf32>
    %77 = arith.addf %73, %76 : vector<32x704xf32>
    %cst_43 = arith.constant 0.000000e+00 : f32
    %78 = vector.broadcast %cst_43 : f32 to vector<32x704xf32>
    %79 = arith.maximumf %77, %78 : vector<32x704xf32>
    %80 = vector.extract_strided_slice %79 {offsets = [0, 0], sizes = [32, 352], strides = [1, 1]} : vector<32x704xf32> to vector<32x352xf32>
    %81 = vector.extract_strided_slice %79 {offsets = [0, 352], sizes = [32, 352], strides = [1, 1]} : vector<32x704xf32> to vector<32x352xf32>
    %c2_44 = arith.constant 2 : index
    %c0_45 = arith.constant 0 : index
    %c0_46 = arith.constant 0 : index
    %82 = vector.load %arg5[%c2_44, %c0_45, %c0_46] : memref<8x32x32xf32, #tpu.memory_space<vmem>>, vector<1x32x32xf32>
    %83 = vector.shape_cast %82 : vector<1x32x32xf32> to vector<32x32xf32>
    %cst_47 = arith.constant dense<0.000000e+00> : vector<32x352xf32>
    %84 = tpu.matmul %83, %80, %cst_47 {dimension_numbers = #tpu.dot_dimension_numbers<[1], [0], [0], [1], [0, 0, 1, 1], [], []>} : vector<32x32xf32>, vector<32x352xf32>, vector<32x352xf32> -> vector<32x352xf32>
    %c2_48 = arith.constant 2 : index
    %c0_49 = arith.constant 0 : index
    %c0_50 = arith.constant 0 : index
    %85 = vector.load %arg6[%c2_48, %c0_49, %c0_50] : memref<8x32x32xf32, #tpu.memory_space<vmem>>, vector<1x32x32xf32>
    %86 = vector.shape_cast %85 : vector<1x32x32xf32> to vector<32x32xf32>
    %cst_51 = arith.constant dense<0.000000e+00> : vector<32x352xf32>
    %87 = tpu.matmul %86, %81, %cst_51 {dimension_numbers = #tpu.dot_dimension_numbers<[1], [0], [0], [1], [0, 0, 1, 1], [], []>} : vector<32x32xf32>, vector<32x352xf32>, vector<32x352xf32> -> vector<32x352xf32>
    %88 = arith.addf %84, %87 : vector<32x352xf32>
    %c2_52 = arith.constant 2 : index
    %c0_53 = arith.constant 0 : index
    %c0_54 = arith.constant 0 : index
    %89 = vector.load %arg7[%c2_52, %c0_53, %c0_54] : memref<8x32x1xf32, #tpu.memory_space<vmem>>, vector<1x32x1xf32>
    %90 = vector.shape_cast %89 : vector<1x32x1xf32> to vector<32x1xf32>
    %91 = vector.broadcast %90 : vector<32x1xf32> to vector<32x352xf32>
    %92 = arith.addf %88, %91 : vector<32x352xf32>
    %cst_55 = arith.constant 0.000000e+00 : f32
    %93 = vector.broadcast %cst_55 : f32 to vector<32x352xf32>
    %94 = arith.maximumf %92, %93 : vector<32x352xf32>
    %95 = vector.extract_strided_slice %94 {offsets = [0, 0], sizes = [32, 176], strides = [1, 1]} : vector<32x352xf32> to vector<32x176xf32>
    %96 = vector.extract_strided_slice %94 {offsets = [0, 176], sizes = [32, 176], strides = [1, 1]} : vector<32x352xf32> to vector<32x176xf32>
    %c3 = arith.constant 3 : index
    %c0_56 = arith.constant 0 : index
    %c0_57 = arith.constant 0 : index
    %97 = vector.load %arg5[%c3, %c0_56, %c0_57] : memref<8x32x32xf32, #tpu.memory_space<vmem>>, vector<1x32x32xf32>
    %98 = vector.shape_cast %97 : vector<1x32x32xf32> to vector<32x32xf32>
    %cst_58 = arith.constant dense<0.000000e+00> : vector<32x176xf32>
    %99 = tpu.matmul %98, %95, %cst_58 {dimension_numbers = #tpu.dot_dimension_numbers<[1], [0], [0], [1], [0, 0, 1, 1], [], []>} : vector<32x32xf32>, vector<32x176xf32>, vector<32x176xf32> -> vector<32x176xf32>
    %c3_59 = arith.constant 3 : index
    %c0_60 = arith.constant 0 : index
    %c0_61 = arith.constant 0 : index
    %100 = vector.load %arg6[%c3_59, %c0_60, %c0_61] : memref<8x32x32xf32, #tpu.memory_space<vmem>>, vector<1x32x32xf32>
    %101 = vector.shape_cast %100 : vector<1x32x32xf32> to vector<32x32xf32>
    %cst_62 = arith.constant dense<0.000000e+00> : vector<32x176xf32>
    %102 = tpu.matmul %101, %96, %cst_62 {dimension_numbers = #tpu.dot_dimension_numbers<[1], [0], [0], [1], [0, 0, 1, 1], [], []>} : vector<32x32xf32>, vector<32x176xf32>, vector<32x176xf32> -> vector<32x176xf32>
    %103 = arith.addf %99, %102 : vector<32x176xf32>
    %c3_63 = arith.constant 3 : index
    %c0_64 = arith.constant 0 : index
    %c0_65 = arith.constant 0 : index
    %104 = vector.load %arg7[%c3_63, %c0_64, %c0_65] : memref<8x32x1xf32, #tpu.memory_space<vmem>>, vector<1x32x1xf32>
    %105 = vector.shape_cast %104 : vector<1x32x1xf32> to vector<32x1xf32>
    %106 = vector.broadcast %105 : vector<32x1xf32> to vector<32x176xf32>
    %107 = arith.addf %103, %106 : vector<32x176xf32>
    %cst_66 = arith.constant 0.000000e+00 : f32
    %108 = vector.broadcast %cst_66 : f32 to vector<32x176xf32>
    %109 = arith.maximumf %107, %108 : vector<32x176xf32>
    %110 = vector.extract_strided_slice %109 {offsets = [0, 0], sizes = [32, 88], strides = [1, 1]} : vector<32x176xf32> to vector<32x88xf32>
    %111 = vector.extract_strided_slice %109 {offsets = [0, 88], sizes = [32, 88], strides = [1, 1]} : vector<32x176xf32> to vector<32x88xf32>
    %c4 = arith.constant 4 : index
    %c0_67 = arith.constant 0 : index
    %c0_68 = arith.constant 0 : index
    %112 = vector.load %arg5[%c4, %c0_67, %c0_68] : memref<8x32x32xf32, #tpu.memory_space<vmem>>, vector<1x32x32xf32>
    %113 = vector.shape_cast %112 : vector<1x32x32xf32> to vector<32x32xf32>
    %cst_69 = arith.constant dense<0.000000e+00> : vector<32x88xf32>
    %114 = tpu.matmul %113, %110, %cst_69 {dimension_numbers = #tpu.dot_dimension_numbers<[1], [0], [0], [1], [0, 0, 1, 1], [], []>} : vector<32x32xf32>, vector<32x88xf32>, vector<32x88xf32> -> vector<32x88xf32>
    %c4_70 = arith.constant 4 : index
    %c0_71 = arith.constant 0 : index
    %c0_72 = arith.constant 0 : index
    %115 = vector.load %arg6[%c4_70, %c0_71, %c0_72] : memref<8x32x32xf32, #tpu.memory_space<vmem>>, vector<1x32x32xf32>
    %116 = vector.shape_cast %115 : vector<1x32x32xf32> to vector<32x32xf32>
    %cst_73 = arith.constant dense<0.000000e+00> : vector<32x88xf32>
    %117 = tpu.matmul %116, %111, %cst_73 {dimension_numbers = #tpu.dot_dimension_numbers<[1], [0], [0], [1], [0, 0, 1, 1], [], []>} : vector<32x32xf32>, vector<32x88xf32>, vector<32x88xf32> -> vector<32x88xf32>
    %118 = arith.addf %114, %117 : vector<32x88xf32>
    %c4_74 = arith.constant 4 : index
    %c0_75 = arith.constant 0 : index
    %c0_76 = arith.constant 0 : index
    %119 = vector.load %arg7[%c4_74, %c0_75, %c0_76] : memref<8x32x1xf32, #tpu.memory_space<vmem>>, vector<1x32x1xf32>
    %120 = vector.shape_cast %119 : vector<1x32x1xf32> to vector<32x1xf32>
    %121 = vector.broadcast %120 : vector<32x1xf32> to vector<32x88xf32>
    %122 = arith.addf %118, %121 : vector<32x88xf32>
    %cst_77 = arith.constant 0.000000e+00 : f32
    %123 = vector.broadcast %cst_77 : f32 to vector<32x88xf32>
    %124 = arith.maximumf %122, %123 : vector<32x88xf32>
    %125 = vector.extract_strided_slice %124 {offsets = [0, 0], sizes = [32, 44], strides = [1, 1]} : vector<32x88xf32> to vector<32x44xf32>
    %126 = vector.extract_strided_slice %124 {offsets = [0, 44], sizes = [32, 44], strides = [1, 1]} : vector<32x88xf32> to vector<32x44xf32>
    %c5 = arith.constant 5 : index
    %c0_78 = arith.constant 0 : index
    %c0_79 = arith.constant 0 : index
    %127 = vector.load %arg5[%c5, %c0_78, %c0_79] : memref<8x32x32xf32, #tpu.memory_space<vmem>>, vector<1x32x32xf32>
    %128 = vector.shape_cast %127 : vector<1x32x32xf32> to vector<32x32xf32>
    %cst_80 = arith.constant dense<0.000000e+00> : vector<32x44xf32>
    %129 = tpu.matmul %128, %125, %cst_80 {dimension_numbers = #tpu.dot_dimension_numbers<[1], [0], [0], [1], [0, 0, 1, 1], [], []>} : vector<32x32xf32>, vector<32x44xf32>, vector<32x44xf32> -> vector<32x44xf32>
    %c5_81 = arith.constant 5 : index
    %c0_82 = arith.constant 0 : index
    %c0_83 = arith.constant 0 : index
    %130 = vector.load %arg6[%c5_81, %c0_82, %c0_83] : memref<8x32x32xf32, #tpu.memory_space<vmem>>, vector<1x32x32xf32>
    %131 = vector.shape_cast %130 : vector<1x32x32xf32> to vector<32x32xf32>
    %cst_84 = arith.constant dense<0.000000e+00> : vector<32x44xf32>
    %132 = tpu.matmul %131, %126, %cst_84 {dimension_numbers = #tpu.dot_dimension_numbers<[1], [0], [0], [1], [0, 0, 1, 1], [], []>} : vector<32x32xf32>, vector<32x44xf32>, vector<32x44xf32> -> vector<32x44xf32>
    %133 = arith.addf %129, %132 : vector<32x44xf32>
    %c5_85 = arith.constant 5 : index
    %c0_86 = arith.constant 0 : index
    %c0_87 = arith.constant 0 : index
    %134 = vector.load %arg7[%c5_85, %c0_86, %c0_87] : memref<8x32x1xf32, #tpu.memory_space<vmem>>, vector<1x32x1xf32>
    %135 = vector.shape_cast %134 : vector<1x32x1xf32> to vector<32x1xf32>
    %136 = vector.broadcast %135 : vector<32x1xf32> to vector<32x44xf32>
    %137 = arith.addf %133, %136 : vector<32x44xf32>
    %cst_88 = arith.constant 0.000000e+00 : f32
    %138 = vector.broadcast %cst_88 : f32 to vector<32x44xf32>
    %139 = arith.maximumf %137, %138 : vector<32x44xf32>
    %140 = vector.extract_strided_slice %139 {offsets = [0, 0], sizes = [32, 22], strides = [1, 1]} : vector<32x44xf32> to vector<32x22xf32>
    %141 = vector.extract_strided_slice %139 {offsets = [0, 22], sizes = [32, 22], strides = [1, 1]} : vector<32x44xf32> to vector<32x22xf32>
    %c6 = arith.constant 6 : index
    %c0_89 = arith.constant 0 : index
    %c0_90 = arith.constant 0 : index
    %142 = vector.load %arg5[%c6, %c0_89, %c0_90] : memref<8x32x32xf32, #tpu.memory_space<vmem>>, vector<1x32x32xf32>
    %143 = vector.shape_cast %142 : vector<1x32x32xf32> to vector<32x32xf32>
    %cst_91 = arith.constant dense<0.000000e+00> : vector<32x22xf32>
    %144 = tpu.matmul %143, %140, %cst_91 {dimension_numbers = #tpu.dot_dimension_numbers<[1], [0], [0], [1], [0, 0, 1, 1], [], []>} : vector<32x32xf32>, vector<32x22xf32>, vector<32x22xf32> -> vector<32x22xf32>
    %c6_92 = arith.constant 6 : index
    %c0_93 = arith.constant 0 : index
    %c0_94 = arith.constant 0 : index
    %145 = vector.load %arg6[%c6_92, %c0_93, %c0_94] : memref<8x32x32xf32, #tpu.memory_space<vmem>>, vector<1x32x32xf32>
    %146 = vector.shape_cast %145 : vector<1x32x32xf32> to vector<32x32xf32>
    %cst_95 = arith.constant dense<0.000000e+00> : vector<32x22xf32>
    %147 = tpu.matmul %146, %141, %cst_95 {dimension_numbers = #tpu.dot_dimension_numbers<[1], [0], [0], [1], [0, 0, 1, 1], [], []>} : vector<32x32xf32>, vector<32x22xf32>, vector<32x22xf32> -> vector<32x22xf32>
    %148 = arith.addf %144, %147 : vector<32x22xf32>
    %c6_96 = arith.constant 6 : index
    %c0_97 = arith.constant 0 : index
    %c0_98 = arith.constant 0 : index
    %149 = vector.load %arg7[%c6_96, %c0_97, %c0_98] : memref<8x32x1xf32, #tpu.memory_space<vmem>>, vector<1x32x1xf32>
    %150 = vector.shape_cast %149 : vector<1x32x1xf32> to vector<32x1xf32>
    %151 = vector.broadcast %150 : vector<32x1xf32> to vector<32x22xf32>
    %152 = arith.addf %148, %151 : vector<32x22xf32>
    %cst_99 = arith.constant 0.000000e+00 : f32
    %153 = vector.broadcast %cst_99 : f32 to vector<32x22xf32>
    %154 = arith.maximumf %152, %153 : vector<32x22xf32>
    %155 = vector.extract_strided_slice %154 {offsets = [0, 0], sizes = [32, 11], strides = [1, 1]} : vector<32x22xf32> to vector<32x11xf32>
    %156 = vector.extract_strided_slice %154 {offsets = [0, 11], sizes = [32, 11], strides = [1, 1]} : vector<32x22xf32> to vector<32x11xf32>
    %c7 = arith.constant 7 : index
    %c0_100 = arith.constant 0 : index
    %c0_101 = arith.constant 0 : index
    %157 = vector.load %arg5[%c7, %c0_100, %c0_101] : memref<8x32x32xf32, #tpu.memory_space<vmem>>, vector<1x32x32xf32>
    %158 = vector.shape_cast %157 : vector<1x32x32xf32> to vector<32x32xf32>
    %cst_102 = arith.constant dense<0.000000e+00> : vector<32x11xf32>
    %159 = tpu.matmul %158, %155, %cst_102 {dimension_numbers = #tpu.dot_dimension_numbers<[1], [0], [0], [1], [0, 0, 1, 1], [], []>} : vector<32x32xf32>, vector<32x11xf32>, vector<32x11xf32> -> vector<32x11xf32>
    %c7_103 = arith.constant 7 : index
    %c0_104 = arith.constant 0 : index
    %c0_105 = arith.constant 0 : index
    %160 = vector.load %arg6[%c7_103, %c0_104, %c0_105] : memref<8x32x32xf32, #tpu.memory_space<vmem>>, vector<1x32x32xf32>
    %161 = vector.shape_cast %160 : vector<1x32x32xf32> to vector<32x32xf32>
    %cst_106 = arith.constant dense<0.000000e+00> : vector<32x11xf32>
    %162 = tpu.matmul %161, %156, %cst_106 {dimension_numbers = #tpu.dot_dimension_numbers<[1], [0], [0], [1], [0, 0, 1, 1], [], []>} : vector<32x32xf32>, vector<32x11xf32>, vector<32x11xf32> -> vector<32x11xf32>
    %163 = arith.addf %159, %162 : vector<32x11xf32>
    %c7_107 = arith.constant 7 : index
    %c0_108 = arith.constant 0 : index
    %c0_109 = arith.constant 0 : index
    %164 = vector.load %arg7[%c7_107, %c0_108, %c0_109] : memref<8x32x1xf32, #tpu.memory_space<vmem>>, vector<1x32x1xf32>
    %165 = vector.shape_cast %164 : vector<1x32x1xf32> to vector<32x1xf32>
    %166 = vector.broadcast %165 : vector<32x1xf32> to vector<32x11xf32>
    %167 = arith.addf %163, %166 : vector<32x11xf32>
    %c0_110 = arith.constant 0 : index
    %c0_111 = arith.constant 0 : index
    %168 = vector.load %arg8[%c0_110, %c0_111] : memref<32x11xf32, #tpu.memory_space<vmem>>, vector<32x11xf32>
    %169 = arith.mulf %167, %168 : vector<32x11xf32>
    %170 = vector.shape_cast %169 : vector<32x11xf32> to vector<1x32x11xf32>
    %cst_112 = arith.constant dense<0.000000e+00> : vector<1xf32>
    %171 = vector.multi_reduction <add>, %170, %cst_112 [1, 2] : vector<1x32x11xf32> to vector<1xf32>
    %172 = vector.shape_cast %171 : vector<1xf32> to vector<1x1x1xf32>
    %173 = vector.extract %172[0, 0, 0] : f32 from vector<1x1x1xf32>
    %174 = vector.broadcast %173 : f32 to vector<1x1xf32>
    %c0_113 = arith.constant 0 : index
    %c0_114 = arith.constant 0 : index
    %175 = vector.load %arg9[%c0_113, %c0_114] : memref<1x1xf32, #tpu.memory_space<vmem>>, vector<1x1xf32>
    %176 = arith.addf %174, %175 : vector<1x1xf32>
    %177 = vector.shape_cast %176 : vector<1x1xf32> to vector<1x1xf32>
    %178 = vector.broadcast %177 : vector<1x1xf32> to vector<1x128xf32>
    %c0_115 = arith.constant 0 : index
    %c0_116 = arith.constant 0 : index
    %179 = vector.load %arg10[%c0_115, %c0_116] : memref<1x128xf32, #tpu.memory_space<vmem>>, vector<1x128xf32>
    tpu.vector_store %arg10[%c0_115, %c0_116], %178 {strides = array<i32>} : memref<1x128xf32, #tpu.memory_space<vmem>>, vector<1x128xf32>,
    return
  }
  func.func @transform_0(%arg0: i32) -> (i32, i32, i32) {
    %c0_i32 = arith.constant 0 : i32
    %c0_i32_0 = arith.constant 0 : i32
    %c0_i32_1 = arith.constant 0 : i32
    return %arg0, %c0_i32, %c0_i32_0 : i32, i32, i32
  }
  func.func @transform_1(%arg0: i32) -> (i32, i32, i32) {
    %c0_i32 = arith.constant 0 : i32
    %c0_i32_0 = arith.constant 0 : i32
    %c0_i32_1 = arith.constant 0 : i32
    %c0_i32_2 = arith.constant 0 : i32
    return %c0_i32, %c0_i32_0, %c0_i32_1 : i32, i32, i32
  }
  func.func @transform_2(%arg0: i32) -> (i32, i32, i32) {
    %c0_i32 = arith.constant 0 : i32
    %c0_i32_0 = arith.constant 0 : i32
    %c0_i32_1 = arith.constant 0 : i32
    %c0_i32_2 = arith.constant 0 : i32
    return %c0_i32, %c0_i32_0, %c0_i32_1 : i32, i32, i32
  }
  func.func @transform_3(%arg0: i32) -> (i32, i32) {
    %c0_i32 = arith.constant 0 : i32
    %c0_i32_0 = arith.constant 0 : i32
    %c0_i32_1 = arith.constant 0 : i32
    return %c0_i32, %c0_i32_0 : i32, i32
  }
  func.func @transform_4(%arg0: i32) -> (i32, i32, i32) {
    %c0_i32 = arith.constant 0 : i32
    %c0_i32_0 = arith.constant 0 : i32
    %c0_i32_1 = arith.constant 0 : i32
    %c0_i32_2 = arith.constant 0 : i32
    return %c0_i32, %c0_i32_0, %c0_i32_1 : i32, i32, i32
  }
  func.func @transform_5(%arg0: i32) -> (i32, i32, i32) {
    %c0_i32 = arith.constant 0 : i32
    %c0_i32_0 = arith.constant 0 : i32
    %c0_i32_1 = arith.constant 0 : i32
    %c0_i32_2 = arith.constant 0 : i32
    return %c0_i32, %c0_i32_0, %c0_i32_1 : i32, i32, i32
  }
  func.func @transform_6(%arg0: i32) -> (i32, i32, i32) {
    %c0_i32 = arith.constant 0 : i32
    %c0_i32_0 = arith.constant 0 : i32
    %c0_i32_1 = arith.constant 0 : i32
    %c0_i32_2 = arith.constant 0 : i32
    return %c0_i32, %c0_i32_0, %c0_i32_1 : i32, i32, i32
  }
  func.func @transform_7(%arg0: i32) -> (i32, i32) {
    %c0_i32 = arith.constant 0 : i32
    %c0_i32_0 = arith.constant 0 : i32
    %c0_i32_1 = arith.constant 0 : i32
    return %c0_i32, %c0_i32_0 : i32, i32
  }
  func.func @transform_8(%arg0: i32) -> (i32, i32) {
    %c0_i32 = arith.constant 0 : i32
    %c0_i32_0 = arith.constant 0 : i32
    %c0_i32_1 = arith.constant 0 : i32
    return %c0_i32, %c0_i32_0 : i32, i32
  }
  func.func @transform_9(%arg0: i32) -> (i32, i32) {
    %c0_i32 = arith.constant 0 : i32
    %c0_i32_0 = arith.constant 0 : i32
    return %c0_i32, %arg0 : i32, i32
  }
}

</mosaic_0001>

<llo_original>
// kernel: convnet_quake_ingv_forward.1
$region0: #{convnet_quake_ingv_forward.1}
  #allocation0 [shape = 'u32[]', space=smem, size = 0x4, offset = 0x4, fixed_abs, tag = 'smem constant byte address 0x4 - core index']
  #allocation1 [shape = 'u32[144,128]{1,0:T(1,128)}', space=vmem, size = 0x12000, scoped, tag = 'internal scratch']
  #allocation2 [shape = 'f32[1,1]{1,0:T(1,128)S(1)}', space=vmem, size = 0x200, scoped, tag = 'scoped memory for convnet_quake_ingv_forward.1']
  %s0 = inlined_call_operand.vmem [shape: f32[2,3,5632], index: 0, kind: input, shape index: {}]
  %s1 = inlined_call_operand.vmem [shape: f32[3,32,1], index: 1, kind: input, shape index: {}]
  %s2 = inlined_call_operand.vmem [shape: f32[3,32,1], index: 2, kind: input, shape index: {}]
  %s3 = inlined_call_operand.vmem [shape: f32[32,1], index: 3, kind: input, shape index: {}]
  %s4 = inlined_call_operand.vmem [shape: f32[8,32,32], index: 4, kind: input, shape index: {}]
  %s5 = inlined_call_operand.vmem [shape: f32[8,32,32], index: 5, kind: input, shape index: {}]
  %s6 = inlined_call_operand.vmem [shape: f32[8,32,1], index: 6, kind: input, shape index: {}]
  %s7 = inlined_call_operand.vmem [shape: f32[32,11], index: 7, kind: input, shape index: {}]
  %s8 = inlined_call_operand.<no memory space> [shape: f32[1,1], index: 8, kind: input, shape index: {}]
  %s9 = inlined_call_operand.vmem [shape: f32[1,256], index: 9, kind: output, shape index: {}]
  %s10 = sld [smem:[#allocation0]]
  $region69: #{convnet_quake_ingv_forward.1} parent=0
    _
  %s12 = ssub.s32 1, %s10
  %s13 = scalar_select 0, %s12, %s10
  %v14 = vstv %s8
  %15 = vst [vmem:[#allocation2] sm:$0x1] %v14
  loop: start=0, step=1, limit=4
  $region2: #{convnet_quake_ingv_forward.1} parent=0 // loop_pre_header
    _
  $region3: #{convnet_quake_ingv_forward.1} parent=0 // loop_header
    %s17 = sphi 0, %s21
    %p18 = scmp.ge.s32.totalorder %s17, 4
    %s27 = sphi 0, %s29
    %s30 = sphi 0, %s27
    %s31 = sphi 0, %s30
    %s47 = sphi 0, %s31
    %s51 = sphi 0, %s51
    %s53 = sphi 0, %s51
    %s54 = sphi 0, %s53
    %s68 = sphi 0, %s54
    %s72 = sphi 0, %s72
    %s74 = sphi 0, %s72
    %s75 = sphi 0, %s74
    %s89 = sphi 0, %s75
    %s93 = sphi 0, %s93
    %s95 = sphi 0, %s93
    %s96 = sphi 0, %s95
    %s110 = sphi 0, %s96
    %s114 = sphi 0, %s114
    %s116 = sphi 0, %s114
    %s117 = sphi 0, %s116
    %s131 = sphi 0, %s117
    %s135 = sphi 0, %s135
    %s137 = sphi 0, %s135
    %s138 = sphi 0, %s137
    %s152 = sphi 0, %s138
    %s156 = sphi 0, %s156
    %s158 = sphi 0, %s156
    %s159 = sphi 0, %s158
    %s173 = sphi 0, %s159
    %s177 = sphi 0, %s177
    %s179 = sphi 0, %s177
    %s180 = sphi 0, %s179
    %s194 = sphi 0, %s180
    %s198 = sphi 0, %s198
    %s200 = sphi 0, %s198
    %s201 = sphi 0, %s200
    %s215 = sphi 0, %s201
    %s221 = sphi 0, %s223
    %s224 = sphi 0, %s221
    %s225 = sphi 0, %s224
    %s241 = sphi 0, %s225
  $region4: #{convnet_quake_ingv_forward.1} parent=0 // loop_header_branch
    %20 = sbr.rel (%p18) target = $region8
  $region5: #{convnet_quake_ingv_forward.1} parent=0 // loop_body
    %s22 = ssub.s32 %s17, 1
    %s23 = ssub.s32 %s17, 2
    %s24 = sadd.s32 %s17, 1
    %s25 = ssub.s32 %s17, %s24
    %p26 = scmp.eq.s32.totalorder %s25, 0
    %s28 = sadd.s32 %s27, 1
    %s29 = scalar_select %p26, %s27, %s28
    %p32 = pneg %p26
    %p33 = scmp.eq.s32.totalorder %s17, 1
    %p34 = por %p32, %p33
    %p35 = scmp.ne.s32.totalorder %s27, %s30
    %p36 = scmp.eq.s32.totalorder %s17, 0
    %p37 = por %p35, %p36
    %p38 = scmp.ne.s32.totalorder %s27, %s30
    %p39 = scmp.eq.s32.totalorder %s22, 1
    %p40 = por %p38, %p39
    %p41 = scmp.ne.s32.totalorder %s30, %s31
    %p42 = scmp.eq.s32.totalorder %s22, 0
    %p43 = por %p41, %p42
    %p44 = scmp.ne.s32.totalorder %s30, %s31
    %p45 = scmp.eq.s32.totalorder %s23, 1
    %p46 = por %p44, %p45
    %p48 = scmp.ne.s32.totalorder %s31, %s47
    %p49 = scmp.eq.s32.totalorder %s23, 0
    %p50 = por %p48, %p49
    %s52 = sadd.s32 %s51, 1
    %p55 = scmp.eq.s32.totalorder %s17, 1
    %p56 = scmp.ne.s32.totalorder %s51, %s53
    %p57 = scmp.eq.s32.totalorder %s17, 0
    %p58 = por %p56, %p57
    %p59 = scmp.ne.s32.totalorder %s51, %s53
    %p60 = scmp.eq.s32.totalorder %s22, 1
    %p61 = por %p59, %p60
    %p62 = scmp.ne.s32.totalorder %s53, %s54
    %p63 = scmp.eq.s32.totalorder %s22, 0
    %p64 = por %p62, %p63
    %p65 = scmp.ne.s32.totalorder %s53, %s54
    %p66 = scmp.eq.s32.totalorder %s23, 1
    %p67 = por %p65, %p66
    %p69 = scmp.ne.s32.totalorder %s54, %s68
    %p70 = scmp.eq.s32.totalorder %s23, 0
    %p71 = por %p69, %p70
    %s73 = sadd.s32 %s72, 1
    %p76 = scmp.eq.s32.totalorder %s17, 1
    %p77 = scmp.ne.s32.totalorder %s72, %s74
    %p78 = scmp.eq.s32.totalorder %s17, 0
    %p79 = por %p77, %p78
    %p80 = scmp.ne.s32.totalorder %s72, %s74
    %p81 = scmp.eq.s32.totalorder %s22, 1
    %p82 = por %p80, %p81
    %p83 = scmp.ne.s32.totalorder %s74, %s75
    %p84 = scmp.eq.s32.totalorder %s22, 0
    %p85 = por %p83, %p84
    %p86 = scmp.ne.s32.totalorder %s74, %s75
    %p87 = scmp.eq.s32.totalorder %s23, 1
    %p88 = por %p86, %p87
    %p90 = scmp.ne.s32.totalorder %s75, %s89
    %p91 = scmp.eq.s32.totalorder %s23, 0
    %p92 = por %p90, %p91
    %s94 = sadd.s32 %s93, 1
    %p97 = scmp.eq.s32.totalorder %s17, 1
    %p98 = scmp.ne.s32.totalorder %s93, %s95
    %p99 = scmp.eq.s32.totalorder %s17, 0
    %p100 = por %p98, %p99
    %p101 = scmp.ne.s32.totalorder %s93, %s95
    %p102 = scmp.eq.s32.totalorder %s22, 1
    %p103 = por %p101, %p102
    %p104 = scmp.ne.s32.totalorder %s95, %s96
    %p105 = scmp.eq.s32.totalorder %s22, 0
    %p106 = por %p104, %p105
    %p107 = scmp.ne.s32.totalorder %s95, %s96
    %p108 = scmp.eq.s32.totalorder %s23, 1
    %p109 = por %p107, %p108
    %p111 = scmp.ne.s32.totalorder %s96, %s110
    %p112 = scmp.eq.s32.totalorder %s23, 0
    %p113 = por %p111, %p112
    %s115 = sadd.s32 %s114, 1
    %p118 = scmp.eq.s32.totalorder %s17, 1
    %p119 = scmp.ne.s32.totalorder %s114, %s116
    %p120 = scmp.eq.s32.totalorder %s17, 0
    %p121 = por %p119, %p120
    %p122 = scmp.ne.s32.totalorder %s114, %s116
    %p123 = scmp.eq.s32.totalorder %s22, 1
    %p124 = por %p122, %p123
    %p125 = scmp.ne.s32.totalorder %s116, %s117
    %p126 = scmp.eq.s32.totalorder %s22, 0
    %p127 = por %p125, %p126
    %p128 = scmp.ne.s32.totalorder %s116, %s117
    %p129 = scmp.eq.s32.totalorder %s23, 1
    %p130 = por %p128, %p129
    %p132 = scmp.ne.s32.totalorder %s117, %s131
    %p133 = scmp.eq.s32.totalorder %s23, 0
    %p134 = por %p132, %p133
    %s136 = sadd.s32 %s135, 1
    %p139 = scmp.eq.s32.totalorder %s17, 1
    %p140 = scmp.ne.s32.totalorder %s135, %s137
    %p141 = scmp.eq.s32.totalorder %s17, 0
    %p142 = por %p140, %p141
    %p143 = scmp.ne.s32.totalorder %s135, %s137
    %p144 = scmp.eq.s32.totalorder %s22, 1
    %p145 = por %p143, %p144
    %p146 = scmp.ne.s32.totalorder %s137, %s138
    %p147 = scmp.eq.s32.totalorder %s22, 0
    %p148 = por %p146, %p147
    %p149 = scmp.ne.s32.totalorder %s137, %s138
    %p150 = scmp.eq.s32.totalorder %s23, 1
    %p151 = por %p149, %p150
    %p153 = scmp.ne.s32.totalorder %s138, %s152
    %p154 = scmp.eq.s32.totalorder %s23, 0
    %p155 = por %p153, %p154
    %s157 = sadd.s32 %s156, 1
    %p160 = scmp.eq.s32.totalorder %s17, 1
    %p161 = scmp.ne.s32.totalorder %s156, %s158
    %p162 = scmp.eq.s32.totalorder %s17, 0
    %p163 = por %p161, %p162
    %p164 = scmp.ne.s32.totalorder %s156, %s158
    %p165 = scmp.eq.s32.totalorder %s22, 1
    %p166 = por %p164, %p165
    %p167 = scmp.ne.s32.totalorder %s158, %s159
    %p168 = scmp.eq.s32.totalorder %s22, 0
    %p169 = por %p167, %p168
    %p170 = scmp.ne.s32.totalorder %s158, %s159
    %p171 = scmp.eq.s32.totalorder %s23, 1
    %p172 = por %p170, %p171
    %p174 = scmp.ne.s32.totalorder %s159, %s173
    %p175 = scmp.eq.s32.totalorder %s23, 0
    %p176 = por %p174, %p175
    %s178 = sadd.s32 %s177, 1
    %p181 = scmp.eq.s32.totalorder %s17, 1
    %p182 = scmp.ne.s32.totalorder %s177, %s179
    %p183 = scmp.eq.s32.totalorder %s17, 0
    %p184 = por %p182, %p183
    %p185 = scmp.ne.s32.totalorder %s177, %s179
    %p186 = scmp.eq.s32.totalorder %s22, 1
    %p187 = por %p185, %p186
    %p188 = scmp.ne.s32.totalorder %s179, %s180
    %p189 = scmp.eq.s32.totalorder %s22, 0
    %p190 = por %p188, %p189
    %p191 = scmp.ne.s32.totalorder %s179, %s180
    %p192 = scmp.eq.s32.totalorder %s23, 1
    %p193 = por %p191, %p192
    %p195 = scmp.ne.s32.totalorder %s180, %s194
    %p196 = scmp.eq.s32.totalorder %s23, 0
    %p197 = por %p195, %p196
    %s199 = sadd.s32 %s198, 1
    %p202 = scmp.eq.s32.totalorder %s17, 1
    %p203 = scmp.ne.s32.totalorder %s198, %s200
    %p204 = scmp.eq.s32.totalorder %s17, 0
    %p205 = por %p203, %p204
    %p206 = scmp.ne.s32.totalorder %s198, %s200
    %p207 = scmp.eq.s32.totalorder %s22, 1
    %p208 = por %p206, %p207
    %p209 = scmp.ne.s32.totalorder %s200, %s201
    %p210 = scmp.eq.s32.totalorder %s22, 0
    %p211 = por %p209, %p210
    %p212 = scmp.ne.s32.totalorder %s200, %s201
    %p213 = scmp.eq.s32.totalorder %s23, 1
    %p214 = por %p212, %p213
    %p216 = scmp.ne.s32.totalorder %s201, %s215
    %p217 = scmp.eq.s32.totalorder %s23, 0
    %p218 = por %p216, %p217
    %s219 = ssub.s32 %s17, %s24
    %p220 = scmp.eq.s32.totalorder %s219, 0
    %s222 = sadd.s32 %s221, 1
    %s223 = scalar_select %p220, %s221, %s222
    %p226 = pneg %p220
    %p227 = scmp.eq.s32.totalorder %s17, 1
    %p228 = por %p226, %p227
    %p229 = scmp.ne.s32.totalorder %s221, %s224
    %p230 = scmp.eq.s32.totalorder %s17, 0
    %p231 = por %p229, %p230
    %p232 = scmp.ne.s32.totalorder %s221, %s224
    %p233 = scmp.eq.s32.totalorder %s22, 1
    %p234 = por %p232, %p233
    %p235 = scmp.ne.s32.totalorder %s224, %s225
    %p236 = scmp.eq.s32.totalorder %s22, 0
    %p237 = por %p235, %p236
    %p238 = scmp.ne.s32.totalorder %s224, %s225
    %p239 = scmp.eq.s32.totalorder %s23, 1
    %p240 = por %p238, %p239
    %p242 = scmp.ne.s32.totalorder %s225, %s241
    %p243 = scmp.eq.s32.totalorder %s23, 0
    %p244 = por %p242, %p243
    %p245 = scmp.le.s32.totalorder 1, %s17
    %p246 = scmp.lt.s32.totalorder %s17, 3
    %p247 = pnand %p245, %p246
    %p248 = pneg %p247
    // Predicated region
    $region9: #{convnet_quake_ingv_forward.1} parent=5 // pred_check
      _
    $region10: #{convnet_quake_ingv_forward.1} parent=5 // pred_check_branch
      %250 = sbr.rel (%p247) target = $region12
    $region11: #{convnet_quake_ingv_forward.1} parent=5 // pred_region
      %s251 = ssub.s32 %s17, 1
      // Predicated region
      $region13: #{convnet_quake_ingv_forward.1} parent=11 // pred_check
        %p252 = pneg %p64
      $region14: #{convnet_quake_ingv_forward.1} parent=11 // pred_check_branch
        %254 = sbr.rel (%p252) target = $region16
      $region15: #{convnet_quake_ingv_forward.1} parent=11 // pred_region
        _
      $region16: #{convnet_quake_ingv_forward.1} parent=11 // pred_fallthru
        _
      // Predicated region
      $region17: #{convnet_quake_ingv_forward.1} parent=11 // pred_check
        %p255 = pneg %p85
      $region18: #{convnet_quake_ingv_forward.1} parent=11 // pred_check_branch
        %257 = sbr.rel (%p255) target = $region20
      $region19: #{convnet_quake_ingv_forward.1} parent=11 // pred_region
        _
      $region20: #{convnet_quake_ingv_forward.1} parent=11 // pred_fallthru
        _
      // Predicated region
      $region21: #{convnet_quake_ingv_forward.1} parent=11 // pred_check
        %p258 = pneg %p106
      $region22: #{convnet_quake_ingv_forward.1} parent=11 // pred_check_branch
        %260 = sbr.rel (%p258) target = $region24
      $region23: #{convnet_quake_ingv_forward.1} parent=11 // pred_region
        _
      $region24: #{convnet_quake_ingv_forward.1} parent=11 // pred_fallthru
        _
      // Predicated region
      $region25: #{convnet_quake_ingv_forward.1} parent=11 // pred_check
        %p261 = pneg %p127
      $region26: #{convnet_quake_ingv_forward.1} parent=11 // pred_check_branch
        %263 = sbr.rel (%p261) target = $region28
      $region27: #{convnet_quake_ingv_forward.1} parent=11 // pred_region
        _
      $region28: #{convnet_quake_ingv_forward.1} parent=11 // pred_fallthru
        _
      // Predicated region
      $region29: #{convnet_quake_ingv_forward.1} parent=11 // pred_check
        %p264 = pneg %p148
      $region30: #{convnet_quake_ingv_forward.1} parent=11 // pred_check_branch
        %266 = sbr.rel (%p264) target = $region32
      $region31: #{convnet_quake_ingv_forward.1} parent=11 // pred_region
        _
      $region32: #{convnet_quake_ingv_forward.1} parent=11 // pred_fallthru
        _
      // Predicated region
      $region33: #{convnet_quake_ingv_forward.1} parent=11 // pred_check
        %p267 = pneg %p169
      $region34: #{convnet_quake_ingv_forward.1} parent=11 // pred_check_branch
        %269 = sbr.rel (%p267) target = $region36
      $region35: #{convnet_quake_ingv_forward.1} parent=11 // pred_region
        _
      $region36: #{convnet_quake_ingv_forward.1} parent=11 // pred_fallthru
        _
      // Predicated region
      $region37: #{convnet_quake_ingv_forward.1} parent=11 // pred_check
        %p270 = pneg %p190
      $region38: #{convnet_quake_ingv_forward.1} parent=11 // pred_check_branch
        %272 = sbr.rel (%p270) target = $region40
      $region39: #{convnet_quake_ingv_forward.1} parent=11 // pred_region
        _
      $region40: #{convnet_quake_ingv_forward.1} parent=11 // pred_fallthru
        _
      // Predicated region
      $region41: #{convnet_quake_ingv_forward.1} parent=11 // pred_check
        %p273 = pneg %p211
      $region42: #{convnet_quake_ingv_forward.1} parent=11 // pred_check_branch
        %275 = sbr.rel (%p273) target = $region44
      $region43: #{convnet_quake_ingv_forward.1} parent=11 // pred_region
        _
      $region44: #{convnet_quake_ingv_forward.1} parent=11 // pred_fallthru
        _
    $region12: #{convnet_quake_ingv_forward.1} parent=5 // pred_fallthru
      _
    %p276 = scmp.lt.s32.totalorder %s17, 2
    // Predicated region
    $region45: #{convnet_quake_ingv_forward.1} parent=5 // pred_check
      %p277 = pneg %p276
    $region46: #{convnet_quake_ingv_forward.1} parent=5 // pred_check_branch
      %279 = sbr.rel (%p277) target = $region48
    $region47: #{convnet_quake_ingv_forward.1} parent=5 // pred_region
      // Predicated region
      $region49: #{convnet_quake_ingv_forward.1} parent=47 // pred_check
        %p280 = pneg %p37
      $region50: #{convnet_quake_ingv_forward.1} parent=47 // pred_check_branch
        %282 = sbr.rel (%p280) target = $region52
      $region51: #{convnet_quake_ingv_forward.1} parent=47 // pred_region
        %p283 = scmp.lt.s32.totalorder %s17, 1
        %s284 = scalar_select %p283, %s17, 1
        %s285 = smul.addr %s284, 44
        %s286 = smul.addr %s285, 4
        %s287 = scalar_lea.vmem %s0, %s286
      $region52: #{convnet_quake_ingv_forward.1} parent=47 // pred_fallthru
        _
    $region48: #{convnet_quake_ingv_forward.1} parent=5 // pred_fallthru
      _
    %p288 = scmp.le.s32.totalorder 1, %s17
    %p289 = scmp.lt.s32.totalorder %s17, 3
    %p290 = pnand %p288, %p289
    %p291 = pneg %p290
    // Predicated region
    $region53: #{convnet_quake_ingv_forward.1} parent=5 // pred_check
      _
    $region54: #{convnet_quake_ingv_forward.1} parent=5 // pred_check_branch
      %293 = sbr.rel (%p290) target = $region56
    $region55: #{convnet_quake_ingv_forward.1} parent=5 // pred_region
      %s294 = ssub.s32 %s17, 1
      %p295 = scmp.lt.s32.totalorder %s22, 1
      %s296 = scalar_select %p295, %s22, 1
      %s297 = smul.addr %s296, 44
      %s298 = smul.addr %s297, 4
      %s299 = scalar_lea.vmem %s0, %s298
      %p300 = pneg %p43
      %p301 = pneg %p40
      %p302 = pneg %p64
      %p303 = pneg %p61
      %p304 = pneg %p85
      %p305 = pneg %p82
      %p306 = pneg %p106
      %p307 = pneg %p103
      %p308 = pneg %p127
      %p309 = pneg %p124
      %p310 = pneg %p148
      %p311 = pneg %p145
      %p312 = pneg %p169
      %p313 = pneg %p166
      %p314 = pneg %p190
      %p315 = pneg %p187
      %p316 = pneg %p211
      %p317 = pneg %p208
      %p318 = pneg %p237
      %p319 = pneg %p234
      %p320 = scmp.lt.s32.totalorder %s22, 1
      %s321 = scalar_select %p320, %s22, 1
      %s322 = scalar_lea.vmem %s9, %s321
      %p323 = scmp.lt.s32.totalorder %s22, 1
      %s324 = scalar_select %p323, %s22, 1
      %s325 = smul.addr %s324, 44
      %s326 = smul.addr %s325, 4
      %s327 = scalar_lea.vmem %s0, %s326
      %p328 = scmp.lt.s32.totalorder %s22, 1
      %s329 = scalar_select %p328, %s22, 1
      %s330 = scalar_lea.vmem %s9, %s329
      %v331 = vld [vmem:[%s327] sm:$0x77]
      %v332 = vld [vmem:[%s327 + $0x8] sm:$0x77]
      %v333 = vld [vmem:[%s327 + $0x10] sm:$0x77]
      %v334 = vld [vmem:[%s327 + $0x18] sm:$0x77]
      %v335 = vld [vmem:[%s327 + $0x20] sm:$0x77]
      %v336 = vld [vmem:[%s327 + $0x28] sm:$0x77]
      %v337 = vld [vmem:[%s327 + $0x30] sm:$0x77]
      %v338 = vld [vmem:[%s327 + $0x38] sm:$0x77]
      %v339 = vld [vmem:[%s327 + $0x40] sm:$0x77]
      %v340 = vld [vmem:[%s327 + $0x48] sm:$0x77]
      %v341 = vld [vmem:[%s327 + $0x50] sm:$0x77]
      %v342 = vld [vmem:[%s327 + $0x58] sm:$0x77]
      %v343 = vld [vmem:[%s327 + $0x60] sm:$0x77]
      %v344 = vld [vmem:[%s327 + $0x68] sm:$0x77]
      %v345 = vld [vmem:[%s327 + $0x70] sm:$0x77]
      %v346 = vld [vmem:[%s327 + $0x78] sm:$0x77]
      %v347 = vld [vmem:[%s327 + $0x80] sm:$0x77]
      %v348 = vld [vmem:[%s327 + $0x88] sm:$0x77]
      %v349 = vld [vmem:[%s327 + $0x90] sm:$0x77]
      %v350 = vld [vmem:[%s327 + $0x98] sm:$0x77]
      %v351 = vld [vmem:[%s327 + $0xa0] sm:$0x77]
      %v352 = vld [vmem:[%s327 + $0xa8] sm:$0x77]
      %v353 = vld [vmem:[%s1] sm:$0xff]
      %v354 = vld [vmem:[%s1 + $0x8] sm:$0xff]
      %v355 = vld [vmem:[%s1 + $0x10] sm:$0xff]
      %v356 = vld [vmem:[%s1 + $0x18] sm:$0xff]
      %358 = vset.pattern.permute.xlu0 0
      %359 = vperm.xlu0 %358, %v353
      %v360 = vpop.permute.xlu0 %359
      %363 = vset.pattern.permute.xlu0 0
      %364 = vperm.xlu0 %363, %v354
      %v365 = vpop.permute.xlu0 %364
      %368 = vset.pattern.permute.xlu0 0
      %369 = vperm.xlu0 %368, %v355
      %v370 = vpop.permute.xlu0 %369
      %373 = vset.pattern.permute.xlu0 0
      %374 = vperm.xlu0 %373, %v356
      %v375 = vpop.permute.xlu0 %374
      %v388 = vlaneseq
      %v389 = vshrl.u32 %v388, 7
      %v390 = vsub.s32 0, %v389
      %v391 = vrot.slane %v331, %v390
      %v392 = vlaneseq
      %v393 = vshrl.u32 %v392, 7
      %v394 = vsub.s32 4, %v393
      %v395 = vrot.slane %v331, %v394
      %v396 = vlaneseq
      %v397 = vshrl.u32 %v396, 7
      %v398 = vsub.s32 0, %v397
      %v399 = vrot.slane %v332, %v398
      %v400 = vlaneseq
      %v401 = vshrl.u32 %v400, 7
      %v402 = vsub.s32 4, %v401
      %v403 = vrot.slane %v332, %v402
      %v404 = vlaneseq
      %v405 = vshrl.u32 %v404, 7
      %v406 = vsub.s32 0, %v405
      %v407 = vrot.slane %v333, %v406
      %v408 = vlaneseq
      %v409 = vshrl.u32 %v408, 7
      %v410 = vsub.s32 4, %v409
      %v411 = vrot.slane %v333, %v410
      %v412 = vlaneseq
      %v413 = vshrl.u32 %v412, 7
      %v414 = vsub.s32 0, %v413
      %v415 = vrot.slane %v334, %v414
      %v416 = vlaneseq
      %v417 = vshrl.u32 %v416, 7
      %v418 = vsub.s32 4, %v417
      %v419 = vrot.slane %v334, %v418
      %v420 = vlaneseq
      %v421 = vshrl.u32 %v420, 7
      %v422 = vsub.s32 0, %v421
      %v423 = vrot.slane %v335, %v422
      %v424 = vlaneseq
      %v425 = vshrl.u32 %v424, 7
      %v426 = vsub.s32 4, %v425
      %v427 = vrot.slane %v335, %v426
      %v428 = vlaneseq
      %v429 = vshrl.u32 %v428, 7
      %v430 = vsub.s32 0, %v429
      %v431 = vrot.slane %v336, %v430
      %v432 = vlaneseq
      %v433 = vshrl.u32 %v432, 7
      %v434 = vsub.s32 4, %v433
      %v435 = vrot.slane %v336, %v434
      %v436 = vlaneseq
      %v437 = vshrl.u32 %v436, 7
      %v438 = vsub.s32 0, %v437
      %v439 = vrot.slane %v337, %v438
      %v440 = vlaneseq
      %v441 = vshrl.u32 %v440, 7
      %v442 = vsub.s32 4, %v441
      %v443 = vrot.slane %v337, %v442
      %v444 = vlaneseq
      %v445 = vshrl.u32 %v444, 7
      %v446 = vsub.s32 0, %v445
      %v447 = vrot.slane %v338, %v446
      %v448 = vlaneseq
      %v449 = vshrl.u32 %v448, 7
      %v450 = vsub.s32 4, %v449
      %v451 = vrot.slane %v338, %v450
      %v452 = vlaneseq
      %v453 = vshrl.u32 %v452, 7
      %v454 = vsub.s32 0, %v453
      %v455 = vrot.slane %v339, %v454
      %v456 = vlaneseq
      %v457 = vshrl.u32 %v456, 7
      %v458 = vsub.s32 4, %v457
      %v459 = vrot.slane %v339, %v458
      %v460 = vlaneseq
      %v461 = vshrl.u32 %v460, 7
      %v462 = vsub.s32 0, %v461
      %v463 = vrot.slane %v340, %v462
      %v464 = vlaneseq
      %v465 = vshrl.u32 %v464, 7
      %v466 = vsub.s32 4, %v465
      %v467 = vrot.slane %v340, %v466
      %v468 = vlaneseq
      %v469 = vshrl.u32 %v468, 7
      %v470 = vsub.s32 0, %v469
      %v471 = vrot.slane %v341, %v470
      %v472 = vlaneseq
      %v473 = vshrl.u32 %v472, 7
      %v474 = vsub.s32 4, %v473
      %v475 = vrot.slane %v341, %v474
      %v498 = vlaneseq
      %v499 = vshrl.u32 %v498, 7
      %v500 = vsub.s32 0, %v499
      %v501 = vrot.slane %v391, %v500
      %v502 = vlaneseq
      %v503 = vshrl.u32 %v502, 7
      %v504 = vsub.s32 0, %v503
      %v505 = vrot.slane %v395, %v504
      %v506 = vlaneseq
      %v507 = vshrl.u32 %v506, 7
      %v508 = vsub.s32 0, %v507
      %v509 = vrot.slane %v399, %v508
      %v510 = vlaneseq
      %v511 = vshrl.u32 %v510, 7
      %v512 = vsub.s32 0, %v511
      %v513 = vrot.slane %v403, %v512
      %v514 = vlaneseq
      %v515 = vshrl.u32 %v514, 7
      %v516 = vsub.s32 0, %v515
      %v517 = vrot.slane %v407, %v516
      %v518 = vlaneseq
      %v519 = vshrl.u32 %v518, 7
      %v520 = vsub.s32 0, %v519
      %v521 = vrot.slane %v411, %v520
      %v522 = vlaneseq
      %v523 = vshrl.u32 %v522, 7
      %v524 = vsub.s32 0, %v523
      %v525 = vrot.slane %v415, %v524
      %v526 = vlaneseq
      %v527 = vshrl.u32 %v526, 7
      %v528 = vsub.s32 0, %v527
      %v529 = vrot.slane %v419, %v528
      %v530 = vlaneseq
      %v531 = vshrl.u32 %v530, 7
      %v532 = vsub.s32 0, %v531
      %v533 = vrot.slane %v423, %v532
      %v534 = vlaneseq
      %v535 = vshrl.u32 %v534, 7
      %v536 = vsub.s32 0, %v535
      %v537 = vrot.slane %v427, %v536
      %v538 = vlaneseq
      %v539 = vshrl.u32 %v538, 7
      %v540 = vsub.s32 0, %v539
      %v541 = vrot.slane %v431, %v540
      %v542 = vlaneseq
      %v543 = vshrl.u32 %v542, 7
      %v544 = vsub.s32 0, %v543
      %v545 = vrot.slane %v435, %v544
      %v546 = vlaneseq
      %v547 = vshrl.u32 %v546, 7
      %v548 = vsub.s32 0, %v547
      %v549 = vrot.slane %v439, %v548
      %v550 = vlaneseq
      %v551 = vshrl.u32 %v550, 7
      %v552 = vsub.s32 0, %v551
      %v553 = vrot.slane %v443, %v552
      %v554 = vlaneseq
      %v555 = vshrl.u32 %v554, 7
      %v556 = vsub.s32 0, %v555
      %v557 = vrot.slane %v447, %v556
      %v558 = vlaneseq
      %v559 = vshrl.u32 %v558, 7
      %v560 = vsub.s32 0, %v559
      %v561 = vrot.slane %v451, %v560
      %v562 = vlaneseq
      %v563 = vshrl.u32 %v562, 7
      %v564 = vsub.s32 0, %v563
      %v565 = vrot.slane %v455, %v564
      %v566 = vlaneseq
      %v567 = vshrl.u32 %v566, 7
      %v568 = vsub.s32 0, %v567
      %v569 = vrot.slane %v459, %v568
      %v570 = vlaneseq
      %v571 = vshrl.u32 %v570, 7
      %v572 = vsub.s32 0, %v571
      %v573 = vrot.slane %v463, %v572
      %v574 = vlaneseq
      %v575 = vshrl.u32 %v574, 7
      %v576 = vsub.s32 0, %v575
      %v577 = vrot.slane %v467, %v576
      %v578 = vlaneseq
      %v579 = vshrl.u32 %v578, 7
      %v580 = vsub.s32 0, %v579
      %v581 = vrot.slane %v471, %v580
      %v582 = vlaneseq
      %v583 = vshrl.u32 %v582, 7
      %v584 = vsub.s32 0, %v583
      %v585 = vrot.slane %v475, %v584
      %v586 = vmul.f32 %v360, %v501
      %v587 = vmul.f32 %v360, %v505
      %v588 = vmul.f32 %v360, %v509
      %v589 = vmul.f32 %v360, %v513
      %v590 = vmul.f32 %v360, %v517
      %v591 = vmul.f32 %v360, %v521
      %v592 = vmul.f32 %v360, %v525
      %v593 = vmul.f32 %v360, %v529
      %v594 = vmul.f32 %v360, %v533
      %v595 = vmul.f32 %v360, %v537
      %v596 = vmul.f32 %v360, %v541
      %v597 = vmul.f32 %v360, %v545
      %v598 = vmul.f32 %v360, %v549
      %v599 = vmul.f32 %v360, %v553
      %v600 = vmul.f32 %v360, %v557
      %v601 = vmul.f32 %v360, %v561
      %v602 = vmul.f32 %v360, %v565
      %v603 = vmul.f32 %v360, %v569
      %v604 = vmul.f32 %v360, %v573
      %v605 = vmul.f32 %v360, %v577
      %v606 = vmul.f32 %v360, %v581
      %v607 = vmul.f32 %v360, %v585
      %v608 = vmul.f32 %v365, %v501
      %v609 = vmul.f32 %v365, %v505
      %v610 = vmul.f32 %v365, %v509
      %v611 = vmul.f32 %v365, %v513
      %v612 = vmul.f32 %v365, %v517
      %v613 = vmul.f32 %v365, %v521
      %v614 = vmul.f32 %v365, %v525
      %v615 = vmul.f32 %v365, %v529
      %v616 = vmul.f32 %v365, %v533
      %v617 = vmul.f32 %v365, %v537
      %v618 = vmul.f32 %v365, %v541
      %v619 = vmul.f32 %v365, %v545
      %v620 = vmul.f32 %v365, %v549
      %v621 = vmul.f32 %v365, %v553
      %v622 = vmul.f32 %v365, %v557
      %v623 = vmul.f32 %v365, %v561
      %v624 = vmul.f32 %v365, %v565
      %v625 = vmul.f32 %v365, %v569
      %v626 = vmul.f32 %v365, %v573
      %v627 = vmul.f32 %v365, %v577
      %v628 = vmul.f32 %v365, %v581
      %v629 = vmul.f32 %v365, %v585
      %v630 = vmul.f32 %v370, %v501
      %v631 = vmul.f32 %v370, %v505
      %v632 = vmul.f32 %v370, %v509
      %v633 = vmul.f32 %v370, %v513
      %v634 = vmul.f32 %v370, %v517
      %v635 = vmul.f32 %v370, %v521
      %v636 = vmul.f32 %v370, %v525
      %v637 = vmul.f32 %v370, %v529
      %v638 = vmul.f32 %v370, %v533
      %v639 = vmul.f32 %v370, %v537
      %v640 = vmul.f32 %v370, %v541
      %v641 = vmul.f32 %v370, %v545
      %v642 = vmul.f32 %v370, %v549
      %v643 = vmul.f32 %v370, %v553
      %v644 = vmul.f32 %v370, %v557
      %v645 = vmul.f32 %v370, %v561
      %v646 = vmul.f32 %v370, %v565
      %v647 = vmul.f32 %v370, %v569
      %v648 = vmul.f32 %v370, %v573
      %v649 = vmul.f32 %v370, %v577
      %v650 = vmul.f32 %v370, %v581
      %v651 = vmul.f32 %v370, %v585
      %v652 = vmul.f32 %v375, %v501
      %v653 = vmul.f32 %v375, %v505
      %v654 = vmul.f32 %v375, %v509
      %v655 = vmul.f32 %v375, %v513
      %v656 = vmul.f32 %v375, %v517
      %v657 = vmul.f32 %v375, %v521
      %v658 = vmul.f32 %v375, %v525
      %v659 = vmul.f32 %v375, %v529
      %v660 = vmul.f32 %v375, %v533
      %v661 = vmul.f32 %v375, %v537
      %v662 = vmul.f32 %v375, %v541
      %v663 = vmul.f32 %v375, %v545
      %v664 = vmul.f32 %v375, %v549
      %v665 = vmul.f32 %v375, %v553
      %v666 = vmul.f32 %v375, %v557
      %v667 = vmul.f32 %v375, %v561
      %v668 = vmul.f32 %v375, %v565
      %v669 = vmul.f32 %v375, %v569
      %v670 = vmul.f32 %v375, %v573
      %v671 = vmul.f32 %v375, %v577
      %v672 = vmul.f32 %v375, %v581
      %v673 = vmul.f32 %v375, %v585
      %v674 = vld [vmem:[%s2] sm:$0xff]
      %v675 = vld [vmem:[%s2 + $0x8] sm:$0xff]
      %v676 = vld [vmem:[%s2 + $0x10] sm:$0xff]
      %v677 = vld [vmem:[%s2 + $0x18] sm:$0xff]
      %679 = vset.pattern.permute.xlu0 0
      %680 = vperm.xlu0 %679, %v674
      %v681 = vpop.permute.xlu0 %680
      %684 = vset.pattern.permute.xlu0 0
      %685 = vperm.xlu0 %684, %v675
      %v686 = vpop.permute.xlu0 %685
      %689 = vset.pattern.permute.xlu0 0
      %690 = vperm.xlu0 %689, %v676
      %v691 = vpop.permute.xlu0 %690
      %694 = vset.pattern.permute.xlu0 0
      %695 = vperm.xlu0 %694, %v677
      %v696 = vpop.permute.xlu0 %695
      %v709 = vlaneseq
      %v710 = vshrl.u32 %v709, 7
      %v711 = vsub.s32 0, %v710
      %v712 = vrot.slane %v342, %v711
      %v713 = vlaneseq
      %v714 = vshrl.u32 %v713, 7
      %v715 = vsub.s32 4, %v714
      %v716 = vrot.slane %v342, %v715
      %v717 = vlaneseq
      %v718 = vshrl.u32 %v717, 7
      %v719 = vsub.s32 0, %v718
      %v720 = vrot.slane %v343, %v719
      %v721 = vlaneseq
      %v722 = vshrl.u32 %v721, 7
      %v723 = vsub.s32 4, %v722
      %v724 = vrot.slane %v343, %v723
      %v725 = vlaneseq
      %v726 = vshrl.u32 %v725, 7
      %v727 = vsub.s32 0, %v726
      %v728 = vrot.slane %v344, %v727
      %v729 = vlaneseq
      %v730 = vshrl.u32 %v729, 7
      %v731 = vsub.s32 4, %v730
      %v732 = vrot.slane %v344, %v731
      %v733 = vlaneseq
      %v734 = vshrl.u32 %v733, 7
      %v735 = vsub.s32 0, %v734
      %v736 = vrot.slane %v345, %v735
      %v737 = vlaneseq
      %v738 = vshrl.u32 %v737, 7
      %v739 = vsub.s32 4, %v738
      %v740 = vrot.slane %v345, %v739
      %v741 = vlaneseq
      %v742 = vshrl.u32 %v741, 7
      %v743 = vsub.s32 0, %v742
      %v744 = vrot.slane %v346, %v743
      %v745 = vlaneseq
      %v746 = vshrl.u32 %v745, 7
      %v747 = vsub.s32 4, %v746
      %v748 = vrot.slane %v346, %v747
      %v749 = vlaneseq
      %v750 = vshrl.u32 %v749, 7
      %v751 = vsub.s32 0, %v750
      %v752 = vrot.slane %v347, %v751
      %v753 = vlaneseq
      %v754 = vshrl.u32 %v753, 7
      %v755 = vsub.s32 4, %v754
      %v756 = vrot.slane %v347, %v755
      %v757 = vlaneseq
      %v758 = vshrl.u32 %v757, 7
      %v759 = vsub.s32 0, %v758
      %v760 = vrot.slane %v348, %v759
      %v761 = vlaneseq
      %v762 = vshrl.u32 %v761, 7
      %v763 = vsub.s32 4, %v762
      %v764 = vrot.slane %v348, %v763
      %v765 = vlaneseq
      %v766 = vshrl.u32 %v765, 7
      %v767 = vsub.s32 0, %v766
      %v768 = vrot.slane %v349, %v767
      %v769 = vlaneseq
      %v770 = vshrl.u32 %v769, 7
      %v771 = vsub.s32 4, %v770
      %v772 = vrot.slane %v349, %v771
      %v773 = vlaneseq
      %v774 = vshrl.u32 %v773, 7
      %v775 = vsub.s32 0, %v774
      %v776 = vrot.slane %v350, %v775
      %v777 = vlaneseq
      %v778 = vshrl.u32 %v777, 7
      %v779 = vsub.s32 4, %v778
      %v780 = vrot.slane %v350, %v779
      %v781 = vlaneseq
      %v782 = vshrl.u32 %v781, 7
      %v783 = vsub.s32 0, %v782
      %v784 = vrot.slane %v351, %v783
      %v785 = vlaneseq
      %v786 = vshrl.u32 %v785, 7
      %v787 = vsub.s32 4, %v786
      %v788 = vrot.slane %v351, %v787
      %v789 = vlaneseq
      %v790 = vshrl.u32 %v789, 7
      %v791 = vsub.s32 0, %v790
      %v792 = vrot.slane %v352, %v791
      %v793 = vlaneseq
      %v794 = vshrl.u32 %v793, 7
      %v795 = vsub.s32 4, %v794
      %v796 = vrot.slane %v352, %v795
      %v819 = vlaneseq
      %v820 = vshrl.u32 %v819, 7
      %v821 = vsub.s32 0, %v820
      %v822 = vrot.slane %v712, %v821
      %v823 = vlaneseq
      %v824 = vshrl.u32 %v823, 7
      %v825 = vsub.s32 0, %v824
      %v826 = vrot.slane %v716, %v825
      %v827 = vlaneseq
      %v828 = vshrl.u32 %v827, 7
      %v829 = vsub.s32 0, %v828
      %v830 = vrot.slane %v720, %v829
      %v831 = vlaneseq
      %v832 = vshrl.u32 %v831, 7
      %v833 = vsub.s32 0, %v832
      %v834 = vrot.slane %v724, %v833
      %v835 = vlaneseq
      %v836 = vshrl.u32 %v835, 7
      %v837 = vsub.s32 0, %v836
      %v838 = vrot.slane %v728, %v837
      %v839 = vlaneseq
      %v840 = vshrl.u32 %v839, 7
      %v841 = vsub.s32 0, %v840
      %v842 = vrot.slane %v732, %v841
      %v843 = vlaneseq
      %v844 = vshrl.u32 %v843, 7
      %v845 = vsub.s32 0, %v844
      %v846 = vrot.slane %v736, %v845
      %v847 = vlaneseq
      %v848 = vshrl.u32 %v847, 7
      %v849 = vsub.s32 0, %v848
      %v850 = vrot.slane %v740, %v849
      %v851 = vlaneseq
      %v852 = vshrl.u32 %v851, 7
      %v853 = vsub.s32 0, %v852
      %v854 = vrot.slane %v744, %v853
      %v855 = vlaneseq
      %v856 = vshrl.u32 %v855, 7
      %v857 = vsub.s32 0, %v856
      %v858 = vrot.slane %v748, %v857
      %v859 = vlaneseq
      %v860 = vshrl.u32 %v859, 7
      %v861 = vsub.s32 0, %v860
      %v862 = vrot.slane %v752, %v861
      %v863 = vlaneseq
      %v864 = vshrl.u32 %v863, 7
      %v865 = vsub.s32 0, %v864
      %v866 = vrot.slane %v756, %v865
      %v867 = vlaneseq
      %v868 = vshrl.u32 %v867, 7
      %v869 = vsub.s32 0, %v868
      %v870 = vrot.slane %v760, %v869
      %v871 = vlaneseq
      %v872 = vshrl.u32 %v871, 7
      %v873 = vsub.s32 0, %v872
      %v874 = vrot.slane %v764, %v873
      %v875 = vlaneseq
      %v876 = vshrl.u32 %v875, 7
      %v877 = vsub.s32 0, %v876
      %v878 = vrot.slane %v768, %v877
      %v879 = vlaneseq
      %v880 = vshrl.u32 %v879, 7
      %v881 = vsub.s32 0, %v880
      %v882 = vrot.slane %v772, %v881
      %v883 = vlaneseq
      %v884 = vshrl.u32 %v883, 7
      %v885 = vsub.s32 0, %v884
      %v886 = vrot.slane %v776, %v885
      %v887 = vlaneseq
      %v888 = vshrl.u32 %v887, 7
      %v889 = vsub.s32 0, %v888
      %v890 = vrot.slane %v780, %v889
      %v891 = vlaneseq
      %v892 = vshrl.u32 %v891, 7
      %v893 = vsub.s32 0, %v892
      %v894 = vrot.slane %v784, %v893
      %v895 = vlaneseq
      %v896 = vshrl.u32 %v895, 7
      %v897 = vsub.s32 0, %v896
      %v898 = vrot.slane %v788, %v897
      %v899 = vlaneseq
      %v900 = vshrl.u32 %v899, 7
      %v901 = vsub.s32 0, %v900
      %v902 = vrot.slane %v792, %v901
      %v903 = vlaneseq
      %v904 = vshrl.u32 %v903, 7
      %v905 = vsub.s32 0, %v904
      %v906 = vrot.slane %v796, %v905
      %v907 = vmul.f32 %v681, %v822
      %v908 = vmul.f32 %v681, %v826
      %v909 = vmul.f32 %v681, %v830
      %v910 = vmul.f32 %v681, %v834
      %v911 = vmul.f32 %v681, %v838
      %v912 = vmul.f32 %v681, %v842
      %v913 = vmul.f32 %v681, %v846
      %v914 = vmul.f32 %v681, %v850
      %v915 = vmul.f32 %v681, %v854
      %v916 = vmul.f32 %v681, %v858
      %v917 = vmul.f32 %v681, %v862
      %v918 = vmul.f32 %v681, %v866
      %v919 = vmul.f32 %v681, %v870
      %v920 = vmul.f32 %v681, %v874
      %v921 = vmul.f32 %v681, %v878
      %v922 = vmul.f32 %v681, %v882
      %v923 = vmul.f32 %v681, %v886
      %v924 = vmul.f32 %v681, %v890
      %v925 = vmul.f32 %v681, %v894
      %v926 = vmul.f32 %v681, %v898
      %v927 = vmul.f32 %v681, %v902
      %v928 = vmul.f32 %v681, %v906
      %v929 = vmul.f32 %v686, %v822
      %v930 = vmul.f32 %v686, %v826
      %v931 = vmul.f32 %v686, %v830
      %v932 = vmul.f32 %v686, %v834
      %v933 = vmul.f32 %v686, %v838
      %v934 = vmul.f32 %v686, %v842
      %v935 = vmul.f32 %v686, %v846
      %v936 = vmul.f32 %v686, %v850
      %v937 = vmul.f32 %v686, %v854
      %v938 = vmul.f32 %v686, %v858
      %v939 = vmul.f32 %v686, %v862
      %v940 = vmul.f32 %v686, %v866
      %v941 = vmul.f32 %v686, %v870
      %v942 = vmul.f32 %v686, %v874
      %v943 = vmul.f32 %v686, %v878
      %v944 = vmul.f32 %v686, %v882
      %v945 = vmul.f32 %v686, %v886
      %v946 = vmul.f32 %v686, %v890
      %v947 = vmul.f32 %v686, %v894
      %v948 = vmul.f32 %v686, %v898
      %v949 = vmul.f32 %v686, %v902
      %v950 = vmul.f32 %v686, %v906
      %v951 = vmul.f32 %v691, %v822
      %v952 = vmul.f32 %v691, %v826
      %v953 = vmul.f32 %v691, %v830
      %v954 = vmul.f32 %v691, %v834
      %v955 = vmul.f32 %v691, %v838
      %v956 = vmul.f32 %v691, %v842
      %v957 = vmul.f32 %v691, %v846
      %v958 = vmul.f32 %v691, %v850
      %v959 = vmul.f32 %v691, %v854
      %v960 = vmul.f32 %v691, %v858
      %v961 = vmul.f32 %v691, %v862
      %v962 = vmul.f32 %v691, %v866
      %v963 = vmul.f32 %v691, %v870
      %v964 = vmul.f32 %v691, %v874
      %v965 = vmul.f32 %v691, %v878
      %v966 = vmul.f32 %v691, %v882
      %v967 = vmul.f32 %v691, %v886
      %v968 = vmul.f32 %v691, %v890
      %v969 = vmul.f32 %v691, %v894
      %v970 = vmul.f32 %v691, %v898
      %v971 = vmul.f32 %v691, %v902
      %v972 = vmul.f32 %v691, %v906
      %v973 = vmul.f32 %v696, %v822
      %v974 = vmul.f32 %v696, %v826
      %v975 = vmul.f32 %v696, %v830
      %v976 = vmul.f32 %v696, %v834
      %v977 = vmul.f32 %v696, %v838
      %v978 = vmul.f32 %v696, %v842
      %v979 = vmul.f32 %v696, %v846
      %v980 = vmul.f32 %v696, %v850
      %v981 = vmul.f32 %v696, %v854
      %v982 = vmul.f32 %v696, %v858
      %v983 = vmul.f32 %v696, %v862
      %v984 = vmul.f32 %v696, %v866
      %v985 = vmul.f32 %v696, %v870
      %v986 = vmul.f32 %v696, %v874
      %v987 = vmul.f32 %v696, %v878
      %v988 = vmul.f32 %v696, %v882
      %v989 = vmul.f32 %v696, %v886
      %v990 = vmul.f32 %v696, %v890
      %v991 = vmul.f32 %v696, %v894
      %v992 = vmul.f32 %v696, %v898
      %v993 = vmul.f32 %v696, %v902
      %v994 = vmul.f32 %v696, %v906
      %v995 = vadd.f32 %v586, %v907
      %v996 = vadd.f32 %v587, %v908
      %v997 = vadd.f32 %v588, %v909
      %v998 = vadd.f32 %v589, %v910
      %v999 = vadd.f32 %v590, %v911
      %v1000 = vadd.f32 %v591, %v912
      %v1001 = vadd.f32 %v592, %v913
      %v1002 = vadd.f32 %v593, %v914
      %v1003 = vadd.f32 %v594, %v915
      %v1004 = vadd.f32 %v595, %v916
      %v1005 = vadd.f32 %v596, %v917
      %v1006 = vadd.f32 %v597, %v918
      %v1007 = vadd.f32 %v598, %v919
      %v1008 = vadd.f32 %v599, %v920
      %v1009 = vadd.f32 %v600, %v921
      %v1010 = vadd.f32 %v601, %v922
      %v1011 = vadd.f32 %v602, %v923
      %v1012 = vadd.f32 %v603, %v924
      %v1013 = vadd.f32 %v604, %v925
      %v1014 = vadd.f32 %v605, %v926
      %v1015 = vadd.f32 %v606, %v927
      %v1016 = vadd.f32 %v607, %v928
      %v1017 = vadd.f32 %v608, %v929
      %v1018 = vadd.f32 %v609, %v930
      %v1019 = vadd.f32 %v610, %v931
      %v1020 = vadd.f32 %v611, %v932
      %v1021 = vadd.f32 %v612, %v933
      %v1022 = vadd.f32 %v613, %v934
      %v1023 = vadd.f32 %v614, %v935
      %v1024 = vadd.f32 %v615, %v936
      %v1025 = vadd.f32 %v616, %v937
      %v1026 = vadd.f32 %v617, %v938
      %v1027 = vadd.f32 %v618, %v939
      %v1028 = vadd.f32 %v619, %v940
      %v1029 = vadd.f32 %v620, %v941
      %v1030 = vadd.f32 %v621, %v942
      %v1031 = vadd.f32 %v622, %v943
      %v1032 = vadd.f32 %v623, %v944
      %v1033 = vadd.f32 %v624, %v945
      %v1034 = vadd.f32 %v625, %v946
      %v1035 = vadd.f32 %v626, %v947
      %v1036 = vadd.f32 %v627, %v948
      %v1037 = vadd.f32 %v628, %v949
      %v1038 = vadd.f32 %v629, %v950
      %v1039 = vadd.f32 %v630, %v951
      %v1040 = vadd.f32 %v631, %v952
      %v1041 = vadd.f32 %v632, %v953
      %v1042 = vadd.f32 %v633, %v954
      %v1043 = vadd.f32 %v634, %v955
      %v1044 = vadd.f32 %v635, %v956
      %v1045 = vadd.f32 %v636, %v957
      %v1046 = vadd.f32 %v637, %v958
      %v1047 = vadd.f32 %v638, %v959
      %v1048 = vadd.f32 %v639, %v960
      %v1049 = vadd.f32 %v640, %v961
      %v1050 = vadd.f32 %v641, %v962
      %v1051 = vadd.f32 %v642, %v963
      %v1052 = vadd.f32 %v643, %v964
      %v1053 = vadd.f32 %v644, %v965
      %v1054 = vadd.f32 %v645, %v966
      %v1055 = vadd.f32 %v646, %v967
      %v1056 = vadd.f32 %v647, %v968
      %v1057 = vadd.f32 %v648, %v969
      %v1058 = vadd.f32 %v649, %v970
      %v1059 = vadd.f32 %v650, %v971
      %v1060 = vadd.f32 %v651, %v972
      %v1061 = vadd.f32 %v652, %v973
      %v1062 = vadd.f32 %v653, %v974
      %v1063 = vadd.f32 %v654, %v975
      %v1064 = vadd.f32 %v655, %v976
      %v1065 = vadd.f32 %v656, %v977
      %v1066 = vadd.f32 %v657, %v978
      %v1067 = vadd.f32 %v658, %v979
      %v1068 = vadd.f32 %v659, %v980
      %v1069 = vadd.f32 %v660, %v981
      %v1070 = vadd.f32 %v661, %v982
      %v1071 = vadd.f32 %v662, %v983
      %v1072 = vadd.f32 %v663, %v984
      %v1073 = vadd.f32 %v664, %v985
      %v1074 = vadd.f32 %v665, %v986
      %v1075 = vadd.f32 %v666, %v987
      %v1076 = vadd.f32 %v667, %v988
      %v1077 = vadd.f32 %v668, %v989
      %v1078 = vadd.f32 %v669, %v990
      %v1079 = vadd.f32 %v670, %v991
      %v1080 = vadd.f32 %v671, %v992
      %v1081 = vadd.f32 %v672, %v993
      %v1082 = vadd.f32 %v673, %v994
      %s1083 = scalar_lea.vmem %s1, 32
      %v1084 = vld [vmem:[%s1083] sm:$0xff]
      %v1085 = vld [vmem:[%s1083 + $0x8] sm:$0xff]
      %v1086 = vld [vmem:[%s1083 + $0x10] sm:$0xff]
      %v1087 = vld [vmem:[%s1083 + $0x18] sm:$0xff]
      %1089 = vset.pattern.permute.xlu0 0
      %1090 = vperm.xlu0 %1089, %v1084
      %v1091 = vpop.permute.xlu0 %1090
      %1094 = vset.pattern.permute.xlu0 0
      %1095 = vperm.xlu0 %1094, %v1085
      %v1096 = vpop.permute.xlu0 %1095
      %1099 = vset.pattern.permute.xlu0 0
      %1100 = vperm.xlu0 %1099, %v1086
      %v1101 = vpop.permute.xlu0 %1100
      %1104 = vset.pattern.permute.xlu0 0
      %1105 = vperm.xlu0 %1104, %v1087
      %v1106 = vpop.permute.xlu0 %1105
      %v1108 = vlaneseq
      %v1109 = vshrl.u32 %v1108, 7
      %v1110 = vsub.s32 1, %v1109
      %v1111 = vrot.slane %v331, %v1110
      %v1112 = vlaneseq
      %v1113 = vshrl.u32 %v1112, 7
      %v1114 = vsub.s32 5, %v1113
      %v1115 = vrot.slane %v331, %v1114
      %v1116 = vlaneseq
      %v1117 = vshrl.u32 %v1116, 7
      %v1118 = vsub.s32 1, %v1117
      %v1119 = vrot.slane %v332, %v1118
      %v1120 = vlaneseq
      %v1121 = vshrl.u32 %v1120, 7
      %v1122 = vsub.s32 5, %v1121
      %v1123 = vrot.slane %v332, %v1122
      %v1124 = vlaneseq
      %v1125 = vshrl.u32 %v1124, 7
      %v1126 = vsub.s32 1, %v1125
      %v1127 = vrot.slane %v333, %v1126
      %v1128 = vlaneseq
      %v1129 = vshrl.u32 %v1128, 7
      %v1130 = vsub.s32 5, %v1129
      %v1131 = vrot.slane %v333, %v1130
      %v1132 = vlaneseq
      %v1133 = vshrl.u32 %v1132, 7
      %v1134 = vsub.s32 1, %v1133
      %v1135 = vrot.slane %v334, %v1134
      %v1136 = vlaneseq
      %v1137 = vshrl.u32 %v1136, 7
      %v1138 = vsub.s32 5, %v1137
      %v1139 = vrot.slane %v334, %v1138
      %v1140 = vlaneseq
      %v1141 = vshrl.u32 %v1140, 7
      %v1142 = vsub.s32 1, %v1141
      %v1143 = vrot.slane %v335, %v1142
      %v1144 = vlaneseq
      %v1145 = vshrl.u32 %v1144, 7
      %v1146 = vsub.s32 5, %v1145
      %v1147 = vrot.slane %v335, %v1146
      %v1148 = vlaneseq
      %v1149 = vshrl.u32 %v1148, 7
      %v1150 = vsub.s32 1, %v1149
      %v1151 = vrot.slane %v336, %v1150
      %v1152 = vlaneseq
      %v1153 = vshrl.u32 %v1152, 7
      %v1154 = vsub.s32 5, %v1153
      %v1155 = vrot.slane %v336, %v1154
      %v1156 = vlaneseq
      %v1157 = vshrl.u32 %v1156, 7
      %v1158 = vsub.s32 1, %v1157
      %v1159 = vrot.slane %v337, %v1158
      %v1160 = vlaneseq
      %v1161 = vshrl.u32 %v1160, 7
      %v1162 = vsub.s32 5, %v1161
      %v1163 = vrot.slane %v337, %v1162
      %v1164 = vlaneseq
      %v1165 = vshrl.u32 %v1164, 7
      %v1166 = vsub.s32 1, %v1165
      %v1167 = vrot.slane %v338, %v1166
      %v1168 = vlaneseq
      %v1169 = vshrl.u32 %v1168, 7
      %v1170 = vsub.s32 5, %v1169
      %v1171 = vrot.slane %v338, %v1170
      %v1172 = vlaneseq
      %v1173 = vshrl.u32 %v1172, 7
      %v1174 = vsub.s32 1, %v1173
      %v1175 = vrot.slane %v339, %v1174
      %v1176 = vlaneseq
      %v1177 = vshrl.u32 %v1176, 7
      %v1178 = vsub.s32 5, %v1177
      %v1179 = vrot.slane %v339, %v1178
      %v1180 = vlaneseq
      %v1181 = vshrl.u32 %v1180, 7
      %v1182 = vsub.s32 1, %v1181
      %v1183 = vrot.slane %v340, %v1182
      %v1184 = vlaneseq
      %v1185 = vshrl.u32 %v1184, 7
      %v1186 = vsub.s32 5, %v1185
      %v1187 = vrot.slane %v340, %v1186
      %v1188 = vlaneseq
      %v1189 = vshrl.u32 %v1188, 7
      %v1190 = vsub.s32 1, %v1189
      %v1191 = vrot.slane %v341, %v1190
      %v1192 = vlaneseq
      %v1193 = vshrl.u32 %v1192, 7
      %v1194 = vsub.s32 5, %v1193
      %v1195 = vrot.slane %v341, %v1194
      %v1218 = vlaneseq
      %v1219 = vshrl.u32 %v1218, 7
      %v1220 = vsub.s32 1, %v1219
      %v1221 = vrot.slane %v1111, %v1220
      %v1222 = vlaneseq
      %v1223 = vshrl.u32 %v1222, 7
      %v1224 = vsub.s32 1, %v1223
      %v1225 = vrot.slane %v1115, %v1224
      %v1226 = vlaneseq
      %v1227 = vshrl.u32 %v1226, 7
      %v1228 = vsub.s32 1, %v1227
      %v1229 = vrot.slane %v1119, %v1228
      %v1230 = vlaneseq
      %v1231 = vshrl.u32 %v1230, 7
      %v1232 = vsub.s32 1, %v1231
      %v1233 = vrot.slane %v1123, %v1232
      %v1234 = vlaneseq
      %v1235 = vshrl.u32 %v1234, 7
      %v1236 = vsub.s32 1, %v1235
      %v1237 = vrot.slane %v1127, %v1236
      %v1238 = vlaneseq
      %v1239 = vshrl.u32 %v1238, 7
      %v1240 = vsub.s32 1, %v1239
      %v1241 = vrot.slane %v1131, %v1240
      %v1242 = vlaneseq
      %v1243 = vshrl.u32 %v1242, 7
      %v1244 = vsub.s32 1, %v1243
      %v1245 = vrot.slane %v1135, %v1244
      %v1246 = vlaneseq
      %v1247 = vshrl.u32 %v1246, 7
      %v1248 = vsub.s32 1, %v1247
      %v1249 = vrot.slane %v1139, %v1248
      %v1250 = vlaneseq
      %v1251 = vshrl.u32 %v1250, 7
      %v1252 = vsub.s32 1, %v1251
      %v1253 = vrot.slane %v1143, %v1252
      %v1254 = vlaneseq
      %v1255 = vshrl.u32 %v1254, 7
      %v1256 = vsub.s32 1, %v1255
      %v1257 = vrot.slane %v1147, %v1256
      %v1258 = vlaneseq
      %v1259 = vshrl.u32 %v1258, 7
      %v1260 = vsub.s32 1, %v1259
      %v1261 = vrot.slane %v1151, %v1260
      %v1262 = vlaneseq
      %v1263 = vshrl.u32 %v1262, 7
      %v1264 = vsub.s32 1, %v1263
      %v1265 = vrot.slane %v1155, %v1264
      %v1266 = vlaneseq
      %v1267 = vshrl.u32 %v1266, 7
      %v1268 = vsub.s32 1, %v1267
      %v1269 = vrot.slane %v1159, %v1268
      %v1270 = vlaneseq
      %v1271 = vshrl.u32 %v1270, 7
      %v1272 = vsub.s32 1, %v1271
      %v1273 = vrot.slane %v1163, %v1272
      %v1274 = vlaneseq
      %v1275 = vshrl.u32 %v1274, 7
      %v1276 = vsub.s32 1, %v1275
      %v1277 = vrot.slane %v1167, %v1276
      %v1278 = vlaneseq
      %v1279 = vshrl.u32 %v1278, 7
      %v1280 = vsub.s32 1, %v1279
      %v1281 = vrot.slane %v1171, %v1280
      %v1282 = vlaneseq
      %v1283 = vshrl.u32 %v1282, 7
      %v1284 = vsub.s32 1, %v1283
      %v1285 = vrot.slane %v1175, %v1284
      %v1286 = vlaneseq
      %v1287 = vshrl.u32 %v1286, 7
      %v1288 = vsub.s32 1, %v1287
      %v1289 = vrot.slane %v1179, %v1288
      %v1290 = vlaneseq
      %v1291 = vshrl.u32 %v1290, 7
      %v1292 = vsub.s32 1, %v1291
      %v1293 = vrot.slane %v1183, %v1292
      %v1294 = vlaneseq
      %v1295 = vshrl.u32 %v1294, 7
      %v1296 = vsub.s32 1, %v1295
      %v1297 = vrot.slane %v1187, %v1296
      %v1298 = vlaneseq
      %v1299 = vshrl.u32 %v1298, 7
      %v1300 = vsub.s32 1, %v1299
      %v1301 = vrot.slane %v1191, %v1300
      %v1302 = vlaneseq
      %v1303 = vshrl.u32 %v1302, 7
      %v1304 = vsub.s32 1, %v1303
      %v1305 = vrot.slane %v1195, %v1304
      %v1306 = vmul.f32 %v1091, %v1221
      %v1307 = vmul.f32 %v1091, %v1225
      %v1308 = vmul.f32 %v1091, %v1229
      %v1309 = vmul.f32 %v1091, %v1233
      %v1310 = vmul.f32 %v1091, %v1237
      %v1311 = vmul.f32 %v1091, %v1241
      %v1312 = vmul.f32 %v1091, %v1245
      %v1313 = vmul.f32 %v1091, %v1249
      %v1314 = vmul.f32 %v1091, %v1253
      %v1315 = vmul.f32 %v1091, %v1257
      %v1316 = vmul.f32 %v1091, %v1261
      %v1317 = vmul.f32 %v1091, %v1265
      %v1318 = vmul.f32 %v1091, %v1269
      %v1319 = vmul.f32 %v1091, %v1273
      %v1320 = vmul.f32 %v1091, %v1277
      %v1321 = vmul.f32 %v1091, %v1281
      %v1322 = vmul.f32 %v1091, %v1285
      %v1323 = vmul.f32 %v1091, %v1289
      %v1324 = vmul.f32 %v1091, %v1293
      %v1325 = vmul.f32 %v1091, %v1297
      %v1326 = vmul.f32 %v1091, %v1301
      %v1327 = vmul.f32 %v1091, %v1305
      %v1328 = vmul.f32 %v1096, %v1221
      %v1329 = vmul.f32 %v1096, %v1225
      %v1330 = vmul.f32 %v1096, %v1229
      %v1331 = vmul.f32 %v1096, %v1233
      %v1332 = vmul.f32 %v1096, %v1237
      %v1333 = vmul.f32 %v1096, %v1241
      %v1334 = vmul.f32 %v1096, %v1245
      %v1335 = vmul.f32 %v1096, %v1249
      %v1336 = vmul.f32 %v1096, %v1253
      %v1337 = vmul.f32 %v1096, %v1257
      %v1338 = vmul.f32 %v1096, %v1261
      %v1339 = vmul.f32 %v1096, %v1265
      %v1340 = vmul.f32 %v1096, %v1269
      %v1341 = vmul.f32 %v1096, %v1273
      %v1342 = vmul.f32 %v1096, %v1277
      %v1343 = vmul.f32 %v1096, %v1281
      %v1344 = vmul.f32 %v1096, %v1285
      %v1345 = vmul.f32 %v1096, %v1289
      %v1346 = vmul.f32 %v1096, %v1293
      %v1347 = vmul.f32 %v1096, %v1297
      %v1348 = vmul.f32 %v1096, %v1301
      %v1349 = vmul.f32 %v1096, %v1305
      %v1350 = vmul.f32 %v1101, %v1221
      %v1351 = vmul.f32 %v1101, %v1225
      %v1352 = vmul.f32 %v1101, %v1229
      %v1353 = vmul.f32 %v1101, %v1233
      %v1354 = vmul.f32 %v1101, %v1237
      %v1355 = vmul.f32 %v1101, %v1241
      %v1356 = vmul.f32 %v1101, %v1245
      %v1357 = vmul.f32 %v1101, %v1249
      %v1358 = vmul.f32 %v1101, %v1253
      %v1359 = vmul.f32 %v1101, %v1257
      %v1360 = vmul.f32 %v1101, %v1261
      %v1361 = vmul.f32 %v1101, %v1265
      %v1362 = vmul.f32 %v1101, %v1269
      %v1363 = vmul.f32 %v1101, %v1273
      %v1364 = vmul.f32 %v1101, %v1277
      %v1365 = vmul.f32 %v1101, %v1281
      %v1366 = vmul.f32 %v1101, %v1285
      %v1367 = vmul.f32 %v1101, %v1289
      %v1368 = vmul.f32 %v1101, %v1293
      %v1369 = vmul.f32 %v1101, %v1297
      %v1370 = vmul.f32 %v1101, %v1301
      %v1371 = vmul.f32 %v1101, %v1305
      %v1372 = vmul.f32 %v1106, %v1221
      %v1373 = vmul.f32 %v1106, %v1225
      %v1374 = vmul.f32 %v1106, %v1229
      %v1375 = vmul.f32 %v1106, %v1233
      %v1376 = vmul.f32 %v1106, %v1237
      %v1377 = vmul.f32 %v1106, %v1241
      %v1378 = vmul.f32 %v1106, %v1245
      %v1379 = vmul.f32 %v1106, %v1249
      %v1380 = vmul.f32 %v1106, %v1253
      %v1381 = vmul.f32 %v1106, %v1257
      %v1382 = vmul.f32 %v1106, %v1261
      %v1383 = vmul.f32 %v1106, %v1265
      %v1384 = vmul.f32 %v1106, %v1269
      %v1385 = vmul.f32 %v1106, %v1273
      %v1386 = vmul.f32 %v1106, %v1277
      %v1387 = vmul.f32 %v1106, %v1281
      %v1388 = vmul.f32 %v1106, %v1285
      %v1389 = vmul.f32 %v1106, %v1289
      %v1390 = vmul.f32 %v1106, %v1293
      %v1391 = vmul.f32 %v1106, %v1297
      %v1392 = vmul.f32 %v1106, %v1301
      %v1393 = vmul.f32 %v1106, %v1305
      %v1394 = vadd.f32 %v995, %v1306
      %v1395 = vadd.f32 %v996, %v1307
      %v1396 = vadd.f32 %v997, %v1308
      %v1397 = vadd.f32 %v998, %v1309
      %v1398 = vadd.f32 %v999, %v1310
      %v1399 = vadd.f32 %v1000, %v1311
      %v1400 = vadd.f32 %v1001, %v1312
      %v1401 = vadd.f32 %v1002, %v1313
      %v1402 = vadd.f32 %v1003, %v1314
      %v1403 = vadd.f32 %v1004, %v1315
      %v1404 = vadd.f32 %v1005, %v1316
      %v1405 = vadd.f32 %v1006, %v1317
      %v1406 = vadd.f32 %v1007, %v1318
      %v1407 = vadd.f32 %v1008, %v1319
      %v1408 = vadd.f32 %v1009, %v1320
      %v1409 = vadd.f32 %v1010, %v1321
      %v1410 = vadd.f32 %v1011, %v1322
      %v1411 = vadd.f32 %v1012, %v1323
      %v1412 = vadd.f32 %v1013, %v1324
      %v1413 = vadd.f32 %v1014, %v1325
      %v1414 = vadd.f32 %v1015, %v1326
      %v1415 = vadd.f32 %v1016, %v1327
      %v1416 = vadd.f32 %v1017, %v1328
      %v1417 = vadd.f32 %v1018, %v1329
      %v1418 = vadd.f32 %v1019, %v1330
      %v1419 = vadd.f32 %v1020, %v1331
      %v1420 = vadd.f32 %v1021, %v1332
      %v1421 = vadd.f32 %v1022, %v1333
      %v1422 = vadd.f32 %v1023, %v1334
      %v1423 = vadd.f32 %v1024, %v1335
      %v1424 = vadd.f32 %v1025, %v1336
      %v1425 = vadd.f32 %v1026, %v1337
      %v1426 = vadd.f32 %v1027, %v1338
      %v1427 = vadd.f32 %v1028, %v1339
      %v1428 = vadd.f32 %v1029, %v1340
      %v1429 = vadd.f32 %v1030, %v1341
      %v1430 = vadd.f32 %v1031, %v1342
      %v1431 = vadd.f32 %v1032, %v1343
      %v1432 = vadd.f32 %v1033, %v1344
      %v1433 = vadd.f32 %v1034, %v1345
      %v1434 = vadd.f32 %v1035, %v1346
      %v1435 = vadd.f32 %v1036, %v1347
      %v1436 = vadd.f32 %v1037, %v1348
      %v1437 = vadd.f32 %v1038, %v1349
      %v1438 = vadd.f32 %v1039, %v1350
      %v1439 = vadd.f32 %v1040, %v1351
      %v1440 = vadd.f32 %v1041, %v1352
      %v1441 = vadd.f32 %v1042, %v1353
      %v1442 = vadd.f32 %v1043, %v1354
      %v1443 = vadd.f32 %v1044, %v1355
      %v1444 = vadd.f32 %v1045, %v1356
      %v1445 = vadd.f32 %v1046, %v1357
      %v1446 = vadd.f32 %v1047, %v1358
      %v1447 = vadd.f32 %v1048, %v1359
      %v1448 = vadd.f32 %v1049, %v1360
      %v1449 = vadd.f32 %v1050, %v1361
      %v1450 = vadd.f32 %v1051, %v1362
      %v1451 = vadd.f32 %v1052, %v1363
      %v1452 = vadd.f32 %v1053, %v1364
      %v1453 = vadd.f32 %v1054, %v1365
      %v1454 = vadd.f32 %v1055, %v1366
      %v1455 = vadd.f32 %v1056, %v1367
      %v1456 = vadd.f32 %v1057, %v1368
      %v1457 = vadd.f32 %v1058, %v1369
      %v1458 = vadd.f32 %v1059, %v1370
      %v1459 = vadd.f32 %v1060, %v1371
      %v1460 = vadd.f32 %v1061, %v1372
      %v1461 = vadd.f32 %v1062, %v1373
      %v1462 = vadd.f32 %v1063, %v1374
      %v1463 = vadd.f32 %v1064, %v1375
      %v1464 = vadd.f32 %v1065, %v1376
      %v1465 = vadd.f32 %v1066, %v1377
      %v1466 = vadd.f32 %v1067, %v1378
      %v1467 = vadd.f32 %v1068, %v1379
      %v1468 = vadd.f32 %v1069, %v1380
      %v1469 = vadd.f32 %v1070, %v1381
      %v1470 = vadd.f32 %v1071, %v1382
      %v1471 = vadd.f32 %v1072, %v1383
      %v1472 = vadd.f32 %v1073, %v1384
      %v1473 = vadd.f32 %v1074, %v1385
      %v1474 = vadd.f32 %v1075, %v1386
      %v1475 = vadd.f32 %v1076, %v1387
      %v1476 = vadd.f32 %v1077, %v1388
      %v1477 = vadd.f32 %v1078, %v1389
      %v1478 = vadd.f32 %v1079, %v1390
      %v1479 = vadd.f32 %v1080, %v1391
      %v1480 = vadd.f32 %v1081, %v1392
      %v1481 = vadd.f32 %v1082, %v1393
      %s1482 = scalar_lea.vmem %s2, 32
      %v1483 = vld [vmem:[%s1482] sm:$0xff]
      %v1484 = vld [vmem:[%s1482 + $0x8] sm:$0xff]
      %v1485 = vld [vmem:[%s1482 + $0x10] sm:$0xff]
      %v1486 = vld [vmem:[%s1482 + $0x18] sm:$0xff]
      %1488 = vset.pattern.permute.xlu0 0
      %1489 = vperm.xlu0 %1488, %v1483
      %v1490 = vpop.permute.xlu0 %1489
      %1493 = vset.pattern.permute.xlu0 0
      %1494 = vperm.xlu0 %1493, %v1484
      %v1495 = vpop.permute.xlu0 %1494
      %1498 = vset.pattern.permute.xlu0 0
      %1499 = vperm.xlu0 %1498, %v1485
      %v1500 = vpop.permute.xlu0 %1499
      %1503 = vset.pattern.permute.xlu0 0
      %1504 = vperm.xlu0 %1503, %v1486
      %v1505 = vpop.permute.xlu0 %1504
      %v1507 = vlaneseq
      %v1508 = vshrl.u32 %v1507, 7
      %v1509 = vsub.s32 1, %v1508
      %v1510 = vrot.slane %v342, %v1509
      %v1511 = vlaneseq
      %v1512 = vshrl.u32 %v1511, 7
      %v1513 = vsub.s32 5, %v1512
      %v1514 = vrot.slane %v342, %v1513
      %v1515 = vlaneseq
      %v1516 = vshrl.u32 %v1515, 7
      %v1517 = vsub.s32 1, %v1516
      %v1518 = vrot.slane %v343, %v1517
      %v1519 = vlaneseq
      %v1520 = vshrl.u32 %v1519, 7
      %v1521 = vsub.s32 5, %v1520
      %v1522 = vrot.slane %v343, %v1521
      %v1523 = vlaneseq
      %v1524 = vshrl.u32 %v1523, 7
      %v1525 = vsub.s32 1, %v1524
      %v1526 = vrot.slane %v344, %v1525
      %v1527 = vlaneseq
      %v1528 = vshrl.u32 %v1527, 7
      %v1529 = vsub.s32 5, %v1528
      %v1530 = vrot.slane %v344, %v1529
      %v1531 = vlaneseq
      %v1532 = vshrl.u32 %v1531, 7
      %v1533 = vsub.s32 1, %v1532
      %v1534 = vrot.slane %v345, %v1533
      %v1535 = vlaneseq
      %v1536 = vshrl.u32 %v1535, 7
      %v1537 = vsub.s32 5, %v1536
      %v1538 = vrot.slane %v345, %v1537
      %v1539 = vlaneseq
      %v1540 = vshrl.u32 %v1539, 7
      %v1541 = vsub.s32 1, %v1540
      %v1542 = vrot.slane %v346, %v1541
      %v1543 = vlaneseq
      %v1544 = vshrl.u32 %v1543, 7
      %v1545 = vsub.s32 5, %v1544
      %v1546 = vrot.slane %v346, %v1545
      %v1547 = vlaneseq
      %v1548 = vshrl.u32 %v1547, 7
      %v1549 = vsub.s32 1, %v1548
      %v1550 = vrot.slane %v347, %v1549
      %v1551 = vlaneseq
      %v1552 = vshrl.u32 %v1551, 7
      %v1553 = vsub.s32 5, %v1552
      %v1554 = vrot.slane %v347, %v1553
      %v1555 = vlaneseq
      %v1556 = vshrl.u32 %v1555, 7
      %v1557 = vsub.s32 1, %v1556
      %v1558 = vrot.slane %v348, %v1557
      %v1559 = vlaneseq
      %v1560 = vshrl.u32 %v1559, 7
      %v1561 = vsub.s32 5, %v1560
      %v1562 = vrot.slane %v348, %v1561
      %v1563 = vlaneseq
      %v1564 = vshrl.u32 %v1563, 7
      %v1565 = vsub.s32 1, %v1564
      %v1566 = vrot.slane %v349, %v1565
      %v1567 = vlaneseq
      %v1568 = vshrl.u32 %v1567, 7
      %v1569 = vsub.s32 5, %v1568
      %v1570 = vrot.slane %v349, %v1569
      %v1571 = vlaneseq
      %v1572 = vshrl.u32 %v1571, 7
      %v1573 = vsub.s32 1, %v1572
      %v1574 = vrot.slane %v350, %v1573
      %v1575 = vlaneseq
      %v1576 = vshrl.u32 %v1575, 7
      %v1577 = vsub.s32 5, %v1576
      %v1578 = vrot.slane %v350, %v1577
      %v1579 = vlaneseq
      %v1580 = vshrl.u32 %v1579, 7
      %v1581 = vsub.s32 1, %v1580
      %v1582 = vrot.slane %v351, %v1581
      %v1583 = vlaneseq
      %v1584 = vshrl.u32 %v1583, 7
      %v1585 = vsub.s32 5, %v1584
      %v1586 = vrot.slane %v351, %v1585
      %v1587 = vlaneseq
      %v1588 = vshrl.u32 %v1587, 7
      %v1589 = vsub.s32 1, %v1588
      %v1590 = vrot.slane %v352, %v1589
      %v1591 = vlaneseq
      %v1592 = vshrl.u32 %v1591, 7
      %v1593 = vsub.s32 5, %v1592
      %v1594 = vrot.slane %v352, %v1593
      %v1617 = vlaneseq
      %v1618 = vshrl.u32 %v1617, 7
      %v1619 = vsub.s32 1, %v1618
      %v1620 = vrot.slane %v1510, %v1619
      %v1621 = vlaneseq
      %v1622 = vshrl.u32 %v1621, 7
      %v1623 = vsub.s32 1, %v1622
      %v1624 = vrot.slane %v1514, %v1623
      %v1625 = vlaneseq
      %v1626 = vshrl.u32 %v1625, 7
      %v1627 = vsub.s32 1, %v1626
      %v1628 = vrot.slane %v1518, %v1627
      %v1629 = vlaneseq
      %v1630 = vshrl.u32 %v1629, 7
      %v1631 = vsub.s32 1, %v1630
      %v1632 = vrot.slane %v1522, %v1631
      %v1633 = vlaneseq
      %v1634 = vshrl.u32 %v1633, 7
      %v1635 = vsub.s32 1, %v1634
      %v1636 = vrot.slane %v1526, %v1635
      %v1637 = vlaneseq
      %v1638 = vshrl.u32 %v1637, 7
      %v1639 = vsub.s32 1, %v1638
      %v1640 = vrot.slane %v1530, %v1639
      %v1641 = vlaneseq
      %v1642 = vshrl.u32 %v1641, 7
      %v1643 = vsub.s32 1, %v1642
      %v1644 = vrot.slane %v1534, %v1643
      %v1645 = vlaneseq
      %v1646 = vshrl.u32 %v1645, 7
      %v1647 = vsub.s32 1, %v1646
      %v1648 = vrot.slane %v1538, %v1647
      %v1649 = vlaneseq
      %v1650 = vshrl.u32 %v1649, 7
      %v1651 = vsub.s32 1, %v1650
      %v1652 = vrot.slane %v1542, %v1651
      %v1653 = vlaneseq
      %v1654 = vshrl.u32 %v1653, 7
      %v1655 = vsub.s32 1, %v1654
      %v1656 = vrot.slane %v1546, %v1655
      %v1657 = vlaneseq
      %v1658 = vshrl.u32 %v1657, 7
      %v1659 = vsub.s32 1, %v1658
      %v1660 = vrot.slane %v1550, %v1659
      %v1661 = vlaneseq
      %v1662 = vshrl.u32 %v1661, 7
      %v1663 = vsub.s32 1, %v1662
      %v1664 = vrot.slane %v1554, %v1663
      %v1665 = vlaneseq
      %v1666 = vshrl.u32 %v1665, 7
      %v1667 = vsub.s32 1, %v1666
      %v1668 = vrot.slane %v1558, %v1667
      %v1669 = vlaneseq
      %v1670 = vshrl.u32 %v1669, 7
      %v1671 = vsub.s32 1, %v1670
      %v1672 = vrot.slane %v1562, %v1671
      %v1673 = vlaneseq
      %v1674 = vshrl.u32 %v1673, 7
      %v1675 = vsub.s32 1, %v1674
      %v1676 = vrot.slane %v1566, %v1675
      %v1677 = vlaneseq
      %v1678 = vshrl.u32 %v1677, 7
      %v1679 = vsub.s32 1, %v1678
      %v1680 = vrot.slane %v1570, %v1679
      %v1681 = vlaneseq
      %v1682 = vshrl.u32 %v1681, 7
      %v1683 = vsub.s32 1, %v1682
      %v1684 = vrot.slane %v1574, %v1683
      %v1685 = vlaneseq
      %v1686 = vshrl.u32 %v1685, 7
      %v1687 = vsub.s32 1, %v1686
      %v1688 = vrot.slane %v1578, %v1687
      %v1689 = vlaneseq
      %v1690 = vshrl.u32 %v1689, 7
      %v1691 = vsub.s32 1, %v1690
      %v1692 = vrot.slane %v1582, %v1691
      %v1693 = vlaneseq
      %v1694 = vshrl.u32 %v1693, 7
      %v1695 = vsub.s32 1, %v1694
      %v1696 = vrot.slane %v1586, %v1695
      %v1697 = vlaneseq
      %v1698 = vshrl.u32 %v1697, 7
      %v1699 = vsub.s32 1, %v1698
      %v1700 = vrot.slane %v1590, %v1699
      %v1701 = vlaneseq
      %v1702 = vshrl.u32 %v1701, 7
      %v1703 = vsub.s32 1, %v1702
      %v1704 = vrot.slane %v1594, %v1703
      %v1705 = vmul.f32 %v1490, %v1620
      %v1706 = vmul.f32 %v1490, %v1624
      %v1707 = vmul.f32 %v1490, %v1628
      %v1708 = vmul.f32 %v1490, %v1632
      %v1709 = vmul.f32 %v1490, %v1636
      %v1710 = vmul.f32 %v1490, %v1640
      %v1711 = vmul.f32 %v1490, %v1644
      %v1712 = vmul.f32 %v1490, %v1648
      %v1713 = vmul.f32 %v1490, %v1652
      %v1714 = vmul.f32 %v1490, %v1656
      %v1715 = vmul.f32 %v1490, %v1660
      %v1716 = vmul.f32 %v1490, %v1664
      %v1717 = vmul.f32 %v1490, %v1668
      %v1718 = vmul.f32 %v1490, %v1672
      %v1719 = vmul.f32 %v1490, %v1676
      %v1720 = vmul.f32 %v1490, %v1680
      %v1721 = vmul.f32 %v1490, %v1684
      %v1722 = vmul.f32 %v1490, %v1688
      %v1723 = vmul.f32 %v1490, %v1692
      %v1724 = vmul.f32 %v1490, %v1696
      %v1725 = vmul.f32 %v1490, %v1700
      %v1726 = vmul.f32 %v1490, %v1704
      %v1727 = vmul.f32 %v1495, %v1620
      %v1728 = vmul.f32 %v1495, %v1624
      %v1729 = vmul.f32 %v1495, %v1628
      %v1730 = vmul.f32 %v1495, %v1632
      %v1731 = vmul.f32 %v1495, %v1636
      %v1732 = vmul.f32 %v1495, %v1640
      %v1733 = vmul.f32 %v1495, %v1644
      %v1734 = vmul.f32 %v1495, %v1648
      %v1735 = vmul.f32 %v1495, %v1652
      %v1736 = vmul.f32 %v1495, %v1656
      %v1737 = vmul.f32 %v1495, %v1660
      %v1738 = vmul.f32 %v1495, %v1664
      %v1739 = vmul.f32 %v1495, %v1668
      %v1740 = vmul.f32 %v1495, %v1672
      %v1741 = vmul.f32 %v1495, %v1676
      %v1742 = vmul.f32 %v1495, %v1680
      %v1743 = vmul.f32 %v1495, %v1684
      %v1744 = vmul.f32 %v1495, %v1688
      %v1745 = vmul.f32 %v1495, %v1692
      %v1746 = vmul.f32 %v1495, %v1696
      %v1747 = vmul.f32 %v1495, %v1700
      %v1748 = vmul.f32 %v1495, %v1704
      %v1749 = vmul.f32 %v1500, %v1620
      %v1750 = vmul.f32 %v1500, %v1624
      %v1751 = vmul.f32 %v1500, %v1628
      %v1752 = vmul.f32 %v1500, %v1632
      %v1753 = vmul.f32 %v1500, %v1636
      %v1754 = vmul.f32 %v1500, %v1640
      %v1755 = vmul.f32 %v1500, %v1644
      %v1756 = vmul.f32 %v1500, %v1648
      %v1757 = vmul.f32 %v1500, %v1652
      %v1758 = vmul.f32 %v1500, %v1656
      %v1759 = vmul.f32 %v1500, %v1660
      %v1760 = vmul.f32 %v1500, %v1664
      %v1761 = vmul.f32 %v1500, %v1668
      %v1762 = vmul.f32 %v1500, %v1672
      %v1763 = vmul.f32 %v1500, %v1676
      %v1764 = vmul.f32 %v1500, %v1680
      %v1765 = vmul.f32 %v1500, %v1684
      %v1766 = vmul.f32 %v1500, %v1688
      %v1767 = vmul.f32 %v1500, %v1692
      %v1768 = vmul.f32 %v1500, %v1696
      %v1769 = vmul.f32 %v1500, %v1700
      %v1770 = vmul.f32 %v1500, %v1704
      %v1771 = vmul.f32 %v1505, %v1620
      %v1772 = vmul.f32 %v1505, %v1624
      %v1773 = vmul.f32 %v1505, %v1628
      %v1774 = vmul.f32 %v1505, %v1632
      %v1775 = vmul.f32 %v1505, %v1636
      %v1776 = vmul.f32 %v1505, %v1640
      %v1777 = vmul.f32 %v1505, %v1644
      %v1778 = vmul.f32 %v1505, %v1648
      %v1779 = vmul.f32 %v1505, %v1652
      %v1780 = vmul.f32 %v1505, %v1656
      %v1781 = vmul.f32 %v1505, %v1660
      %v1782 = vmul.f32 %v1505, %v1664
      %v1783 = vmul.f32 %v1505, %v1668
      %v1784 = vmul.f32 %v1505, %v1672
      %v1785 = vmul.f32 %v1505, %v1676
      %v1786 = vmul.f32 %v1505, %v1680
      %v1787 = vmul.f32 %v1505, %v1684
      %v1788 = vmul.f32 %v1505, %v1688
      %v1789 = vmul.f32 %v1505, %v1692
      %v1790 = vmul.f32 %v1505, %v1696
      %v1791 = vmul.f32 %v1505, %v1700
      %v1792 = vmul.f32 %v1505, %v1704
      %v1793 = vadd.f32 %v1394, %v1705
      %v1794 = vadd.f32 %v1395, %v1706
      %v1795 = vadd.f32 %v1396, %v1707
      %v1796 = vadd.f32 %v1397, %v1708
      %v1797 = vadd.f32 %v1398, %v1709
      %v1798 = vadd.f32 %v1399, %v1710
      %v1799 = vadd.f32 %v1400, %v1711
      %v1800 = vadd.f32 %v1401, %v1712
      %v1801 = vadd.f32 %v1402, %v1713
      %v1802 = vadd.f32 %v1403, %v1714
      %v1803 = vadd.f32 %v1404, %v1715
      %v1804 = vadd.f32 %v1405, %v1716
      %v1805 = vadd.f32 %v1406, %v1717
      %v1806 = vadd.f32 %v1407, %v1718
      %v1807 = vadd.f32 %v1408, %v1719
      %v1808 = vadd.f32 %v1409, %v1720
      %v1809 = vadd.f32 %v1410, %v1721
      %v1810 = vadd.f32 %v1411, %v1722
      %v1811 = vadd.f32 %v1412, %v1723
      %v1812 = vadd.f32 %v1413, %v1724
      %v1813 = vadd.f32 %v1414, %v1725
      %v1814 = vadd.f32 %v1415, %v1726
      %v1815 = vadd.f32 %v1416, %v1727
      %v1816 = vadd.f32 %v1417, %v1728
      %v1817 = vadd.f32 %v1418, %v1729
      %v1818 = vadd.f32 %v1419, %v1730
      %v1819 = vadd.f32 %v1420, %v1731
      %v1820 = vadd.f32 %v1421, %v1732
      %v1821 = vadd.f32 %v1422, %v1733
      %v1822 = vadd.f32 %v1423, %v1734
      %v1823 = vadd.f32 %v1424, %v1735
      %v1824 = vadd.f32 %v1425, %v1736
      %v1825 = vadd.f32 %v1426, %v1737
      %v1826 = vadd.f32 %v1427, %v1738
      %v1827 = vadd.f32 %v1428, %v1739
      %v1828 = vadd.f32 %v1429, %v1740
      %v1829 = vadd.f32 %v1430, %v1741
      %v1830 = vadd.f32 %v1431, %v1742
      %v1831 = vadd.f32 %v1432, %v1743
      %v1832 = vadd.f32 %v1433, %v1744
      %v1833 = vadd.f32 %v1434, %v1745
      %v1834 = vadd.f32 %v1435, %v1746
      %v1835 = vadd.f32 %v1436, %v1747
      %v1836 = vadd.f32 %v1437, %v1748
      %v1837 = vadd.f32 %v1438, %v1749
      %v1838 = vadd.f32 %v1439, %v1750
      %v1839 = vadd.f32 %v1440, %v1751
      %v1840 = vadd.f32 %v1441, %v1752
      %v1841 = vadd.f32 %v1442, %v1753
      %v1842 = vadd.f32 %v1443, %v1754
      %v1843 = vadd.f32 %v1444, %v1755
      %v1844 = vadd.f32 %v1445, %v1756
      %v1845 = vadd.f32 %v1446, %v1757
      %v1846 = vadd.f32 %v1447, %v1758
      %v1847 = vadd.f32 %v1448, %v1759
      %v1848 = vadd.f32 %v1449, %v1760
      %v1849 = vadd.f32 %v1450, %v1761
      %v1850 = vadd.f32 %v1451, %v1762
      %v1851 = vadd.f32 %v1452, %v1763
      %v1852 = vadd.f32 %v1453, %v1764
      %v1853 = vadd.f32 %v1454, %v1765
      %v1854 = vadd.f32 %v1455, %v1766
      %v1855 = vadd.f32 %v1456, %v1767
      %v1856 = vadd.f32 %v1457, %v1768
      %v1857 = vadd.f32 %v1458, %v1769
      %v1858 = vadd.f32 %v1459, %v1770
      %v1859 = vadd.f32 %v1460, %v1771
      %v1860 = vadd.f32 %v1461, %v1772
      %v1861 = vadd.f32 %v1462, %v1773
      %v1862 = vadd.f32 %v1463, %v1774
      %v1863 = vadd.f32 %v1464, %v1775
      %v1864 = vadd.f32 %v1465, %v1776
      %v1865 = vadd.f32 %v1466, %v1777
      %v1866 = vadd.f32 %v1467, %v1778
      %v1867 = vadd.f32 %v1468, %v1779
      %v1868 = vadd.f32 %v1469, %v1780
      %v1869 = vadd.f32 %v1470, %v1781
      %v1870 = vadd.f32 %v1471, %v1782
      %v1871 = vadd.f32 %v1472, %v1783
      %v1872 = vadd.f32 %v1473, %v1784
      %v1873 = vadd.f32 %v1474, %v1785
      %v1874 = vadd.f32 %v1475, %v1786
      %v1875 = vadd.f32 %v1476, %v1787
      %v1876 = vadd.f32 %v1477, %v1788
      %v1877 = vadd.f32 %v1478, %v1789
      %v1878 = vadd.f32 %v1479, %v1790
      %v1879 = vadd.f32 %v1480, %v1791
      %v1880 = vadd.f32 %v1481, %v1792
      %s1881 = scalar_lea.vmem %s1, 64
      %v1882 = vld [vmem:[%s1881] sm:$0xff]
      %v1883 = vld [vmem:[%s1881 + $0x8] sm:$0xff]
      %v1884 = vld [vmem:[%s1881 + $0x10] sm:$0xff]
      %v1885 = vld [vmem:[%s1881 + $0x18] sm:$0xff]
      %1887 = vset.pattern.permute.xlu0 0
      %1888 = vperm.xlu0 %1887, %v1882
      %v1889 = vpop.permute.xlu0 %1888
      %1892 = vset.pattern.permute.xlu0 0
      %1893 = vperm.xlu0 %1892, %v1883
      %v1894 = vpop.permute.xlu0 %1893
      %1897 = vset.pattern.permute.xlu0 0
      %1898 = vperm.xlu0 %1897, %v1884
      %v1899 = vpop.permute.xlu0 %1898
      %1902 = vset.pattern.permute.xlu0 0
      %1903 = vperm.xlu0 %1902, %v1885
      %v1904 = vpop.permute.xlu0 %1903
      %v1906 = vlaneseq
      %v1907 = vshrl.u32 %v1906, 7
      %v1908 = vsub.s32 2, %v1907
      %v1909 = vrot.slane %v331, %v1908
      %v1910 = vlaneseq
      %v1911 = vshrl.u32 %v1910, 7
      %v1912 = vsub.s32 6, %v1911
      %v1913 = vrot.slane %v331, %v1912
      %v1914 = vlaneseq
      %v1915 = vshrl.u32 %v1914, 7
      %v1916 = vsub.s32 2, %v1915
      %v1917 = vrot.slane %v332, %v1916
      %v1918 = vlaneseq
      %v1919 = vshrl.u32 %v1918, 7
      %v1920 = vsub.s32 6, %v1919
      %v1921 = vrot.slane %v332, %v1920
      %v1922 = vlaneseq
      %v1923 = vshrl.u32 %v1922, 7
      %v1924 = vsub.s32 2, %v1923
      %v1925 = vrot.slane %v333, %v1924
      %v1926 = vlaneseq
      %v1927 = vshrl.u32 %v1926, 7
      %v1928 = vsub.s32 6, %v1927
      %v1929 = vrot.slane %v333, %v1928
      %v1930 = vlaneseq
      %v1931 = vshrl.u32 %v1930, 7
      %v1932 = vsub.s32 2, %v1931
      %v1933 = vrot.slane %v334, %v1932
      %v1934 = vlaneseq
      %v1935 = vshrl.u32 %v1934, 7
      %v1936 = vsub.s32 6, %v1935
      %v1937 = vrot.slane %v334, %v1936
      %v1938 = vlaneseq
      %v1939 = vshrl.u32 %v1938, 7
      %v1940 = vsub.s32 2, %v1939
      %v1941 = vrot.slane %v335, %v1940
      %v1942 = vlaneseq
      %v1943 = vshrl.u32 %v1942, 7
      %v1944 = vsub.s32 6, %v1943
      %v1945 = vrot.slane %v335, %v1944
      %v1946 = vlaneseq
      %v1947 = vshrl.u32 %v1946, 7
      %v1948 = vsub.s32 2, %v1947
      %v1949 = vrot.slane %v336, %v1948
      %v1950 = vlaneseq
      %v1951 = vshrl.u32 %v1950, 7
      %v1952 = vsub.s32 6, %v1951
      %v1953 = vrot.slane %v336, %v1952
      %v1954 = vlaneseq
      %v1955 = vshrl.u32 %v1954, 7
      %v1956 = vsub.s32 2, %v1955
      %v1957 = vrot.slane %v337, %v1956
      %v1958 = vlaneseq
      %v1959 = vshrl.u32 %v1958, 7
      %v1960 = vsub.s32 6, %v1959
      %v1961 = vrot.slane %v337, %v1960
      %v1962 = vlaneseq
      %v1963 = vshrl.u32 %v1962, 7
      %v1964 = vsub.s32 2, %v1963
      %v1965 = vrot.slane %v338, %v1964
      %v1966 = vlaneseq
      %v1967 = vshrl.u32 %v1966, 7
      %v1968 = vsub.s32 6, %v1967
      %v1969 = vrot.slane %v338, %v1968
      %v1970 = vlaneseq
      %v1971 = vshrl.u32 %v1970, 7
      %v1972 = vsub.s32 2, %v1971
      %v1973 = vrot.slane %v339, %v1972
      %v1974 = vlaneseq
      %v1975 = vshrl.u32 %v1974, 7
      %v1976 = vsub.s32 6, %v1975
      %v1977 = vrot.slane %v339, %v1976
      %v1978 = vlaneseq
      %v1979 = vshrl.u32 %v1978, 7
      %v1980 = vsub.s32 2, %v1979
      %v1981 = vrot.slane %v340, %v1980
      %v1982 = vlaneseq
      %v1983 = vshrl.u32 %v1982, 7
      %v1984 = vsub.s32 6, %v1983
      %v1985 = vrot.slane %v340, %v1984
      %v1986 = vlaneseq
      %v1987 = vshrl.u32 %v1986, 7
      %v1988 = vsub.s32 2, %v1987
      %v1989 = vrot.slane %v341, %v1988
      %v1990 = vlaneseq
      %v1991 = vshrl.u32 %v1990, 7
      %v1992 = vsub.s32 6, %v1991
      %v1993 = vrot.slane %v341, %v1992
      %v2016 = vlaneseq
      %v2017 = vshrl.u32 %v2016, 7
      %v2018 = vsub.s32 2, %v2017
      %v2019 = vrot.slane %v1909, %v2018
      %v2020 = vlaneseq
      %v2021 = vshrl.u32 %v2020, 7
      %v2022 = vsub.s32 2, %v2021
      %v2023 = vrot.slane %v1913, %v2022
      %v2024 = vlaneseq
      %v2025 = vshrl.u32 %v2024, 7
      %v2026 = vsub.s32 2, %v2025
      %v2027 = vrot.slane %v1917, %v2026
      %v2028 = vlaneseq
      %v2029 = vshrl.u32 %v2028, 7
      %v2030 = vsub.s32 2, %v2029
      %v2031 = vrot.slane %v1921, %v2030
      %v2032 = vlaneseq
      %v2033 = vshrl.u32 %v2032, 7
      %v2034 = vsub.s32 2, %v2033
      %v2035 = vrot.slane %v1925, %v2034
      %v2036 = vlaneseq
      %v2037 = vshrl.u32 %v2036, 7
      %v2038 = vsub.s32 2, %v2037
      %v2039 = vrot.slane %v1929, %v2038
      %v2040 = vlaneseq
      %v2041 = vshrl.u32 %v2040, 7
      %v2042 = vsub.s32 2, %v2041
      %v2043 = vrot.slane %v1933, %v2042
      %v2044 = vlaneseq
      %v2045 = vshrl.u32 %v2044, 7
      %v2046 = vsub.s32 2, %v2045
      %v2047 = vrot.slane %v1937, %v2046
      %v2048 = vlaneseq
      %v2049 = vshrl.u32 %v2048, 7
      %v2050 = vsub.s32 2, %v2049
      %v2051 = vrot.slane %v1941, %v2050
      %v2052 = vlaneseq
      %v2053 = vshrl.u32 %v2052, 7
      %v2054 = vsub.s32 2, %v2053
      %v2055 = vrot.slane %v1945, %v2054
      %v2056 = vlaneseq
      %v2057 = vshrl.u32 %v2056, 7
      %v2058 = vsub.s32 2, %v2057
      %v2059 = vrot.slane %v1949, %v2058
      %v2060 = vlaneseq
      %v2061 = vshrl.u32 %v2060, 7
      %v2062 = vsub.s32 2, %v2061
      %v2063 = vrot.slane %v1953, %v2062
      %v2064 = vlaneseq
      %v2065 = vshrl.u32 %v2064, 7
      %v2066 = vsub.s32 2, %v2065
      %v2067 = vrot.slane %v1957, %v2066
      %v2068 = vlaneseq
      %v2069 = vshrl.u32 %v2068, 7
      %v2070 = vsub.s32 2, %v2069
      %v2071 = vrot.slane %v1961, %v2070
      %v2072 = vlaneseq
      %v2073 = vshrl.u32 %v2072, 7
      %v2074 = vsub.s32 2, %v2073
      %v2075 = vrot.slane %v1965, %v2074
      %v2076 = vlaneseq
      %v2077 = vshrl.u32 %v2076, 7
      %v2078 = vsub.s32 2, %v2077
      %v2079 = vrot.slane %v1969, %v2078
      %v2080 = vlaneseq
      %v2081 = vshrl.u32 %v2080, 7
      %v2082 = vsub.s32 2, %v2081
      %v2083 = vrot.slane %v1973, %v2082
      %v2084 = vlaneseq
      %v2085 = vshrl.u32 %v2084, 7
      %v2086 = vsub.s32 2, %v2085
      %v2087 = vrot.slane %v1977, %v2086
      %v2088 = vlaneseq
      %v2089 = vshrl.u32 %v2088, 7
      %v2090 = vsub.s32 2, %v2089
      %v2091 = vrot.slane %v1981, %v2090
      %v2092 = vlaneseq
      %v2093 = vshrl.u32 %v2092, 7
      %v2094 = vsub.s32 2, %v2093
      %v2095 = vrot.slane %v1985, %v2094
      %v2096 = vlaneseq
      %v2097 = vshrl.u32 %v2096, 7
      %v2098 = vsub.s32 2, %v2097
      %v2099 = vrot.slane %v1989, %v2098
      %v2100 = vlaneseq
      %v2101 = vshrl.u32 %v2100, 7
      %v2102 = vsub.s32 2, %v2101
      %v2103 = vrot.slane %v1993, %v2102
      %v2104 = vmul.f32 %v1889, %v2019
      %v2105 = vmul.f32 %v1889, %v2023
      %v2106 = vmul.f32 %v1889, %v2027
      %v2107 = vmul.f32 %v1889, %v2031
      %v2108 = vmul.f32 %v1889, %v2035
      %v2109 = vmul.f32 %v1889, %v2039
      %v2110 = vmul.f32 %v1889, %v2043
      %v2111 = vmul.f32 %v1889, %v2047
      %v2112 = vmul.f32 %v1889, %v2051
      %v2113 = vmul.f32 %v1889, %v2055
      %v2114 = vmul.f32 %v1889, %v2059
      %v2115 = vmul.f32 %v1889, %v2063
      %v2116 = vmul.f32 %v1889, %v2067
      %v2117 = vmul.f32 %v1889, %v2071
      %v2118 = vmul.f32 %v1889, %v2075
      %v2119 = vmul.f32 %v1889, %v2079
      %v2120 = vmul.f32 %v1889, %v2083
      %v2121 = vmul.f32 %v1889, %v2087
      %v2122 = vmul.f32 %v1889, %v2091
      %v2123 = vmul.f32 %v1889, %v2095
      %v2124 = vmul.f32 %v1889, %v2099
      %v2125 = vmul.f32 %v1889, %v2103
      %v2126 = vmul.f32 %v1894, %v2019
      %v2127 = vmul.f32 %v1894, %v2023
      %v2128 = vmul.f32 %v1894, %v2027
      %v2129 = vmul.f32 %v1894, %v2031
      %v2130 = vmul.f32 %v1894, %v2035
      %v2131 = vmul.f32 %v1894, %v2039
      %v2132 = vmul.f32 %v1894, %v2043
      %v2133 = vmul.f32 %v1894, %v2047
      %v2134 = vmul.f32 %v1894, %v2051
      %v2135 = vmul.f32 %v1894, %v2055
      %v2136 = vmul.f32 %v1894, %v2059
      %v2137 = vmul.f32 %v1894, %v2063
      %v2138 = vmul.f32 %v1894, %v2067
      %v2139 = vmul.f32 %v1894, %v2071
      %v2140 = vmul.f32 %v1894, %v2075
      %v2141 = vmul.f32 %v1894, %v2079
      %v2142 = vmul.f32 %v1894, %v2083
      %v2143 = vmul.f32 %v1894, %v2087
      %v2144 = vmul.f32 %v1894, %v2091
      %v2145 = vmul.f32 %v1894, %v2095
      %v2146 = vmul.f32 %v1894, %v2099
      %v2147 = vmul.f32 %v1894, %v2103
      %v2148 = vmul.f32 %v1899, %v2019
      %v2149 = vmul.f32 %v1899, %v2023
      %v2150 = vmul.f32 %v1899, %v2027
      %v2151 = vmul.f32 %v1899, %v2031
      %v2152 = vmul.f32 %v1899, %v2035
      %v2153 = vmul.f32 %v1899, %v2039
      %v2154 = vmul.f32 %v1899, %v2043
      %v2155 = vmul.f32 %v1899, %v2047
      %v2156 = vmul.f32 %v1899, %v2051
      %v2157 = vmul.f32 %v1899, %v2055
      %v2158 = vmul.f32 %v1899, %v2059
      %v2159 = vmul.f32 %v1899, %v2063
      %v2160 = vmul.f32 %v1899, %v2067
      %v2161 = vmul.f32 %v1899, %v2071
      %v2162 = vmul.f32 %v1899, %v2075
      %v2163 = vmul.f32 %v1899, %v2079
      %v2164 = vmul.f32 %v1899, %v2083
      %v2165 = vmul.f32 %v1899, %v2087
      %v2166 = vmul.f32 %v1899, %v2091
      %v2167 = vmul.f32 %v1899, %v2095
      %v2168 = vmul.f32 %v1899, %v2099
      %v2169 = vmul.f32 %v1899, %v2103
      %v2170 = vmul.f32 %v1904, %v2019
      %v2171 = vmul.f32 %v1904, %v2023
      %v2172 = vmul.f32 %v1904, %v2027
      %v2173 = vmul.f32 %v1904, %v2031
      %v2174 = vmul.f32 %v1904, %v2035
      %v2175 = vmul.f32 %v1904, %v2039
      %v2176 = vmul.f32 %v1904, %v2043
      %v2177 = vmul.f32 %v1904, %v2047
      %v2178 = vmul.f32 %v1904, %v2051
      %v2179 = vmul.f32 %v1904, %v2055
      %v2180 = vmul.f32 %v1904, %v2059
      %v2181 = vmul.f32 %v1904, %v2063
      %v2182 = vmul.f32 %v1904, %v2067
      %v2183 = vmul.f32 %v1904, %v2071
      %v2184 = vmul.f32 %v1904, %v2075
      %v2185 = vmul.f32 %v1904, %v2079
      %v2186 = vmul.f32 %v1904, %v2083
      %v2187 = vmul.f32 %v1904, %v2087
      %v2188 = vmul.f32 %v1904, %v2091
      %v2189 = vmul.f32 %v1904, %v2095
      %v2190 = vmul.f32 %v1904, %v2099
      %v2191 = vmul.f32 %v1904, %v2103
      %v2192 = vadd.f32 %v1793, %v2104
      %v2193 = vadd.f32 %v1794, %v2105
      %v2194 = vadd.f32 %v1795, %v2106
      %v2195 = vadd.f32 %v1796, %v2107
      %v2196 = vadd.f32 %v1797, %v2108
      %v2197 = vadd.f32 %v1798, %v2109
      %v2198 = vadd.f32 %v1799, %v2110
      %v2199 = vadd.f32 %v1800, %v2111
      %v2200 = vadd.f32 %v1801, %v2112
      %v2201 = vadd.f32 %v1802, %v2113
      %v2202 = vadd.f32 %v1803, %v2114
      %v2203 = vadd.f32 %v1804, %v2115
      %v2204 = vadd.f32 %v1805, %v2116
      %v2205 = vadd.f32 %v1806, %v2117
      %v2206 = vadd.f32 %v1807, %v2118
      %v2207 = vadd.f32 %v1808, %v2119
      %v2208 = vadd.f32 %v1809, %v2120
      %v2209 = vadd.f32 %v1810, %v2121
      %v2210 = vadd.f32 %v1811, %v2122
      %v2211 = vadd.f32 %v1812, %v2123
      %v2212 = vadd.f32 %v1813, %v2124
      %v2213 = vadd.f32 %v1814, %v2125
      %v2214 = vadd.f32 %v1815, %v2126
      %v2215 = vadd.f32 %v1816, %v2127
      %v2216 = vadd.f32 %v1817, %v2128
      %v2217 = vadd.f32 %v1818, %v2129
      %v2218 = vadd.f32 %v1819, %v2130
      %v2219 = vadd.f32 %v1820, %v2131
      %v2220 = vadd.f32 %v1821, %v2132
      %v2221 = vadd.f32 %v1822, %v2133
      %v2222 = vadd.f32 %v1823, %v2134
      %v2223 = vadd.f32 %v1824, %v2135
      %v2224 = vadd.f32 %v1825, %v2136
      %v2225 = vadd.f32 %v1826, %v2137
      %v2226 = vadd.f32 %v1827, %v2138
      %v2227 = vadd.f32 %v1828, %v2139
      %v2228 = vadd.f32 %v1829, %v2140
      %v2229 = vadd.f32 %v1830, %v2141
      %v2230 = vadd.f32 %v1831, %v2142
      %v2231 = vadd.f32 %v1832, %v2143
      %v2232 = vadd.f32 %v1833, %v2144
      %v2233 = vadd.f32 %v1834, %v2145
      %v2234 = vadd.f32 %v1835, %v2146
      %v2235 = vadd.f32 %v1836, %v2147
      %v2236 = vadd.f32 %v1837, %v2148
      %v2237 = vadd.f32 %v1838, %v2149
      %v2238 = vadd.f32 %v1839, %v2150
      %v2239 = vadd.f32 %v1840, %v2151
      %v2240 = vadd.f32 %v1841, %v2152
      %v2241 = vadd.f32 %v1842, %v2153
      %v2242 = vadd.f32 %v1843, %v2154
      %v2243 = vadd.f32 %v1844, %v2155
      %v2244 = vadd.f32 %v1845, %v2156
      %v2245 = vadd.f32 %v1846, %v2157
      %v2246 = vadd.f32 %v1847, %v2158
      %v2247 = vadd.f32 %v1848, %v2159
      %v2248 = vadd.f32 %v1849, %v2160
      %v2249 = vadd.f32 %v1850, %v2161
      %v2250 = vadd.f32 %v1851, %v2162
      %v2251 = vadd.f32 %v1852, %v2163
      %v2252 = vadd.f32 %v1853, %v2164
      %v2253 = vadd.f32 %v1854, %v2165
      %v2254 = vadd.f32 %v1855, %v2166
      %v2255 = vadd.f32 %v1856, %v2167
      %v2256 = vadd.f32 %v1857, %v2168
      %v2257 = vadd.f32 %v1858, %v2169
      %v2258 = vadd.f32 %v1859, %v2170
      %v2259 = vadd.f32 %v1860, %v2171
      %v2260 = vadd.f32 %v1861, %v2172
      %v2261 = vadd.f32 %v1862, %v2173
      %v2262 = vadd.f32 %v1863, %v2174
      %v2263 = vadd.f32 %v1864, %v2175
      %v2264 = vadd.f32 %v1865, %v2176
      %v2265 = vadd.f32 %v1866, %v2177
      %v2266 = vadd.f32 %v1867, %v2178
      %v2267 = vadd.f32 %v1868, %v2179
      %v2268 = vadd.f32 %v1869, %v2180
      %v2269 = vadd.f32 %v1870, %v2181
      %v2270 = vadd.f32 %v1871, %v2182
      %v2271 = vadd.f32 %v1872, %v2183
      %v2272 = vadd.f32 %v1873, %v2184
      %v2273 = vadd.f32 %v1874, %v2185
      %v2274 = vadd.f32 %v1875, %v2186
      %v2275 = vadd.f32 %v1876, %v2187
      %v2276 = vadd.f32 %v1877, %v2188
      %v2277 = vadd.f32 %v1878, %v2189
      %v2278 = vadd.f32 %v1879, %v2190
      %v2279 = vadd.f32 %v1880, %v2191
      %s2280 = scalar_lea.vmem %s2, 64
      %v2281 = vld [vmem:[%s2280] sm:$0xff]
      %v2282 = vld [vmem:[%s2280 + $0x8] sm:$0xff]
      %v2283 = vld [vmem:[%s2280 + $0x10] sm:$0xff]
      %v2284 = vld [vmem:[%s2280 + $0x18] sm:$0xff]
      %2286 = vset.pattern.permute.xlu0 0
      %2287 = vperm.xlu0 %2286, %v2281
      %v2288 = vpop.permute.xlu0 %2287
      %2291 = vset.pattern.permute.xlu0 0
      %2292 = vperm.xlu0 %2291, %v2282
      %v2293 = vpop.permute.xlu0 %2292
      %2296 = vset.pattern.permute.xlu0 0
      %2297 = vperm.xlu0 %2296, %v2283
      %v2298 = vpop.permute.xlu0 %2297
      %2301 = vset.pattern.permute.xlu0 0
      %2302 = vperm.xlu0 %2301, %v2284
      %v2303 = vpop.permute.xlu0 %2302
      %v2305 = vlaneseq
      %v2306 = vshrl.u32 %v2305, 7
      %v2307 = vsub.s32 2, %v2306
      %v2308 = vrot.slane %v342, %v2307
      %v2309 = vlaneseq
      %v2310 = vshrl.u32 %v2309, 7
      %v2311 = vsub.s32 6, %v2310
      %v2312 = vrot.slane %v342, %v2311
      %v2313 = vlaneseq
      %v2314 = vshrl.u32 %v2313, 7
      %v2315 = vsub.s32 2, %v2314
      %v2316 = vrot.slane %v343, %v2315
      %v2317 = vlaneseq
      %v2318 = vshrl.u32 %v2317, 7
      %v2319 = vsub.s32 6, %v2318
      %v2320 = vrot.slane %v343, %v2319
      %v2321 = vlaneseq
      %v2322 = vshrl.u32 %v2321, 7
      %v2323 = vsub.s32 2, %v2322
      %v2324 = vrot.slane %v344, %v2323
      %v2325 = vlaneseq
      %v2326 = vshrl.u32 %v2325, 7
      %v2327 = vsub.s32 6, %v2326
      %v2328 = vrot.slane %v344, %v2327
      %v2329 = vlaneseq
      %v2330 = vshrl.u32 %v2329, 7
      %v2331 = vsub.s32 2, %v2330
      %v2332 = vrot.slane %v345, %v2331
      %v2333 = vlaneseq
      %v2334 = vshrl.u32 %v2333, 7
      %v2335 = vsub.s32 6, %v2334
      %v2336 = vrot.slane %v345, %v2335
      %v2337 = vlaneseq
      %v2338 = vshrl.u32 %v2337, 7
      %v2339 = vsub.s32 2, %v2338
      %v2340 = vrot.slane %v346, %v2339
      %v2341 = vlaneseq
      %v2342 = vshrl.u32 %v2341, 7
      %v2343 = vsub.s32 6, %v2342
      %v2344 = vrot.slane %v346, %v2343
      %v2345 = vlaneseq
      %v2346 = vshrl.u32 %v2345, 7
      %v2347 = vsub.s32 2, %v2346
      %v2348 = vrot.slane %v347, %v2347
      %v2349 = vlaneseq
      %v2350 = vshrl.u32 %v2349, 7
      %v2351 = vsub.s32 6, %v2350
      %v2352 = vrot.slane %v347, %v2351
      %v2353 = vlaneseq
      %v2354 = vshrl.u32 %v2353, 7
      %v2355 = vsub.s32 2, %v2354
      %v2356 = vrot.slane %v348, %v2355
      %v2357 = vlaneseq
      %v2358 = vshrl.u32 %v2357, 7
      %v2359 = vsub.s32 6, %v2358
      %v2360 = vrot.slane %v348, %v2359
      %v2361 = vlaneseq
      %v2362 = vshrl.u32 %v2361, 7
      %v2363 = vsub.s32 2, %v2362
      %v2364 = vrot.slane %v349, %v2363
      %v2365 = vlaneseq
      %v2366 = vshrl.u32 %v2365, 7
      %v2367 = vsub.s32 6, %v2366
      %v2368 = vrot.slane %v349, %v2367
      %v2369 = vlaneseq
      %v2370 = vshrl.u32 %v2369, 7
      %v2371 = vsub.s32 2, %v2370
      %v2372 = vrot.slane %v350, %v2371
      %v2373 = vlaneseq
      %v2374 = vshrl.u32 %v2373, 7
      %v2375 = vsub.s32 6, %v2374
      %v2376 = vrot.slane %v350, %v2375
      %v2377 = vlaneseq
      %v2378 = vshrl.u32 %v2377, 7
      %v2379 = vsub.s32 2, %v2378
      %v2380 = vrot.slane %v351, %v2379
      %v2381 = vlaneseq
      %v2382 = vshrl.u32 %v2381, 7
      %v2383 = vsub.s32 6, %v2382
      %v2384 = vrot.slane %v351, %v2383
      %v2385 = vlaneseq
      %v2386 = vshrl.u32 %v2385, 7
      %v2387 = vsub.s32 2, %v2386
      %v2388 = vrot.slane %v352, %v2387
      %v2389 = vlaneseq
      %v2390 = vshrl.u32 %v2389, 7
      %v2391 = vsub.s32 6, %v2390
      %v2392 = vrot.slane %v352, %v2391
      %v2415 = vlaneseq
      %v2416 = vshrl.u32 %v2415, 7
      %v2417 = vsub.s32 2, %v2416
      %v2418 = vrot.slane %v2308, %v2417
      %v2419 = vlaneseq
      %v2420 = vshrl.u32 %v2419, 7
      %v2421 = vsub.s32 2, %v2420
      %v2422 = vrot.slane %v2312, %v2421
      %v2423 = vlaneseq
      %v2424 = vshrl.u32 %v2423, 7
      %v2425 = vsub.s32 2, %v2424
      %v2426 = vrot.slane %v2316, %v2425
      %v2427 = vlaneseq
      %v2428 = vshrl.u32 %v2427, 7
      %v2429 = vsub.s32 2, %v2428
      %v2430 = vrot.slane %v2320, %v2429
      %v2431 = vlaneseq
      %v2432 = vshrl.u32 %v2431, 7
      %v2433 = vsub.s32 2, %v2432
      %v2434 = vrot.slane %v2324, %v2433
      %v2435 = vlaneseq
      %v2436 = vshrl.u32 %v2435, 7
      %v2437 = vsub.s32 2, %v2436
      %v2438 = vrot.slane %v2328, %v2437
      %v2439 = vlaneseq
      %v2440 = vshrl.u32 %v2439, 7
      %v2441 = vsub.s32 2, %v2440
      %v2442 = vrot.slane %v2332, %v2441
      %v2443 = vlaneseq
      %v2444 = vshrl.u32 %v2443, 7
      %v2445 = vsub.s32 2, %v2444
      %v2446 = vrot.slane %v2336, %v2445
      %v2447 = vlaneseq
      %v2448 = vshrl.u32 %v2447, 7
      %v2449 = vsub.s32 2, %v2448
      %v2450 = vrot.slane %v2340, %v2449
      %v2451 = vlaneseq
      %v2452 = vshrl.u32 %v2451, 7
      %v2453 = vsub.s32 2, %v2452
      %v2454 = vrot.slane %v2344, %v2453
      %v2455 = vlaneseq
      %v2456 = vshrl.u32 %v2455, 7
      %v2457 = vsub.s32 2, %v2456
      %v2458 = vrot.slane %v2348, %v2457
      %v2459 = vlaneseq
      %v2460 = vshrl.u32 %v2459, 7
      %v2461 = vsub.s32 2, %v2460
      %v2462 = vrot.slane %v2352, %v2461
      %v2463 = vlaneseq
      %v2464 = vshrl.u32 %v2463, 7
      %v2465 = vsub.s32 2, %v2464
      %v2466 = vrot.slane %v2356, %v2465
      %v2467 = vlaneseq
      %v2468 = vshrl.u32 %v2467, 7
      %v2469 = vsub.s32 2, %v2468
      %v2470 = vrot.slane %v2360, %v2469
      %v2471 = vlaneseq
      %v2472 = vshrl.u32 %v2471, 7
      %v2473 = vsub.s32 2, %v2472
      %v2474 = vrot.slane %v2364, %v2473
      %v2475 = vlaneseq
      %v2476 = vshrl.u32 %v2475, 7
      %v2477 = vsub.s32 2, %v2476
      %v2478 = vrot.slane %v2368, %v2477
      %v2479 = vlaneseq
      %v2480 = vshrl.u32 %v2479, 7
      %v2481 = vsub.s32 2, %v2480
      %v2482 = vrot.slane %v2372, %v2481
      %v2483 = vlaneseq
      %v2484 = vshrl.u32 %v2483, 7
      %v2485 = vsub.s32 2, %v2484
      %v2486 = vrot.slane %v2376, %v2485
      %v2487 = vlaneseq
      %v2488 = vshrl.u32 %v2487, 7
      %v2489 = vsub.s32 2, %v2488
      %v2490 = vrot.slane %v2380, %v2489
      %v2491 = vlaneseq
      %v2492 = vshrl.u32 %v2491, 7
      %v2493 = vsub.s32 2, %v2492
      %v2494 = vrot.slane %v2384, %v2493
      %v2495 = vlaneseq
      %v2496 = vshrl.u32 %v2495, 7
      %v2497 = vsub.s32 2, %v2496
      %v2498 = vrot.slane %v2388, %v2497
      %v2499 = vlaneseq
      %v2500 = vshrl.u32 %v2499, 7
      %v2501 = vsub.s32 2, %v2500
      %v2502 = vrot.slane %v2392, %v2501
      %v2503 = vmul.f32 %v2288, %v2418
      %v2504 = vmul.f32 %v2288, %v2422
      %v2505 = vmul.f32 %v2288, %v2426
      %v2506 = vmul.f32 %v2288, %v2430
      %v2507 = vmul.f32 %v2288, %v2434
      %v2508 = vmul.f32 %v2288, %v2438
      %v2509 = vmul.f32 %v2288, %v2442
      %v2510 = vmul.f32 %v2288, %v2446
      %v2511 = vmul.f32 %v2288, %v2450
      %v2512 = vmul.f32 %v2288, %v2454
      %v2513 = vmul.f32 %v2288, %v2458
      %v2514 = vmul.f32 %v2288, %v2462
      %v2515 = vmul.f32 %v2288, %v2466
      %v2516 = vmul.f32 %v2288, %v2470
      %v2517 = vmul.f32 %v2288, %v2474
      %v2518 = vmul.f32 %v2288, %v2478
      %v2519 = vmul.f32 %v2288, %v2482
      %v2520 = vmul.f32 %v2288, %v2486
      %v2521 = vmul.f32 %v2288, %v2490
      %v2522 = vmul.f32 %v2288, %v2494
      %v2523 = vmul.f32 %v2288, %v2498
      %v2524 = vmul.f32 %v2288, %v2502
      %v2525 = vmul.f32 %v2293, %v2418
      %v2526 = vmul.f32 %v2293, %v2422
      %v2527 = vmul.f32 %v2293, %v2426
      %v2528 = vmul.f32 %v2293, %v2430
      %v2529 = vmul.f32 %v2293, %v2434
      %v2530 = vmul.f32 %v2293, %v2438
      %v2531 = vmul.f32 %v2293, %v2442
      %v2532 = vmul.f32 %v2293, %v2446
      %v2533 = vmul.f32 %v2293, %v2450
      %v2534 = vmul.f32 %v2293, %v2454
      %v2535 = vmul.f32 %v2293, %v2458
      %v2536 = vmul.f32 %v2293, %v2462
      %v2537 = vmul.f32 %v2293, %v2466
      %v2538 = vmul.f32 %v2293, %v2470
      %v2539 = vmul.f32 %v2293, %v2474
      %v2540 = vmul.f32 %v2293, %v2478
      %v2541 = vmul.f32 %v2293, %v2482
      %v2542 = vmul.f32 %v2293, %v2486
      %v2543 = vmul.f32 %v2293, %v2490
      %v2544 = vmul.f32 %v2293, %v2494
      %v2545 = vmul.f32 %v2293, %v2498
      %v2546 = vmul.f32 %v2293, %v2502
      %v2547 = vmul.f32 %v2298, %v2418
      %v2548 = vmul.f32 %v2298, %v2422
      %v2549 = vmul.f32 %v2298, %v2426
      %v2550 = vmul.f32 %v2298, %v2430
      %v2551 = vmul.f32 %v2298, %v2434
      %v2552 = vmul.f32 %v2298, %v2438
      %v2553 = vmul.f32 %v2298, %v2442
      %v2554 = vmul.f32 %v2298, %v2446
      %v2555 = vmul.f32 %v2298, %v2450
      %v2556 = vmul.f32 %v2298, %v2454
      %v2557 = vmul.f32 %v2298, %v2458
      %v2558 = vmul.f32 %v2298, %v2462
      %v2559 = vmul.f32 %v2298, %v2466
      %v2560 = vmul.f32 %v2298, %v2470
      %v2561 = vmul.f32 %v2298, %v2474
      %v2562 = vmul.f32 %v2298, %v2478
      %v2563 = vmul.f32 %v2298, %v2482
      %v2564 = vmul.f32 %v2298, %v2486
      %v2565 = vmul.f32 %v2298, %v2490
      %v2566 = vmul.f32 %v2298, %v2494
      %v2567 = vmul.f32 %v2298, %v2498
      %v2568 = vmul.f32 %v2298, %v2502
      %v2569 = vmul.f32 %v2303, %v2418
      %v2570 = vmul.f32 %v2303, %v2422
      %v2571 = vmul.f32 %v2303, %v2426
      %v2572 = vmul.f32 %v2303, %v2430
      %v2573 = vmul.f32 %v2303, %v2434
      %v2574 = vmul.f32 %v2303, %v2438
      %v2575 = vmul.f32 %v2303, %v2442
      %v2576 = vmul.f32 %v2303, %v2446
      %v2577 = vmul.f32 %v2303, %v2450
      %v2578 = vmul.f32 %v2303, %v2454
      %v2579 = vmul.f32 %v2303, %v2458
      %v2580 = vmul.f32 %v2303, %v2462
      %v2581 = vmul.f32 %v2303, %v2466
      %v2582 = vmul.f32 %v2303, %v2470
      %v2583 = vmul.f32 %v2303, %v2474
      %v2584 = vmul.f32 %v2303, %v2478
      %v2585 = vmul.f32 %v2303, %v2482
      %v2586 = vmul.f32 %v2303, %v2486
      %v2587 = vmul.f32 %v2303, %v2490
      %v2588 = vmul.f32 %v2303, %v2494
      %v2589 = vmul.f32 %v2303, %v2498
      %v2590 = vmul.f32 %v2303, %v2502
      %v2591 = vadd.f32 %v2192, %v2503
      %v2592 = vadd.f32 %v2193, %v2504
      %v2593 = vadd.f32 %v2194, %v2505
      %v2594 = vadd.f32 %v2195, %v2506
      %v2595 = vadd.f32 %v2196, %v2507
      %v2596 = vadd.f32 %v2197, %v2508
      %v2597 = vadd.f32 %v2198, %v2509
      %v2598 = vadd.f32 %v2199, %v2510
      %v2599 = vadd.f32 %v2200, %v2511
      %v2600 = vadd.f32 %v2201, %v2512
      %v2601 = vadd.f32 %v2202, %v2513
      %v2602 = vadd.f32 %v2203, %v2514
      %v2603 = vadd.f32 %v2204, %v2515
      %v2604 = vadd.f32 %v2205, %v2516
      %v2605 = vadd.f32 %v2206, %v2517
      %v2606 = vadd.f32 %v2207, %v2518
      %v2607 = vadd.f32 %v2208, %v2519
      %v2608 = vadd.f32 %v2209, %v2520
      %v2609 = vadd.f32 %v2210, %v2521
      %v2610 = vadd.f32 %v2211, %v2522
      %v2611 = vadd.f32 %v2212, %v2523
      %v2612 = vadd.f32 %v2213, %v2524
      %v2613 = vadd.f32 %v2214, %v2525
      %v2614 = vadd.f32 %v2215, %v2526
      %v2615 = vadd.f32 %v2216, %v2527
      %v2616 = vadd.f32 %v2217, %v2528
      %v2617 = vadd.f32 %v2218, %v2529
      %v2618 = vadd.f32 %v2219, %v2530
      %v2619 = vadd.f32 %v2220, %v2531
      %v2620 = vadd.f32 %v2221, %v2532
      %v2621 = vadd.f32 %v2222, %v2533
      %v2622 = vadd.f32 %v2223, %v2534
      %v2623 = vadd.f32 %v2224, %v2535
      %v2624 = vadd.f32 %v2225, %v2536
      %v2625 = vadd.f32 %v2226, %v2537
      %v2626 = vadd.f32 %v2227, %v2538
      %v2627 = vadd.f32 %v2228, %v2539
      %v2628 = vadd.f32 %v2229, %v2540
      %v2629 = vadd.f32 %v2230, %v2541
      %v2630 = vadd.f32 %v2231, %v2542
      %v2631 = vadd.f32 %v2232, %v2543
      %v2632 = vadd.f32 %v2233, %v2544
      %v2633 = vadd.f32 %v2234, %v2545
      %v2634 = vadd.f32 %v2235, %v2546
      %v2635 = vadd.f32 %v2236, %v2547
      %v2636 = vadd.f32 %v2237, %v2548
      %v2637 = vadd.f32 %v2238, %v2549
      %v2638 = vadd.f32 %v2239, %v2550
      %v2639 = vadd.f32 %v2240, %v2551
      %v2640 = vadd.f32 %v2241, %v2552
      %v2641 = vadd.f32 %v2242, %v2553
      %v2642 = vadd.f32 %v2243, %v2554
      %v2643 = vadd.f32 %v2244, %v2555
      %v2644 = vadd.f32 %v2245, %v2556
      %v2645 = vadd.f32 %v2246, %v2557
      %v2646 = vadd.f32 %v2247, %v2558
      %v2647 = vadd.f32 %v2248, %v2559
      %v2648 = vadd.f32 %v2249, %v2560
      %v2649 = vadd.f32 %v2250, %v2561
      %v2650 = vadd.f32 %v2251, %v2562
      %v2651 = vadd.f32 %v2252, %v2563
      %v2652 = vadd.f32 %v2253, %v2564
      %v2653 = vadd.f32 %v2254, %v2565
      %v2654 = vadd.f32 %v2255, %v2566
      %v2655 = vadd.f32 %v2256, %v2567
      %v2656 = vadd.f32 %v2257, %v2568
      %v2657 = vadd.f32 %v2258, %v2569
      %v2658 = vadd.f32 %v2259, %v2570
      %v2659 = vadd.f32 %v2260, %v2571
      %v2660 = vadd.f32 %v2261, %v2572
      %v2661 = vadd.f32 %v2262, %v2573
      %v2662 = vadd.f32 %v2263, %v2574
      %v2663 = vadd.f32 %v2264, %v2575
      %v2664 = vadd.f32 %v2265, %v2576
      %v2665 = vadd.f32 %v2266, %v2577
      %v2666 = vadd.f32 %v2267, %v2578
      %v2667 = vadd.f32 %v2268, %v2579
      %v2668 = vadd.f32 %v2269, %v2580
      %v2669 = vadd.f32 %v2270, %v2581
      %v2670 = vadd.f32 %v2271, %v2582
      %v2671 = vadd.f32 %v2272, %v2583
      %v2672 = vadd.f32 %v2273, %v2584
      %v2673 = vadd.f32 %v2274, %v2585
      %v2674 = vadd.f32 %v2275, %v2586
      %v2675 = vadd.f32 %v2276, %v2587
      %v2676 = vadd.f32 %v2277, %v2588
      %v2677 = vadd.f32 %v2278, %v2589
      %v2678 = vadd.f32 %v2279, %v2590
      %v2679 = vld [vmem:[%s3] sm:$0xff]
      %v2680 = vld [vmem:[%s3 + $0x8] sm:$0xff]
      %v2681 = vld [vmem:[%s3 + $0x10] sm:$0xff]
      %v2682 = vld [vmem:[%s3 + $0x18] sm:$0xff]
      %2684 = vset.pattern.permute.xlu0 0
      %2685 = vperm.xlu0 %2684, %v2679
      %v2686 = vpop.permute.xlu0 %2685
      %2689 = vset.pattern.permute.xlu0 0
      %2690 = vperm.xlu0 %2689, %v2680
      %v2691 = vpop.permute.xlu0 %2690
      %2694 = vset.pattern.permute.xlu0 0
      %2695 = vperm.xlu0 %2694, %v2681
      %v2696 = vpop.permute.xlu0 %2695
      %2699 = vset.pattern.permute.xlu0 0
      %2700 = vperm.xlu0 %2699, %v2682
      %v2701 = vpop.permute.xlu0 %2700
      %v2703 = vadd.f32 %v2591, %v2686
      %v2704 = vadd.f32 %v2592, %v2686
      %v2705 = vadd.f32 %v2593, %v2686
      %v2706 = vadd.f32 %v2594, %v2686
      %v2707 = vadd.f32 %v2595, %v2686
      %v2708 = vadd.f32 %v2596, %v2686
      %v2709 = vadd.f32 %v2597, %v2686
      %v2710 = vadd.f32 %v2598, %v2686
      %v2711 = vadd.f32 %v2599, %v2686
      %v2712 = vadd.f32 %v2600, %v2686
      %v2713 = vadd.f32 %v2601, %v2686
      %v2714 = vadd.f32 %v2602, %v2686
      %v2715 = vadd.f32 %v2603, %v2686
      %v2716 = vadd.f32 %v2604, %v2686
      %v2717 = vadd.f32 %v2605, %v2686
      %v2718 = vadd.f32 %v2606, %v2686
      %v2719 = vadd.f32 %v2607, %v2686
      %v2720 = vadd.f32 %v2608, %v2686
      %v2721 = vadd.f32 %v2609, %v2686
      %v2722 = vadd.f32 %v2610, %v2686
      %v2723 = vadd.f32 %v2611, %v2686
      %v2724 = vadd.f32 %v2612, %v2686
      %v2725 = vadd.f32 %v2613, %v2691
      %v2726 = vadd.f32 %v2614, %v2691
      %v2727 = vadd.f32 %v2615, %v2691
      %v2728 = vadd.f32 %v2616, %v2691
      %v2729 = vadd.f32 %v2617, %v2691
      %v2730 = vadd.f32 %v2618, %v2691
      %v2731 = vadd.f32 %v2619, %v2691
      %v2732 = vadd.f32 %v2620, %v2691
      %v2733 = vadd.f32 %v2621, %v2691
      %v2734 = vadd.f32 %v2622, %v2691
      %v2735 = vadd.f32 %v2623, %v2691
      %v2736 = vadd.f32 %v2624, %v2691
      %v2737 = vadd.f32 %v2625, %v2691
      %v2738 = vadd.f32 %v2626, %v2691
      %v2739 = vadd.f32 %v2627, %v2691
      %v2740 = vadd.f32 %v2628, %v2691
      %v2741 = vadd.f32 %v2629, %v2691
      %v2742 = vadd.f32 %v2630, %v2691
      %v2743 = vadd.f32 %v2631, %v2691
      %v2744 = vadd.f32 %v2632, %v2691
      %v2745 = vadd.f32 %v2633, %v2691
      %v2746 = vadd.f32 %v2634, %v2691
      %v2747 = vadd.f32 %v2635, %v2696
      %v2748 = vadd.f32 %v2636, %v2696
      %v2749 = vadd.f32 %v2637, %v2696
      %v2750 = vadd.f32 %v2638, %v2696
      %v2751 = vadd.f32 %v2639, %v2696
      %v2752 = vadd.f32 %v2640, %v2696
      %v2753 = vadd.f32 %v2641, %v2696
      %v2754 = vadd.f32 %v2642, %v2696
      %v2755 = vadd.f32 %v2643, %v2696
      %v2756 = vadd.f32 %v2644, %v2696
      %v2757 = vadd.f32 %v2645, %v2696
      %v2758 = vadd.f32 %v2646, %v2696
      %v2759 = vadd.f32 %v2647, %v2696
      %v2760 = vadd.f32 %v2648, %v2696
      %v2761 = vadd.f32 %v2649, %v2696
      %v2762 = vadd.f32 %v2650, %v2696
      %v2763 = vadd.f32 %v2651, %v2696
      %v2764 = vadd.f32 %v2652, %v2696
      %v2765 = vadd.f32 %v2653, %v2696
      %v2766 = vadd.f32 %v2654, %v2696
      %v2767 = vadd.f32 %v2655, %v2696
      %v2768 = vadd.f32 %v2656, %v2696
      %v2769 = vadd.f32 %v2657, %v2701
      %v2770 = vadd.f32 %v2658, %v2701
      %v2771 = vadd.f32 %v2659, %v2701
      %v2772 = vadd.f32 %v2660, %v2701
      %v2773 = vadd.f32 %v2661, %v2701
      %v2774 = vadd.f32 %v2662, %v2701
      %v2775 = vadd.f32 %v2663, %v2701
      %v2776 = vadd.f32 %v2664, %v2701
      %v2777 = vadd.f32 %v2665, %v2701
      %v2778 = vadd.f32 %v2666, %v2701
      %v2779 = vadd.f32 %v2667, %v2701
      %v2780 = vadd.f32 %v2668, %v2701
      %v2781 = vadd.f32 %v2669, %v2701
      %v2782 = vadd.f32 %v2670, %v2701
      %v2783 = vadd.f32 %v2671, %v2701
      %v2784 = vadd.f32 %v2672, %v2701
      %v2785 = vadd.f32 %v2673, %v2701
      %v2786 = vadd.f32 %v2674, %v2701
      %v2787 = vadd.f32 %v2675, %v2701
      %v2788 = vadd.f32 %v2676, %v2701
      %v2789 = vadd.f32 %v2677, %v2701
      %v2790 = vadd.f32 %v2678, %v2701
      %v2791 = vmax.f32 %v2703, 0.0
      %v2792 = vmax.f32 %v2704, 0.0
      %v2793 = vmax.f32 %v2705, 0.0
      %v2794 = vmax.f32 %v2706, 0.0
      %v2795 = vmax.f32 %v2707, 0.0
      %v2796 = vmax.f32 %v2708, 0.0
      %v2797 = vmax.f32 %v2709, 0.0
      %v2798 = vmax.f32 %v2710, 0.0
      %v2799 = vmax.f32 %v2711, 0.0
      %v2800 = vmax.f32 %v2712, 0.0
      %v2801 = vmax.f32 %v2713, 0.0
      %v2802 = vmax.f32 %v2714, 0.0
      %v2803 = vmax.f32 %v2715, 0.0
      %v2804 = vmax.f32 %v2716, 0.0
      %v2805 = vmax.f32 %v2717, 0.0
      %v2806 = vmax.f32 %v2718, 0.0
      %v2807 = vmax.f32 %v2719, 0.0
      %v2808 = vmax.f32 %v2720, 0.0
      %v2809 = vmax.f32 %v2721, 0.0
      %v2810 = vmax.f32 %v2722, 0.0
      %v2811 = vmax.f32 %v2723, 0.0
      %v2812 = vmax.f32 %v2724, 0.0
      %v2813 = vmax.f32 %v2725, 0.0
      %v2814 = vmax.f32 %v2726, 0.0
      %v2815 = vmax.f32 %v2727, 0.0
      %v2816 = vmax.f32 %v2728, 0.0
      %v2817 = vmax.f32 %v2729, 0.0
      %v2818 = vmax.f32 %v2730, 0.0
      %v2819 = vmax.f32 %v2731, 0.0
      %v2820 = vmax.f32 %v2732, 0.0
      %v2821 = vmax.f32 %v2733, 0.0
      %v2822 = vmax.f32 %v2734, 0.0
      %v2823 = vmax.f32 %v2735, 0.0
      %v2824 = vmax.f32 %v2736, 0.0
      %v2825 = vmax.f32 %v2737, 0.0
      %v2826 = vmax.f32 %v2738, 0.0
      %v2827 = vmax.f32 %v2739, 0.0
      %v2828 = vmax.f32 %v2740, 0.0
      %v2829 = vmax.f32 %v2741, 0.0
      %v2830 = vmax.f32 %v2742, 0.0
      %v2831 = vmax.f32 %v2743, 0.0
      %v2832 = vmax.f32 %v2744, 0.0
      %v2833 = vmax.f32 %v2745, 0.0
      %v2834 = vmax.f32 %v2746, 0.0
      %v2835 = vmax.f32 %v2747, 0.0
      %v2836 = vmax.f32 %v2748, 0.0
      %v2837 = vmax.f32 %v2749, 0.0
      %v2838 = vmax.f32 %v2750, 0.0
      %v2839 = vmax.f32 %v2751, 0.0
      %v2840 = vmax.f32 %v2752, 0.0
      %v2841 = vmax.f32 %v2753, 0.0
      %v2842 = vmax.f32 %v2754, 0.0
      %v2843 = vmax.f32 %v2755, 0.0
      %v2844 = vmax.f32 %v2756, 0.0
      %v2845 = vmax.f32 %v2757, 0.0
      %v2846 = vmax.f32 %v2758, 0.0
      %v2847 = vmax.f32 %v2759, 0.0
      %v2848 = vmax.f32 %v2760, 0.0
      %v2849 = vmax.f32 %v2761, 0.0
      %v2850 = vmax.f32 %v2762, 0.0
      %v2851 = vmax.f32 %v2763, 0.0
      %v2852 = vmax.f32 %v2764, 0.0
      %v2853 = vmax.f32 %v2765, 0.0
      %v2854 = vmax.f32 %v2766, 0.0
      %v2855 = vmax.f32 %v2767, 0.0
      %v2856 = vmax.f32 %v2768, 0.0
      %v2857 = vmax.f32 %v2769, 0.0
      %v2858 = vmax.f32 %v2770, 0.0
      %v2859 = vmax.f32 %v2771, 0.0
      %v2860 = vmax.f32 %v2772, 0.0
      %v2861 = vmax.f32 %v2773, 0.0
      %v2862 = vmax.f32 %v2774, 0.0
      %v2863 = vmax.f32 %v2775, 0.0
      %v2864 = vmax.f32 %v2776, 0.0
      %v2865 = vmax.f32 %v2777, 0.0
      %v2866 = vmax.f32 %v2778, 0.0
      %v2867 = vmax.f32 %v2779, 0.0
      %v2868 = vmax.f32 %v2780, 0.0
      %v2869 = vmax.f32 %v2781, 0.0
      %v2870 = vmax.f32 %v2782, 0.0
      %v2871 = vmax.f32 %v2783, 0.0
      %v2872 = vmax.f32 %v2784, 0.0
      %v2873 = vmax.f32 %v2785, 0.0
      %v2874 = vmax.f32 %v2786, 0.0
      %v2875 = vmax.f32 %v2787, 0.0
      %v2876 = vmax.f32 %v2788, 0.0
      %v2877 = vmax.f32 %v2789, 0.0
      %v2878 = vmax.f32 %v2790, 0.0
      %v2879 = vld [vmem:[%s4] sm:$0xff]
      %v2880 = vld [vmem:[%s4 + $0x8] sm:$0xff]
      %v2881 = vld [vmem:[%s4 + $0x10] sm:$0xff]
      %v2882 = vld [vmem:[%s4 + $0x18] sm:$0xff]
      %v2883 = vld [vmem:[%s5] sm:$0xff]
      %v2884 = vld [vmem:[%s5 + $0x8] sm:$0xff]
      %v2885 = vld [vmem:[%s5 + $0x10] sm:$0xff]
      %v2886 = vld [vmem:[%s5 + $0x18] sm:$0xff]
      %vm2887 = vcmask 261120
      %v2889 = vsel %vm2887, %v2883, 0
      %v2892 = vsel %vm2887, %v2884, 0
      %v2895 = vsel %vm2887, %v2885, 0
      %v2898 = vsel %vm2887, %v2886, 0
      %2900 = vmatprep.subr.mxu0 0.0
      %2901 = vmatpush1.msra.mxu0 0.0
      %2902 = vmatprep.subr.mxu0 0.0
      %2903 = vmatpush1.msra.mxu0 0.0
      %2904 = vmatprep.subr.mxu0 0.0
      %2905 = vmatpush1.msra.mxu0 0.0
      %2906 = vmatprep.subr.mxu0 0.0
      %2907 = vmatpush1.msra.mxu0 0.0
      %2908 = vmatprep.subr.mxu0 0.0
      %2909 = vmatpush1.msra.mxu0 0.0
      %2910 = vmatprep.subr.mxu0 0.0
      %2911 = vmatpush1.msra.mxu0 0.0
      %2912 = vmatprep.subr.mxu0 0.0
      %2913 = vmatpush1.msra.mxu0 0.0
      %2914 = vmatprep.subr.mxu0 0.0
      %2915 = vmatpush1.msra.mxu0 0.0
      %2916 = vmatprep.subr.mxu0 0.0
      %2917 = vmatpush1.msra.mxu0 0.0
      %2918 = vmatprep.subr.mxu0 0.0
      %2919 = vmatpush1.msra.mxu0 0.0
      %2920 = vmatprep.subr.mxu0 0.0
      %2921 = vmatpush1.msra.mxu0 0.0
      %2922 = vmatprep.subr.mxu0 0.0
      %2923 = vmatpush1.msra.mxu0 0.0
      %2924 = vmatprep.subr.mxu0 %v2869
      %2925 = vmatpush1.msra.mxu0 %v2868
      %2926 = vmatprep.subr.mxu0 %v2847
      %2927 = vmatpush1.msra.mxu0 %v2846
      %2928 = vmatprep.subr.mxu0 %v2825
      %2929 = vmatpush1.msra.mxu0 %v2824
      %2930 = vmatprep.subr.mxu0 %v2803
      %2931 = vmatpush1.msra.mxu0 %v2802
      %2932 = vmatprep.subr.mxu0 0.0
      %2933 = vmatpush2.msra.mxu0 0.0
      %2934 = vmatprep.subr.mxu0 0.0
      %2935 = vmatpush2.msra.mxu0 0.0
      %2936 = vmatprep.subr.mxu0 0.0
      %2937 = vmatpush2.msra.mxu0 0.0
      %2938 = vmatprep.subr.mxu0 0.0
      %2939 = vmatpush2.msra.mxu0 0.0
      %2940 = vmatprep.subr.mxu0 0.0
      %2941 = vmatpush2.msra.mxu0 0.0
      %2942 = vmatprep.subr.mxu0 0.0
      %2943 = vmatpush2.msra.mxu0 0.0
      %2944 = vmatprep.subr.mxu0 0.0
      %2945 = vmatpush2.msra.mxu0 0.0
      %2946 = vmatprep.subr.mxu0 0.0
      %2947 = vmatpush2.msra.mxu0 0.0
      %2948 = vmatprep.subr.mxu0 0.0
      %2949 = vmatpush2.msra.mxu0 0.0
      %2950 = vmatprep.subr.mxu0 0.0
      %2951 = vmatpush2.msra.mxu0 0.0
      %2952 = vmatprep.subr.mxu0 0.0
      %2953 = vmatpush2.msra.mxu0 0.0
      %2954 = vmatprep.subr.mxu0 0.0
      %2955 = vmatpush2.msra.mxu0 0.0
      %2956 = vmatprep.subr.mxu0 0.0
      %2957 = vmatpush2.msra.mxu0 0.0
      %2958 = vmatprep.subr.mxu0 0.0
      %2959 = vmatpush2.msra.mxu0 0.0
      %2960 = vmatprep.subr.mxu0 0.0
      %2961 = vmatpush2.msra.mxu0 0.0
      %2962 = vmatprep.subr.mxu0 0.0
      %2963 = vmatpush2.msra.mxu0 0.0
      %2964 = vmatprep.mubr.f32.mxu0 0.0
      %2965 = vmatmul.mubr.f32.gmra.mxu0 %v2889
      %v2966 = vpop.f32.mrf.mxu0
      %v2967 = vadd.f32 0.0, %v2966
      %v2968 = vpop.f32.mrf.mxu0
      %v2969 = vadd.f32 0.0, %v2968
      %2970 = vmatprep.mubr.f32.mxu0 0.0
      %2971 = vmatmul.mubr.f32.gmra.mxu0 %v2892
      %v2972 = vpop.f32.mrf.mxu0
      %v2973 = vadd.f32 0.0, %v2972
      %v2974 = vpop.f32.mrf.mxu0
      %v2975 = vadd.f32 0.0, %v2974
      %2976 = vmatprep.mubr.f32.mxu0 0.0
      %2977 = vmatmul.mubr.f32.gmra.mxu0 %v2895
      %v2978 = vpop.f32.mrf.mxu0
      %v2979 = vadd.f32 0.0, %v2978
      %v2980 = vpop.f32.mrf.mxu0
      %v2981 = vadd.f32 0.0, %v2980
      %2982 = vmatprep.mubr.f32.mxu0 0.0
      %2983 = vmatmul.mubr.f32.gmra.mxu0 %v2898
      %v2984 = vpop.f32.mrf.mxu0
      %v2985 = vadd.f32 0.0, %v2984
      %v2986 = vpop.f32.mrf.mxu0
      %v2987 = vadd.f32 0.0, %v2986
      %2988 = vdwg.mxu0
      %2989 = vmatprep.subr.mxu0 0.0
      %2990 = vmatpush1.msra.mxu0 0.0
      %2991 = vmatprep.subr.mxu0 0.0
      %2992 = vmatpush1.msra.mxu0 0.0
      %2993 = vmatprep.subr.mxu0 0.0
      %2994 = vmatpush1.msra.mxu0 0.0
      %2995 = vmatprep.subr.mxu0 0.0
      %2996 = vmatpush1.msra.mxu0 0.0
      %2997 = vmatprep.subr.mxu0 0.0
      %2998 = vmatpush1.msra.mxu0 0.0
      %2999 = vmatprep.subr.mxu0 0.0
      %3000 = vmatpush1.msra.mxu0 0.0
      %3001 = vmatprep.subr.mxu0 0.0
      %3002 = vmatpush1.msra.mxu0 0.0
      %3003 = vmatprep.subr.mxu0 0.0
      %3004 = vmatpush1.msra.mxu0 0.0
      %3005 = vmatprep.subr.mxu0 0.0
      %3006 = vmatpush1.msra.mxu0 0.0
      %3007 = vmatprep.subr.mxu0 0.0
      %3008 = vmatpush1.msra.mxu0 0.0
      %3009 = vmatprep.subr.mxu0 0.0
      %3010 = vmatpush1.msra.mxu0 0.0
      %3011 = vmatprep.subr.mxu0 0.0
      %3012 = vmatpush1.msra.mxu0 0.0
      %3013 = vmatprep.subr.mxu0 %v2871
      %3014 = vmatpush1.msra.mxu0 %v2870
      %3015 = vmatprep.subr.mxu0 %v2849
      %3016 = vmatpush1.msra.mxu0 %v2848
      %3017 = vmatprep.subr.mxu0 %v2827
      %3018 = vmatpush1.msra.mxu0 %v2826
      %3019 = vmatprep.subr.mxu0 %v2805
      %3020 = vmatpush1.msra.mxu0 %v2804
      %3021 = vmatprep.subr.mxu0 0.0
      %3022 = vmatpush2.msra.mxu0 0.0
      %3023 = vmatprep.subr.mxu0 0.0
      %3024 = vmatpush2.msra.mxu0 0.0
      %3025 = vmatprep.subr.mxu0 0.0
      %3026 = vmatpush2.msra.mxu0 0.0
      %3027 = vmatprep.subr.mxu0 0.0
      %3028 = vmatpush2.msra.mxu0 0.0
      %3029 = vmatprep.subr.mxu0 0.0
      %3030 = vmatpush2.msra.mxu0 0.0
      %3031 = vmatprep.subr.mxu0 0.0
      %3032 = vmatpush2.msra.mxu0 0.0
      %3033 = vmatprep.subr.mxu0 0.0
      %3034 = vmatpush2.msra.mxu0 0.0
      %3035 = vmatprep.subr.mxu0 0.0
      %3036 = vmatpush2.msra.mxu0 0.0
      %3037 = vmatprep.subr.mxu0 0.0
      %3038 = vmatpush2.msra.mxu0 0.0
      %3039 = vmatprep.subr.mxu0 0.0
      %3040 = vmatpush2.msra.mxu0 0.0
      %3041 = vmatprep.subr.mxu0 0.0
      %3042 = vmatpush2.msra.mxu0 0.0
      %3043 = vmatprep.subr.mxu0 0.0
      %3044 = vmatpush2.msra.mxu0 0.0
      %3045 = vmatprep.subr.mxu0 0.0
      %3046 = vmatpush2.msra.mxu0 0.0
      %3047 = vmatprep.subr.mxu0 0.0
      %3048 = vmatpush2.msra.mxu0 0.0
      %3049 = vmatprep.subr.mxu0 0.0
      %3050 = vmatpush2.msra.mxu0 0.0
      %3051 = vmatprep.subr.mxu0 0.0
      %3052 = vmatpush2.msra.mxu0 0.0
      %3053 = vmatprep.mubr.f32.mxu0 0.0
      %3054 = vmatmul.mubr.f32.gmra.mxu0 %v2889
      %v3055 = vpop.f32.mrf.mxu0
      %v3056 = vadd.f32 0.0, %v3055
      %v3057 = vpop.f32.mrf.mxu0
      %v3058 = vadd.f32 0.0, %v3057
      %3059 = vmatprep.mubr.f32.mxu0 0.0
      %3060 = vmatmul.mubr.f32.gmra.mxu0 %v2892
      %v3061 = vpop.f32.mrf.mxu0
      %v3062 = vadd.f32 0.0, %v3061
      %v3063 = vpop.f32.mrf.mxu0
      %v3064 = vadd.f32 0.0, %v3063
      %3065 = vmatprep.mubr.f32.mxu0 0.0
      %3066 = vmatmul.mubr.f32.gmra.mxu0 %v2895
      %v3067 = vpop.f32.mrf.mxu0
      %v3068 = vadd.f32 0.0, %v3067
      %v3069 = vpop.f32.mrf.mxu0
      %v3070 = vadd.f32 0.0, %v3069
      %3071 = vmatprep.mubr.f32.mxu0 0.0
      %3072 = vmatmul.mubr.f32.gmra.mxu0 %v2898
      %v3073 = vpop.f32.mrf.mxu0
      %v3074 = vadd.f32 0.0, %v3073
      %v3075 = vpop.f32.mrf.mxu0
      %v3076 = vadd.f32 0.0, %v3075
      %3077 = vdwg.mxu0
      %3078 = vmatprep.subr.mxu0 0.0
      %3079 = vmatpush1.msra.mxu0 0.0
      %3080 = vmatprep.subr.mxu0 0.0
      %3081 = vmatpush1.msra.mxu0 0.0
      %3082 = vmatprep.subr.mxu0 0.0
      %3083 = vmatpush1.msra.mxu0 0.0
      %3084 = vmatprep.subr.mxu0 0.0
      %3085 = vmatpush1.msra.mxu0 0.0
      %3086 = vmatprep.subr.mxu0 0.0
      %3087 = vmatpush1.msra.mxu0 0.0
      %3088 = vmatprep.subr.mxu0 0.0
      %3089 = vmatpush1.msra.mxu0 0.0
      %3090 = vmatprep.subr.mxu0 0.0
      %3091 = vmatpush1.msra.mxu0 0.0
      %3092 = vmatprep.subr.mxu0 0.0
      %3093 = vmatpush1.msra.mxu0 0.0
      %3094 = vmatprep.subr.mxu0 0.0
      %3095 = vmatpush1.msra.mxu0 0.0
      %3096 = vmatprep.subr.mxu0 0.0
      %3097 = vmatpush1.msra.mxu0 0.0
      %3098 = vmatprep.subr.mxu0 0.0
      %3099 = vmatpush1.msra.mxu0 0.0
      %3100 = vmatprep.subr.mxu0 0.0
      %3101 = vmatpush1.msra.mxu0 0.0
      %3102 = vmatprep.subr.mxu0 %v2873
      %3103 = vmatpush1.msra.mxu0 %v2872
      %3104 = vmatprep.subr.mxu0 %v2851
      %3105 = vmatpush1.msra.mxu0 %v2850
      %3106 = vmatprep.subr.mxu0 %v2829
      %3107 = vmatpush1.msra.mxu0 %v2828
      %3108 = vmatprep.subr.mxu0 %v2807
      %3109 = vmatpush1.msra.mxu0 %v2806
      %3110 = vmatprep.subr.mxu0 0.0
      %3111 = vmatpush2.msra.mxu0 0.0
      %3112 = vmatprep.subr.mxu0 0.0
      %3113 = vmatpush2.msra.mxu0 0.0
      %3114 = vmatprep.subr.mxu0 0.0
      %3115 = vmatpush2.msra.mxu0 0.0
      %3116 = vmatprep.subr.mxu0 0.0
      %3117 = vmatpush2.msra.mxu0 0.0
      %3118 = vmatprep.subr.mxu0 0.0
      %3119 = vmatpush2.msra.mxu0 0.0
      %3120 = vmatprep.subr.mxu0 0.0
      %3121 = vmatpush2.msra.mxu0 0.0
      %3122 = vmatprep.subr.mxu0 0.0
      %3123 = vmatpush2.msra.mxu0 0.0
      %3124 = vmatprep.subr.mxu0 0.0
      %3125 = vmatpush2.msra.mxu0 0.0
      %3126 = vmatprep.subr.mxu0 0.0
      %3127 = vmatpush2.msra.mxu0 0.0
      %3128 = vmatprep.subr.mxu0 0.0
      %3129 = vmatpush2.msra.mxu0 0.0
      %3130 = vmatprep.subr.mxu0 0.0
      %3131 = vmatpush2.msra.mxu0 0.0
      %3132 = vmatprep.subr.mxu0 0.0
      %3133 = vmatpush2.msra.mxu0 0.0
      %3134 = vmatprep.subr.mxu0 0.0
      %3135 = vmatpush2.msra.mxu0 0.0
      %3136 = vmatprep.subr.mxu0 0.0
      %3137 = vmatpush2.msra.mxu0 0.0
      %3138 = vmatprep.subr.mxu0 0.0
      %3139 = vmatpush2.msra.mxu0 0.0
      %3140 = vmatprep.subr.mxu0 0.0
      %3141 = vmatpush2.msra.mxu0 0.0
      %3142 = vmatprep.mubr.f32.mxu0 0.0
      %3143 = vmatmul.mubr.f32.gmra.mxu0 %v2889
      %v3144 = vpop.f32.mrf.mxu0
      %v3145 = vadd.f32 0.0, %v3144
      %v3146 = vpop.f32.mrf.mxu0
      %v3147 = vadd.f32 0.0, %v3146
      %3148 = vmatprep.mubr.f32.mxu0 0.0
      %3149 = vmatmul.mubr.f32.gmra.mxu0 %v2892
      %v3150 = vpop.f32.mrf.mxu0
      %v3151 = vadd.f32 0.0, %v3150
      %v3152 = vpop.f32.mrf.mxu0
      %v3153 = vadd.f32 0.0, %v3152
      %3154 = vmatprep.mubr.f32.mxu0 0.0
      %3155 = vmatmul.mubr.f32.gmra.mxu0 %v2895
      %v3156 = vpop.f32.mrf.mxu0
      %v3157 = vadd.f32 0.0, %v3156
      %v3158 = vpop.f32.mrf.mxu0
      %v3159 = vadd.f32 0.0, %v3158
      %3160 = vmatprep.mubr.f32.mxu0 0.0
      %3161 = vmatmul.mubr.f32.gmra.mxu0 %v2898
      %v3162 = vpop.f32.mrf.mxu0
      %v3163 = vadd.f32 0.0, %v3162
      %v3164 = vpop.f32.mrf.mxu0
      %v3165 = vadd.f32 0.0, %v3164
      %3166 = vdwg.mxu0
      %3167 = vmatprep.subr.mxu0 0.0
      %3168 = vmatpush1.msra.mxu0 0.0
      %3169 = vmatprep.subr.mxu0 0.0
      %3170 = vmatpush1.msra.mxu0 0.0
      %3171 = vmatprep.subr.mxu0 0.0
      %3172 = vmatpush1.msra.mxu0 0.0
      %3173 = vmatprep.subr.mxu0 0.0
      %3174 = vmatpush1.msra.mxu0 0.0
      %3175 = vmatprep.subr.mxu0 0.0
      %3176 = vmatpush1.msra.mxu0 0.0
      %3177 = vmatprep.subr.mxu0 0.0
      %3178 = vmatpush1.msra.mxu0 0.0
      %3179 = vmatprep.subr.mxu0 0.0
      %3180 = vmatpush1.msra.mxu0 0.0
      %3181 = vmatprep.subr.mxu0 0.0
      %3182 = vmatpush1.msra.mxu0 0.0
      %3183 = vmatprep.subr.mxu0 0.0
      %3184 = vmatpush1.msra.mxu0 0.0
      %3185 = vmatprep.subr.mxu0 0.0
      %3186 = vmatpush1.msra.mxu0 0.0
      %3187 = vmatprep.subr.mxu0 0.0
      %3188 = vmatpush1.msra.mxu0 0.0
      %3189 = vmatprep.subr.mxu0 0.0
      %3190 = vmatpush1.msra.mxu0 0.0
      %3191 = vmatprep.subr.mxu0 %v2875
      %3192 = vmatpush1.msra.mxu0 %v2874
      %3193 = vmatprep.subr.mxu0 %v2853
      %3194 = vmatpush1.msra.mxu0 %v2852
      %3195 = vmatprep.subr.mxu0 %v2831
      %3196 = vmatpush1.msra.mxu0 %v2830
      %3197 = vmatprep.subr.mxu0 %v2809
      %3198 = vmatpush1.msra.mxu0 %v2808
      %3199 = vmatprep.subr.mxu0 0.0
      %3200 = vmatpush2.msra.mxu0 0.0
      %3201 = vmatprep.subr.mxu0 0.0
      %3202 = vmatpush2.msra.mxu0 0.0
      %3203 = vmatprep.subr.mxu0 0.0
      %3204 = vmatpush2.msra.mxu0 0.0
      %3205 = vmatprep.subr.mxu0 0.0
      %3206 = vmatpush2.msra.mxu0 0.0
      %3207 = vmatprep.subr.mxu0 0.0
      %3208 = vmatpush2.msra.mxu0 0.0
      %3209 = vmatprep.subr.mxu0 0.0
      %3210 = vmatpush2.msra.mxu0 0.0
      %3211 = vmatprep.subr.mxu0 0.0
      %3212 = vmatpush2.msra.mxu0 0.0
      %3213 = vmatprep.subr.mxu0 0.0
      %3214 = vmatpush2.msra.mxu0 0.0
      %3215 = vmatprep.subr.mxu0 0.0
      %3216 = vmatpush2.msra.mxu0 0.0
      %3217 = vmatprep.subr.mxu0 0.0
      %3218 = vmatpush2.msra.mxu0 0.0
      %3219 = vmatprep.subr.mxu0 0.0
      %3220 = vmatpush2.msra.mxu0 0.0
      %3221 = vmatprep.subr.mxu0 0.0
      %3222 = vmatpush2.msra.mxu0 0.0
      %3223 = vmatprep.subr.mxu0 0.0
      %3224 = vmatpush2.msra.mxu0 0.0
      %3225 = vmatprep.subr.mxu0 0.0
      %3226 = vmatpush2.msra.mxu0 0.0
      %3227 = vmatprep.subr.mxu0 0.0
      %3228 = vmatpush2.msra.mxu0 0.0
      %3229 = vmatprep.subr.mxu0 0.0
      %3230 = vmatpush2.msra.mxu0 0.0
      %3231 = vmatprep.mubr.f32.mxu0 0.0
      %3232 = vmatmul.mubr.f32.gmra.mxu0 %v2889
      %v3233 = vpop.f32.mrf.mxu0
      %v3234 = vadd.f32 0.0, %v3233
      %v3235 = vpop.f32.mrf.mxu0
      %v3236 = vadd.f32 0.0, %v3235
      %3237 = vmatprep.mubr.f32.mxu0 0.0
      %3238 = vmatmul.mubr.f32.gmra.mxu0 %v2892
      %v3239 = vpop.f32.mrf.mxu0
      %v3240 = vadd.f32 0.0, %v3239
      %v3241 = vpop.f32.mrf.mxu0
      %v3242 = vadd.f32 0.0, %v3241
      %3243 = vmatprep.mubr.f32.mxu0 0.0
      %3244 = vmatmul.mubr.f32.gmra.mxu0 %v2895
      %v3245 = vpop.f32.mrf.mxu0
      %v3246 = vadd.f32 0.0, %v3245
      %v3247 = vpop.f32.mrf.mxu0
      %v3248 = vadd.f32 0.0, %v3247
      %3249 = vmatprep.mubr.f32.mxu0 0.0
      %3250 = vmatmul.mubr.f32.gmra.mxu0 %v2898
      %v3251 = vpop.f32.mrf.mxu0
      %v3252 = vadd.f32 0.0, %v3251
      %v3253 = vpop.f32.mrf.mxu0
      %v3254 = vadd.f32 0.0, %v3253
      %3255 = vdwg.mxu0
      %3256 = vmatprep.subr.mxu0 0.0
      %3257 = vmatpush1.msra.mxu0 0.0
      %3258 = vmatprep.subr.mxu0 0.0
      %3259 = vmatpush1.msra.mxu0 0.0
      %3260 = vmatprep.subr.mxu0 0.0
      %3261 = vmatpush1.msra.mxu0 0.0
      %3262 = vmatprep.subr.mxu0 0.0
      %3263 = vmatpush1.msra.mxu0 0.0
      %3264 = vmatprep.subr.mxu0 0.0
      %3265 = vmatpush1.msra.mxu0 0.0
      %3266 = vmatprep.subr.mxu0 0.0
      %3267 = vmatpush1.msra.mxu0 0.0
      %3268 = vmatprep.subr.mxu0 0.0
      %3269 = vmatpush1.msra.mxu0 0.0
      %3270 = vmatprep.subr.mxu0 0.0
      %3271 = vmatpush1.msra.mxu0 0.0
      %3272 = vmatprep.subr.mxu0 0.0
      %3273 = vmatpush1.msra.mxu0 0.0
      %3274 = vmatprep.subr.mxu0 0.0
      %3275 = vmatpush1.msra.mxu0 0.0
      %3276 = vmatprep.subr.mxu0 0.0
      %3277 = vmatpush1.msra.mxu0 0.0
      %3278 = vmatprep.subr.mxu0 0.0
      %3279 = vmatpush1.msra.mxu0 0.0
      %3280 = vmatprep.subr.mxu0 %v2877
      %3281 = vmatpush1.msra.mxu0 %v2876
      %3282 = vmatprep.subr.mxu0 %v2855
      %3283 = vmatpush1.msra.mxu0 %v2854
      %3284 = vmatprep.subr.mxu0 %v2833
      %3285 = vmatpush1.msra.mxu0 %v2832
      %3286 = vmatprep.subr.mxu0 %v2811
      %3287 = vmatpush1.msra.mxu0 %v2810
      %3288 = vmatprep.subr.mxu0 0.0
      %3289 = vmatpush2.msra.mxu0 0.0
      %3290 = vmatprep.subr.mxu0 0.0
      %3291 = vmatpush2.msra.mxu0 0.0
      %3292 = vmatprep.subr.mxu0 0.0
      %3293 = vmatpush2.msra.mxu0 0.0
      %3294 = vmatprep.subr.mxu0 0.0
      %3295 = vmatpush2.msra.mxu0 0.0
      %3296 = vmatprep.subr.mxu0 0.0
      %3297 = vmatpush2.msra.mxu0 0.0
      %3298 = vmatprep.subr.mxu0 0.0
      %3299 = vmatpush2.msra.mxu0 0.0
      %3300 = vmatprep.subr.mxu0 0.0
      %3301 = vmatpush2.msra.mxu0 0.0
      %3302 = vmatprep.subr.mxu0 0.0
      %3303 = vmatpush2.msra.mxu0 0.0
      %3304 = vmatprep.subr.mxu0 0.0
      %3305 = vmatpush2.msra.mxu0 0.0
      %3306 = vmatprep.subr.mxu0 0.0
      %3307 = vmatpush2.msra.mxu0 0.0
      %3308 = vmatprep.subr.mxu0 0.0
      %3309 = vmatpush2.msra.mxu0 0.0
      %3310 = vmatprep.subr.mxu0 0.0
      %3311 = vmatpush2.msra.mxu0 0.0
      %3312 = vmatprep.subr.mxu0 0.0
      %3313 = vmatpush2.msra.mxu0 0.0
      %3314 = vmatprep.subr.mxu0 0.0
      %3315 = vmatpush2.msra.mxu0 0.0
      %3316 = vmatprep.subr.mxu0 0.0
      %3317 = vmatpush2.msra.mxu0 0.0
      %3318 = vmatprep.subr.mxu0 0.0
      %3319 = vmatpush2.msra.mxu0 0.0
      %3320 = vmatprep.mubr.f32.mxu0 0.0
      %3321 = vmatmul.mubr.f32.gmra.mxu0 %v2889
      %v3322 = vpop.f32.mrf.mxu0
      %v3323 = vadd.f32 0.0, %v3322
      %v3324 = vpop.f32.mrf.mxu0
      %v3325 = vadd.f32 0.0, %v3324
      %3326 = vmatprep.mubr.f32.mxu0 0.0
      %3327 = vmatmul.mubr.f32.gmra.mxu0 %v2892
      %v3328 = vpop.f32.mrf.mxu0
      %v3329 = vadd.f32 0.0, %v3328
      %v3330 = vpop.f32.mrf.mxu0
      %v3331 = vadd.f32 0.0, %v3330
      %3332 = vmatprep.mubr.f32.mxu0 0.0
      %3333 = vmatmul.mubr.f32.gmra.mxu0 %v2895
      %v3334 = vpop.f32.mrf.mxu0
      %v3335 = vadd.f32 0.0, %v3334
      %v3336 = vpop.f32.mrf.mxu0
      %v3337 = vadd.f32 0.0, %v3336
      %3338 = vmatprep.mubr.f32.mxu0 0.0
      %3339 = vmatmul.mubr.f32.gmra.mxu0 %v2898
      %v3340 = vpop.f32.mrf.mxu0
      %v3341 = vadd.f32 0.0, %v3340
      %v3342 = vpop.f32.mrf.mxu0
      %v3343 = vadd.f32 0.0, %v3342
      %3344 = vdwg.mxu0
      %3345 = vmatprep.subr.mxu0 0.0
      %3346 = vmatpush1.msra.mxu0 0.0
      %3347 = vmatprep.subr.mxu0 0.0
      %3348 = vmatpush1.msra.mxu0 0.0
      %3349 = vmatprep.subr.mxu0 0.0
      %3350 = vmatpush1.msra.mxu0 0.0
      %3351 = vmatprep.subr.mxu0 0.0
      %3352 = vmatpush1.msra.mxu0 0.0
      %3353 = vmatprep.subr.mxu0 0.0
      %3354 = vmatpush1.msra.mxu0 0.0
      %3355 = vmatprep.subr.mxu0 0.0
      %3356 = vmatpush1.msra.mxu0 0.0
      %3357 = vmatprep.subr.mxu0 0.0
      %3358 = vmatpush1.msra.mxu0 0.0
      %3359 = vmatprep.subr.mxu0 0.0
      %3360 = vmatpush1.msra.mxu0 0.0
      %3361 = vmatprep.subr.mxu0 0.0
      %3362 = vmatpush1.msra.mxu0 0.0
      %3363 = vmatprep.subr.mxu0 0.0
      %3364 = vmatpush1.msra.mxu0 0.0
      %3365 = vmatprep.subr.mxu0 0.0
      %3366 = vmatpush1.msra.mxu0 0.0
      %3367 = vmatprep.subr.mxu0 0.0
      %3368 = vmatpush1.msra.mxu0 0.0
      %3369 = vmatprep.subr.mxu0 0.0
      %3370 = vmatpush1.msra.mxu0 %v2878
      %3371 = vmatprep.subr.mxu0 0.0
      %3372 = vmatpush1.msra.mxu0 %v2856
      %3373 = vmatprep.subr.mxu0 0.0
      %3374 = vmatpush1.msra.mxu0 %v2834
      %3375 = vmatprep.subr.mxu0 0.0
      %3376 = vmatpush1.msra.mxu0 %v2812
      %3377 = vmatprep.subr.mxu0 0.0
      %3378 = vmatpush2.msra.mxu0 0.0
      %3379 = vmatprep.subr.mxu0 0.0
      %3380 = vmatpush2.msra.mxu0 0.0
      %3381 = vmatprep.subr.mxu0 0.0
      %3382 = vmatpush2.msra.mxu0 0.0
      %3383 = vmatprep.subr.mxu0 0.0
      %3384 = vmatpush2.msra.mxu0 0.0
      %3385 = vmatprep.subr.mxu0 0.0
      %3386 = vmatpush2.msra.mxu0 0.0
      %3387 = vmatprep.subr.mxu0 0.0
      %3388 = vmatpush2.msra.mxu0 0.0
      %3389 = vmatprep.subr.mxu0 0.0
      %3390 = vmatpush2.msra.mxu0 0.0
      %3391 = vmatprep.subr.mxu0 0.0
      %3392 = vmatpush2.msra.mxu0 0.0
      %3393 = vmatprep.subr.mxu0 0.0
      %3394 = vmatpush2.msra.mxu0 0.0
      %3395 = vmatprep.subr.mxu0 0.0
      %3396 = vmatpush2.msra.mxu0 0.0
      %3397 = vmatprep.subr.mxu0 0.0
      %3398 = vmatpush2.msra.mxu0 0.0
      %3399 = vmatprep.subr.mxu0 0.0
      %3400 = vmatpush2.msra.mxu0 0.0
      %3401 = vmatprep.subr.mxu0 0.0
      %3402 = vmatpush2.msra.mxu0 0.0
      %3403 = vmatprep.subr.mxu0 0.0
      %3404 = vmatpush2.msra.mxu0 0.0
      %3405 = vmatprep.subr.mxu0 0.0
      %3406 = vmatpush2.msra.mxu0 0.0
      %3407 = vmatprep.subr.mxu0 0.0
      %3408 = vmatpush2.msra.mxu0 0.0
      %3409 = vmatprep.mubr.f32.mxu0 0.0
      %3410 = vmatmul.mubr.f32.gmra.mxu0 %v2889
      %v3411 = vpop.f32.mrf.mxu0
      %v3412 = vadd.f32 0.0, %v3411
      %v3413 = vpop.f32.mrf.mxu0
      %3414 = vmatprep.mubr.f32.mxu0 0.0
      %3415 = vmatmul.mubr.f32.gmra.mxu0 %v2892
      %v3416 = vpop.f32.mrf.mxu0
      %v3417 = vadd.f32 0.0, %v3416
      %v3418 = vpop.f32.mrf.mxu0
      %3419 = vmatprep.mubr.f32.mxu0 0.0
      %3420 = vmatmul.mubr.f32.gmra.mxu0 %v2895
      %v3421 = vpop.f32.mrf.mxu0
      %v3422 = vadd.f32 0.0, %v3421
      %v3423 = vpop.f32.mrf.mxu0
      %3424 = vmatprep.mubr.f32.mxu0 0.0
      %3425 = vmatmul.mubr.f32.gmra.mxu0 %v2898
      %v3426 = vpop.f32.mrf.mxu0
      %v3427 = vadd.f32 0.0, %v3426
      %v3428 = vpop.f32.mrf.mxu0
      %3429 = vdwg.mxu0
      %v3431 = vsel %vm2887, %v2879, 0
      %v3434 = vsel %vm2887, %v2880, 0
      %v3437 = vsel %vm2887, %v2881, 0
      %v3440 = vsel %vm2887, %v2882, 0
      %3442 = vmatprep.subr.mxu0 0.0
      %3443 = vmatpush1.msra.mxu0 0.0
      %3444 = vmatprep.subr.mxu0 0.0
      %3445 = vmatpush1.msra.mxu0 0.0
      %3446 = vmatprep.subr.mxu0 0.0
      %3447 = vmatpush1.msra.mxu0 0.0
      %3448 = vmatprep.subr.mxu0 0.0
      %3449 = vmatpush1.msra.mxu0 0.0
      %3450 = vmatprep.subr.mxu0 0.0
      %3451 = vmatpush1.msra.mxu0 0.0
      %3452 = vmatprep.subr.mxu0 0.0
      %3453 = vmatpush1.msra.mxu0 0.0
      %3454 = vmatprep.subr.mxu0 0.0
      %3455 = vmatpush1.msra.mxu0 0.0
      %3456 = vmatprep.subr.mxu0 0.0
      %3457 = vmatpush1.msra.mxu0 0.0
      %3458 = vmatprep.subr.mxu0 0.0
      %3459 = vmatpush1.msra.mxu0 0.0
      %3460 = vmatprep.subr.mxu0 0.0
      %3461 = vmatpush1.msra.mxu0 0.0
      %3462 = vmatprep.subr.mxu0 0.0
      %3463 = vmatpush1.msra.mxu0 0.0
      %3464 = vmatprep.subr.mxu0 0.0
      %3465 = vmatpush1.msra.mxu0 0.0
      %3466 = vmatprep.subr.mxu0 %v2858
      %3467 = vmatpush1.msra.mxu0 %v2857
      %3468 = vmatprep.subr.mxu0 %v2836
      %3469 = vmatpush1.msra.mxu0 %v2835
      %3470 = vmatprep.subr.mxu0 %v2814
      %3471 = vmatpush1.msra.mxu0 %v2813
      %3472 = vmatprep.subr.mxu0 %v2792
      %3473 = vmatpush1.msra.mxu0 %v2791
      %3474 = vmatprep.subr.mxu0 0.0
      %3475 = vmatpush2.msra.mxu0 0.0
      %3476 = vmatprep.subr.mxu0 0.0
      %3477 = vmatpush2.msra.mxu0 0.0
      %3478 = vmatprep.subr.mxu0 0.0
      %3479 = vmatpush2.msra.mxu0 0.0
      %3480 = vmatprep.subr.mxu0 0.0
      %3481 = vmatpush2.msra.mxu0 0.0
      %3482 = vmatprep.subr.mxu0 0.0
      %3483 = vmatpush2.msra.mxu0 0.0
      %3484 = vmatprep.subr.mxu0 0.0
      %3485 = vmatpush2.msra.mxu0 0.0
      %3486 = vmatprep.subr.mxu0 0.0
      %3487 = vmatpush2.msra.mxu0 0.0
      %3488 = vmatprep.subr.mxu0 0.0
      %3489 = vmatpush2.msra.mxu0 0.0
      %3490 = vmatprep.subr.mxu0 0.0
      %3491 = vmatpush2.msra.mxu0 0.0
      %3492 = vmatprep.subr.mxu0 0.0
      %3493 = vmatpush2.msra.mxu0 0.0
      %3494 = vmatprep.subr.mxu0 0.0
      %3495 = vmatpush2.msra.mxu0 0.0
      %3496 = vmatprep.subr.mxu0 0.0
      %3497 = vmatpush2.msra.mxu0 0.0
      %3498 = vmatprep.subr.mxu0 0.0
      %3499 = vmatpush2.msra.mxu0 0.0
      %3500 = vmatprep.subr.mxu0 0.0
      %3501 = vmatpush2.msra.mxu0 0.0
      %3502 = vmatprep.subr.mxu0 0.0
      %3503 = vmatpush2.msra.mxu0 0.0
      %3504 = vmatprep.subr.mxu0 0.0
      %3505 = vmatpush2.msra.mxu0 0.0
      %3506 = vmatprep.mubr.f32.mxu0 0.0
      %3507 = vmatmul.mubr.f32.gmra.mxu0 %v3431
      %v3508 = vpop.f32.mrf.mxu0
      %v3509 = vadd.f32 %v2967, %v3508
      %v3510 = vpop.f32.mrf.mxu0
      %v3511 = vadd.f32 %v2969, %v3510
      %3512 = vmatprep.mubr.f32.mxu0 0.0
      %3513 = vmatmul.mubr.f32.gmra.mxu0 %v3434
      %v3514 = vpop.f32.mrf.mxu0
      %v3515 = vadd.f32 %v2973, %v3514
      %v3516 = vpop.f32.mrf.mxu0
      %v3517 = vadd.f32 %v2975, %v3516
      %3518 = vmatprep.mubr.f32.mxu0 0.0
      %3519 = vmatmul.mubr.f32.gmra.mxu0 %v3437
      %v3520 = vpop.f32.mrf.mxu0
      %v3521 = vadd.f32 %v2979, %v3520
      %v3522 = vpop.f32.mrf.mxu0
      %v3523 = vadd.f32 %v2981, %v3522
      %3524 = vmatprep.mubr.f32.mxu0 0.0
      %3525 = vmatmul.mubr.f32.gmra.mxu0 %v3440
      %v3526 = vpop.f32.mrf.mxu0
      %v3527 = vadd.f32 %v2985, %v3526
      %v3528 = vpop.f32.mrf.mxu0
      %v3529 = vadd.f32 %v2987, %v3528
      %3530 = vdwg.mxu0
      %3531 = vmatprep.subr.mxu0 0.0
      %3532 = vmatpush1.msra.mxu0 0.0
      %3533 = vmatprep.subr.mxu0 0.0
      %3534 = vmatpush1.msra.mxu0 0.0
      %3535 = vmatprep.subr.mxu0 0.0
      %3536 = vmatpush1.msra.mxu0 0.0
      %3537 = vmatprep.subr.mxu0 0.0
      %3538 = vmatpush1.msra.mxu0 0.0
      %3539 = vmatprep.subr.mxu0 0.0
      %3540 = vmatpush1.msra.mxu0 0.0
      %3541 = vmatprep.subr.mxu0 0.0
      %3542 = vmatpush1.msra.mxu0 0.0
      %3543 = vmatprep.subr.mxu0 0.0
      %3544 = vmatpush1.msra.mxu0 0.0
      %3545 = vmatprep.subr.mxu0 0.0
      %3546 = vmatpush1.msra.mxu0 0.0
      %3547 = vmatprep.subr.mxu0 0.0
      %3548 = vmatpush1.msra.mxu0 0.0
      %3549 = vmatprep.subr.mxu0 0.0
      %3550 = vmatpush1.msra.mxu0 0.0
      %3551 = vmatprep.subr.mxu0 0.0
      %3552 = vmatpush1.msra.mxu0 0.0
      %3553 = vmatprep.subr.mxu0 0.0
      %3554 = vmatpush1.msra.mxu0 0.0
      %3555 = vmatprep.subr.mxu0 %v2860
      %3556 = vmatpush1.msra.mxu0 %v2859
      %3557 = vmatprep.subr.mxu0 %v2838
      %3558 = vmatpush1.msra.mxu0 %v2837
      %3559 = vmatprep.subr.mxu0 %v2816
      %3560 = vmatpush1.msra.mxu0 %v2815
      %3561 = vmatprep.subr.mxu0 %v2794
      %3562 = vmatpush1.msra.mxu0 %v2793
      %3563 = vmatprep.subr.mxu0 0.0
      %3564 = vmatpush2.msra.mxu0 0.0
      %3565 = vmatprep.subr.mxu0 0.0
      %3566 = vmatpush2.msra.mxu0 0.0
      %3567 = vmatprep.subr.mxu0 0.0
      %3568 = vmatpush2.msra.mxu0 0.0
      %3569 = vmatprep.subr.mxu0 0.0
      %3570 = vmatpush2.msra.mxu0 0.0
      %3571 = vmatprep.subr.mxu0 0.0
      %3572 = vmatpush2.msra.mxu0 0.0
      %3573 = vmatprep.subr.mxu0 0.0
      %3574 = vmatpush2.msra.mxu0 0.0
      %3575 = vmatprep.subr.mxu0 0.0
      %3576 = vmatpush2.msra.mxu0 0.0
      %3577 = vmatprep.subr.mxu0 0.0
      %3578 = vmatpush2.msra.mxu0 0.0
      %3579 = vmatprep.subr.mxu0 0.0
      %3580 = vmatpush2.msra.mxu0 0.0
      %3581 = vmatprep.subr.mxu0 0.0
      %3582 = vmatpush2.msra.mxu0 0.0
      %3583 = vmatprep.subr.mxu0 0.0
      %3584 = vmatpush2.msra.mxu0 0.0
      %3585 = vmatprep.subr.mxu0 0.0
      %3586 = vmatpush2.msra.mxu0 0.0
      %3587 = vmatprep.subr.mxu0 0.0
      %3588 = vmatpush2.msra.mxu0 0.0
      %3589 = vmatprep.subr.mxu0 0.0
      %3590 = vmatpush2.msra.mxu0 0.0
      %3591 = vmatprep.subr.mxu0 0.0
      %3592 = vmatpush2.msra.mxu0 0.0
      %3593 = vmatprep.subr.mxu0 0.0
      %3594 = vmatpush2.msra.mxu0 0.0
      %3595 = vmatprep.mubr.f32.mxu0 0.0
      %3596 = vmatmul.mubr.f32.gmra.mxu0 %v3431
      %v3597 = vpop.f32.mrf.mxu0
      %v3598 = vadd.f32 %v3056, %v3597
      %v3599 = vpop.f32.mrf.mxu0
      %v3600 = vadd.f32 %v3058, %v3599
      %3601 = vmatprep.mubr.f32.mxu0 0.0
      %3602 = vmatmul.mubr.f32.gmra.mxu0 %v3434
      %v3603 = vpop.f32.mrf.mxu0
      %v3604 = vadd.f32 %v3062, %v3603
      %v3605 = vpop.f32.mrf.mxu0
      %v3606 = vadd.f32 %v3064, %v3605
      %3607 = vmatprep.mubr.f32.mxu0 0.0
      %3608 = vmatmul.mubr.f32.gmra.mxu0 %v3437
      %v3609 = vpop.f32.mrf.mxu0
      %v3610 = vadd.f32 %v3068, %v3609
      %v3611 = vpop.f32.mrf.mxu0
      %v3612 = vadd.f32 %v3070, %v3611
      %3613 = vmatprep.mubr.f32.mxu0 0.0
      %3614 = vmatmul.mubr.f32.gmra.mxu0 %v3440
      %v3615 = vpop.f32.mrf.mxu0
      %v3616 = vadd.f32 %v3074, %v3615
      %v3617 = vpop.f32.mrf.mxu0
      %v3618 = vadd.f32 %v3076, %v3617
      %3619 = vdwg.mxu0
      %3620 = vmatprep.subr.mxu0 0.0
      %3621 = vmatpush1.msra.mxu0 0.0
      %3622 = vmatprep.subr.mxu0 0.0
      %3623 = vmatpush1.msra.mxu0 0.0
      %3624 = vmatprep.subr.mxu0 0.0
      %3625 = vmatpush1.msra.mxu0 0.0
      %3626 = vmatprep.subr.mxu0 0.0
      %3627 = vmatpush1.msra.mxu0 0.0
      %3628 = vmatprep.subr.mxu0 0.0
      %3629 = vmatpush1.msra.mxu0 0.0
      %3630 = vmatprep.subr.mxu0 0.0
      %3631 = vmatpush1.msra.mxu0 0.0
      %3632 = vmatprep.subr.mxu0 0.0
      %3633 = vmatpush1.msra.mxu0 0.0
      %3634 = vmatprep.subr.mxu0 0.0
      %3635 = vmatpush1.msra.mxu0 0.0
      %3636 = vmatprep.subr.mxu0 0.0
      %3637 = vmatpush1.msra.mxu0 0.0
      %3638 = vmatprep.subr.mxu0 0.0
      %3639 = vmatpush1.msra.mxu0 0.0
      %3640 = vmatprep.subr.mxu0 0.0
      %3641 = vmatpush1.msra.mxu0 0.0
      %3642 = vmatprep.subr.mxu0 0.0
      %3643 = vmatpush1.msra.mxu0 0.0
      %3644 = vmatprep.subr.mxu0 %v2862
      %3645 = vmatpush1.msra.mxu0 %v2861
      %3646 = vmatprep.subr.mxu0 %v2840
      %3647 = vmatpush1.msra.mxu0 %v2839
      %3648 = vmatprep.subr.mxu0 %v2818
      %3649 = vmatpush1.msra.mxu0 %v2817
      %3650 = vmatprep.subr.mxu0 %v2796
      %3651 = vmatpush1.msra.mxu0 %v2795
      %3652 = vmatprep.subr.mxu0 0.0
      %3653 = vmatpush2.msra.mxu0 0.0
      %3654 = vmatprep.subr.mxu0 0.0
      %3655 = vmatpush2.msra.mxu0 0.0
      %3656 = vmatprep.subr.mxu0 0.0
      %3657 = vmatpush2.msra.mxu0 0.0
      %3658 = vmatprep.subr.mxu0 0.0
      %3659 = vmatpush2.msra.mxu0 0.0
      %3660 = vmatprep.subr.mxu0 0.0
      %3661 = vmatpush2.msra.mxu0 0.0
      %3662 = vmatprep.subr.mxu0 0.0
      %3663 = vmatpush2.msra.mxu0 0.0
      %3664 = vmatprep.subr.mxu0 0.0
      %3665 = vmatpush2.msra.mxu0 0.0
      %3666 = vmatprep.subr.mxu0 0.0
      %3667 = vmatpush2.msra.mxu0 0.0
      %3668 = vmatprep.subr.mxu0 0.0
      %3669 = vmatpush2.msra.mxu0 0.0
      %3670 = vmatprep.subr.mxu0 0.0
      %3671 = vmatpush2.msra.mxu0 0.0
      %3672 = vmatprep.subr.mxu0 0.0
      %3673 = vmatpush2.msra.mxu0 0.0
      %3674 = vmatprep.subr.mxu0 0.0
      %3675 = vmatpush2.msra.mxu0 0.0
      %3676 = vmatprep.subr.mxu0 0.0
      %3677 = vmatpush2.msra.mxu0 0.0
      %3678 = vmatprep.subr.mxu0 0.0
      %3679 = vmatpush2.msra.mxu0 0.0
      %3680 = vmatprep.subr.mxu0 0.0
      %3681 = vmatpush2.msra.mxu0 0.0
      %3682 = vmatprep.subr.mxu0 0.0
      %3683 = vmatpush2.msra.mxu0 0.0
      %3684 = vmatprep.mubr.f32.mxu0 0.0
      %3685 = vmatmul.mubr.f32.gmra.mxu0 %v3431
      %v3686 = vpop.f32.mrf.mxu0
      %v3687 = vadd.f32 %v3145, %v3686
      %v3688 = vpop.f32.mrf.mxu0
      %v3689 = vadd.f32 %v3147, %v3688
      %3690 = vmatprep.mubr.f32.mxu0 0.0
      %3691 = vmatmul.mubr.f32.gmra.mxu0 %v3434
      %v3692 = vpop.f32.mrf.mxu0
      %v3693 = vadd.f32 %v3151, %v3692
      %v3694 = vpop.f32.mrf.mxu0
      %v3695 = vadd.f32 %v3153, %v3694
      %3696 = vmatprep.mubr.f32.mxu0 0.0
      %3697 = vmatmul.mubr.f32.gmra.mxu0 %v3437
      %v3698 = vpop.f32.mrf.mxu0
      %v3699 = vadd.f32 %v3157, %v3698
      %v3700 = vpop.f32.mrf.mxu0
      %v3701 = vadd.f32 %v3159, %v3700
      %3702 = vmatprep.mubr.f32.mxu0 0.0
      %3703 = vmatmul.mubr.f32.gmra.mxu0 %v3440
      %v3704 = vpop.f32.mrf.mxu0
      %v3705 = vadd.f32 %v3163, %v3704
      %v3706 = vpop.f32.mrf.mxu0
      %v3707 = vadd.f32 %v3165, %v3706
      %3708 = vdwg.mxu0
      %3709 = vmatprep.subr.mxu0 0.0
      %3710 = vmatpush1.msra.mxu0 0.0
      %3711 = vmatprep.subr.mxu0 0.0
      %3712 = vmatpush1.msra.mxu0 0.0
      %3713 = vmatprep.subr.mxu0 0.0
      %3714 = vmatpush1.msra.mxu0 0.0
      %3715 = vmatprep.subr.mxu0 0.0
      %3716 = vmatpush1.msra.mxu0 0.0
      %3717 = vmatprep.subr.mxu0 0.0
      %3718 = vmatpush1.msra.mxu0 0.0
      %3719 = vmatprep.subr.mxu0 0.0
      %3720 = vmatpush1.msra.mxu0 0.0
      %3721 = vmatprep.subr.mxu0 0.0
      %3722 = vmatpush1.msra.mxu0 0.0
      %3723 = vmatprep.subr.mxu0 0.0
      %3724 = vmatpush1.msra.mxu0 0.0
      %3725 = vmatprep.subr.mxu0 0.0
      %3726 = vmatpush1.msra.mxu0 0.0
      %3727 = vmatprep.subr.mxu0 0.0
      %3728 = vmatpush1.msra.mxu0 0.0
      %3729 = vmatprep.subr.mxu0 0.0
      %3730 = vmatpush1.msra.mxu0 0.0
      %3731 = vmatprep.subr.mxu0 0.0
      %3732 = vmatpush1.msra.mxu0 0.0
      %3733 = vmatprep.subr.mxu0 %v2864
      %3734 = vmatpush1.msra.mxu0 %v2863
      %3735 = vmatprep.subr.mxu0 %v2842
      %3736 = vmatpush1.msra.mxu0 %v2841
      %3737 = vmatprep.subr.mxu0 %v2820
      %3738 = vmatpush1.msra.mxu0 %v2819
      %3739 = vmatprep.subr.mxu0 %v2798
      %3740 = vmatpush1.msra.mxu0 %v2797
      %3741 = vmatprep.subr.mxu0 0.0
      %3742 = vmatpush2.msra.mxu0 0.0
      %3743 = vmatprep.subr.mxu0 0.0
      %3744 = vmatpush2.msra.mxu0 0.0
      %3745 = vmatprep.subr.mxu0 0.0
      %3746 = vmatpush2.msra.mxu0 0.0
      %3747 = vmatprep.subr.mxu0 0.0
      %3748 = vmatpush2.msra.mxu0 0.0
      %3749 = vmatprep.subr.mxu0 0.0
      %3750 = vmatpush2.msra.mxu0 0.0
      %3751 = vmatprep.subr.mxu0 0.0
      %3752 = vmatpush2.msra.mxu0 0.0
      %3753 = vmatprep.subr.mxu0 0.0
      %3754 = vmatpush2.msra.mxu0 0.0
      %3755 = vmatprep.subr.mxu0 0.0
      %3756 = vmatpush2.msra.mxu0 0.0
      %3757 = vmatprep.subr.mxu0 0.0
      %3758 = vmatpush2.msra.mxu0 0.0
      %3759 = vmatprep.subr.mxu0 0.0
      %3760 = vmatpush2.msra.mxu0 0.0
      %3761 = vmatprep.subr.mxu0 0.0
      %3762 = vmatpush2.msra.mxu0 0.0
      %3763 = vmatprep.subr.mxu0 0.0
      %3764 = vmatpush2.msra.mxu0 0.0
      %3765 = vmatprep.subr.mxu0 0.0
      %3766 = vmatpush2.msra.mxu0 0.0
      %3767 = vmatprep.subr.mxu0 0.0
      %3768 = vmatpush2.msra.mxu0 0.0
      %3769 = vmatprep.subr.mxu0 0.0
      %3770 = vmatpush2.msra.mxu0 0.0
      %3771 = vmatprep.subr.mxu0 0.0
      %3772 = vmatpush2.msra.mxu0 0.0
      %3773 = vmatprep.mubr.f32.mxu0 0.0
      %3774 = vmatmul.mubr.f32.gmra.mxu0 %v3431
      %v3775 = vpop.f32.mrf.mxu0
      %v3776 = vadd.f32 %v3234, %v3775
      %v3777 = vpop.f32.mrf.mxu0
      %v3778 = vadd.f32 %v3236, %v3777
      %3779 = vmatprep.mubr.f32.mxu0 0.0
      %3780 = vmatmul.mubr.f32.gmra.mxu0 %v3434
      %v3781 = vpop.f32.mrf.mxu0
      %v3782 = vadd.f32 %v3240, %v3781
      %v3783 = vpop.f32.mrf.mxu0
      %v3784 = vadd.f32 %v3242, %v3783
      %3785 = vmatprep.mubr.f32.mxu0 0.0
      %3786 = vmatmul.mubr.f32.gmra.mxu0 %v3437
      %v3787 = vpop.f32.mrf.mxu0
      %v3788 = vadd.f32 %v3246, %v3787
      %v3789 = vpop.f32.mrf.mxu0
      %v3790 = vadd.f32 %v3248, %v3789
      %3791 = vmatprep.mubr.f32.mxu0 0.0
      %3792 = vmatmul.mubr.f32.gmra.mxu0 %v3440
      %v3793 = vpop.f32.mrf.mxu0
      %v3794 = vadd.f32 %v3252, %v3793
      %v3795 = vpop.f32.mrf.mxu0
      %v3796 = vadd.f32 %v3254, %v3795
      %3797 = vdwg.mxu0
      %3798 = vmatprep.subr.mxu0 0.0
      %3799 = vmatpush1.msra.mxu0 0.0
      %3800 = vmatprep.subr.mxu0 0.0
      %3801 = vmatpush1.msra.mxu0 0.0
      %3802 = vmatprep.subr.mxu0 0.0
      %3803 = vmatpush1.msra.mxu0 0.0
      %3804 = vmatprep.subr.mxu0 0.0
      %3805 = vmatpush1.msra.mxu0 0.0
      %3806 = vmatprep.subr.mxu0 0.0
      %3807 = vmatpush1.msra.mxu0 0.0
      %3808 = vmatprep.subr.mxu0 0.0
      %3809 = vmatpush1.msra.mxu0 0.0
      %3810 = vmatprep.subr.mxu0 0.0
      %3811 = vmatpush1.msra.mxu0 0.0
      %3812 = vmatprep.subr.mxu0 0.0
      %3813 = vmatpush1.msra.mxu0 0.0
      %3814 = vmatprep.subr.mxu0 0.0
      %3815 = vmatpush1.msra.mxu0 0.0
      %3816 = vmatprep.subr.mxu0 0.0
      %3817 = vmatpush1.msra.mxu0 0.0
      %3818 = vmatprep.subr.mxu0 0.0
      %3819 = vmatpush1.msra.mxu0 0.0
      %3820 = vmatprep.subr.mxu0 0.0
      %3821 = vmatpush1.msra.mxu0 0.0
      %3822 = vmatprep.subr.mxu0 %v2866
      %3823 = vmatpush1.msra.mxu0 %v2865
      %3824 = vmatprep.subr.mxu0 %v2844
      %3825 = vmatpush1.msra.mxu0 %v2843
      %3826 = vmatprep.subr.mxu0 %v2822
      %3827 = vmatpush1.msra.mxu0 %v2821
      %3828 = vmatprep.subr.mxu0 %v2800
      %3829 = vmatpush1.msra.mxu0 %v2799
      %3830 = vmatprep.subr.mxu0 0.0
      %3831 = vmatpush2.msra.mxu0 0.0
      %3832 = vmatprep.subr.mxu0 0.0
      %3833 = vmatpush2.msra.mxu0 0.0
      %3834 = vmatprep.subr.mxu0 0.0
      %3835 = vmatpush2.msra.mxu0 0.0
      %3836 = vmatprep.subr.mxu0 0.0
      %3837 = vmatpush2.msra.mxu0 0.0
      %3838 = vmatprep.subr.mxu0 0.0
      %3839 = vmatpush2.msra.mxu0 0.0
      %3840 = vmatprep.subr.mxu0 0.0
      %3841 = vmatpush2.msra.mxu0 0.0
      %3842 = vmatprep.subr.mxu0 0.0
      %3843 = vmatpush2.msra.mxu0 0.0
      %3844 = vmatprep.subr.mxu0 0.0
      %3845 = vmatpush2.msra.mxu0 0.0
      %3846 = vmatprep.subr.mxu0 0.0
      %3847 = vmatpush2.msra.mxu0 0.0
      %3848 = vmatprep.subr.mxu0 0.0
      %3849 = vmatpush2.msra.mxu0 0.0
      %3850 = vmatprep.subr.mxu0 0.0
      %3851 = vmatpush2.msra.mxu0 0.0
      %3852 = vmatprep.subr.mxu0 0.0
      %3853 = vmatpush2.msra.mxu0 0.0
      %3854 = vmatprep.subr.mxu0 0.0
      %3855 = vmatpush2.msra.mxu0 0.0
      %3856 = vmatprep.subr.mxu0 0.0
      %3857 = vmatpush2.msra.mxu0 0.0
      %3858 = vmatprep.subr.mxu0 0.0
      %3859 = vmatpush2.msra.mxu0 0.0
      %3860 = vmatprep.subr.mxu0 0.0
      %3861 = vmatpush2.msra.mxu0 0.0
      %3862 = vmatprep.mubr.f32.mxu0 0.0
      %3863 = vmatmul.mubr.f32.gmra.mxu0 %v3431
      %v3864 = vpop.f32.mrf.mxu0
      %v3865 = vadd.f32 %v3323, %v3864
      %v3866 = vpop.f32.mrf.mxu0
      %v3867 = vadd.f32 %v3325, %v3866
      %3868 = vmatprep.mubr.f32.mxu0 0.0
      %3869 = vmatmul.mubr.f32.gmra.mxu0 %v3434
      %v3870 = vpop.f32.mrf.mxu0
      %v3871 = vadd.f32 %v3329, %v3870
      %v3872 = vpop.f32.mrf.mxu0
      %v3873 = vadd.f32 %v3331, %v3872
      %3874 = vmatprep.mubr.f32.mxu0 0.0
      %3875 = vmatmul.mubr.f32.gmra.mxu0 %v3437
      %v3876 = vpop.f32.mrf.mxu0
      %v3877 = vadd.f32 %v3335, %v3876
      %v3878 = vpop.f32.mrf.mxu0
      %v3879 = vadd.f32 %v3337, %v3878
      %3880 = vmatprep.mubr.f32.mxu0 0.0
      %3881 = vmatmul.mubr.f32.gmra.mxu0 %v3440
      %v3882 = vpop.f32.mrf.mxu0
      %v3883 = vadd.f32 %v3341, %v3882
      %v3884 = vpop.f32.mrf.mxu0
      %v3885 = vadd.f32 %v3343, %v3884
      %3886 = vdwg.mxu0
      %3887 = vmatprep.subr.mxu0 0.0
      %3888 = vmatpush1.msra.mxu0 0.0
      %3889 = vmatprep.subr.mxu0 0.0
      %3890 = vmatpush1.msra.mxu0 0.0
      %3891 = vmatprep.subr.mxu0 0.0
      %3892 = vmatpush1.msra.mxu0 0.0
      %3893 = vmatprep.subr.mxu0 0.0
      %3894 = vmatpush1.msra.mxu0 0.0
      %3895 = vmatprep.subr.mxu0 0.0
      %3896 = vmatpush1.msra.mxu0 0.0
      %3897 = vmatprep.subr.mxu0 0.0
      %3898 = vmatpush1.msra.mxu0 0.0
      %3899 = vmatprep.subr.mxu0 0.0
      %3900 = vmatpush1.msra.mxu0 0.0
      %3901 = vmatprep.subr.mxu0 0.0
      %3902 = vmatpush1.msra.mxu0 0.0
      %3903 = vmatprep.subr.mxu0 0.0
      %3904 = vmatpush1.msra.mxu0 0.0
      %3905 = vmatprep.subr.mxu0 0.0
      %3906 = vmatpush1.msra.mxu0 0.0
      %3907 = vmatprep.subr.mxu0 0.0
      %3908 = vmatpush1.msra.mxu0 0.0
      %3909 = vmatprep.subr.mxu0 0.0
      %3910 = vmatpush1.msra.mxu0 0.0
      %3911 = vmatprep.subr.mxu0 0.0
      %3912 = vmatpush1.msra.mxu0 %v2867
      %3913 = vmatprep.subr.mxu0 0.0
      %3914 = vmatpush1.msra.mxu0 %v2845
      %3915 = vmatprep.subr.mxu0 0.0
      %3916 = vmatpush1.msra.mxu0 %v2823
      %3917 = vmatprep.subr.mxu0 0.0
      %3918 = vmatpush1.msra.mxu0 %v2801
      %3919 = vmatprep.subr.mxu0 0.0
      %3920 = vmatpush2.msra.mxu0 0.0
      %3921 = vmatprep.subr.mxu0 0.0
      %3922 = vmatpush2.msra.mxu0 0.0
      %3923 = vmatprep.subr.mxu0 0.0
      %3924 = vmatpush2.msra.mxu0 0.0
      %3925 = vmatprep.subr.mxu0 0.0
      %3926 = vmatpush2.msra.mxu0 0.0
      %3927 = vmatprep.subr.mxu0 0.0
      %3928 = vmatpush2.msra.mxu0 0.0
      %3929 = vmatprep.subr.mxu0 0.0
      %3930 = vmatpush2.msra.mxu0 0.0
      %3931 = vmatprep.subr.mxu0 0.0
      %3932 = vmatpush2.msra.mxu0 0.0
      %3933 = vmatprep.subr.mxu0 0.0
      %3934 = vmatpush2.msra.mxu0 0.0
      %3935 = vmatprep.subr.mxu0 0.0
      %3936 = vmatpush2.msra.mxu0 0.0
      %3937 = vmatprep.subr.mxu0 0.0
      %3938 = vmatpush2.msra.mxu0 0.0
      %3939 = vmatprep.subr.mxu0 0.0
      %3940 = vmatpush2.msra.mxu0 0.0
      %3941 = vmatprep.subr.mxu0 0.0
      %3942 = vmatpush2.msra.mxu0 0.0
      %3943 = vmatprep.subr.mxu0 0.0
      %3944 = vmatpush2.msra.mxu0 0.0
      %3945 = vmatprep.subr.mxu0 0.0
      %3946 = vmatpush2.msra.mxu0 0.0
      %3947 = vmatprep.subr.mxu0 0.0
      %3948 = vmatpush2.msra.mxu0 0.0
      %3949 = vmatprep.subr.mxu0 0.0
      %3950 = vmatpush2.msra.mxu0 0.0
      %3951 = vmatprep.mubr.f32.mxu0 0.0
      %3952 = vmatmul.mubr.f32.gmra.mxu0 %v3431
      %v3953 = vpop.f32.mrf.mxu0
      %v3954 = vadd.f32 %v3412, %v3953
      %v3955 = vpop.f32.mrf.mxu0
      %3956 = vmatprep.mubr.f32.mxu0 0.0
      %3957 = vmatmul.mubr.f32.gmra.mxu0 %v3434
      %v3958 = vpop.f32.mrf.mxu0
      %v3959 = vadd.f32 %v3417, %v3958
      %v3960 = vpop.f32.mrf.mxu0
      %3961 = vmatprep.mubr.f32.mxu0 0.0
      %3962 = vmatmul.mubr.f32.gmra.mxu0 %v3437
      %v3963 = vpop.f32.mrf.mxu0
      %v3964 = vadd.f32 %v3422, %v3963
      %v3965 = vpop.f32.mrf.mxu0
      %3966 = vmatprep.mubr.f32.mxu0 0.0
      %3967 = vmatmul.mubr.f32.gmra.mxu0 %v3440
      %v3968 = vpop.f32.mrf.mxu0
      %v3969 = vadd.f32 %v3427, %v3968
      %v3970 = vpop.f32.mrf.mxu0
      %3971 = vdwg.mxu0
      %v3972 = vld [vmem:[%s6] sm:$0xff]
      %v3973 = vld [vmem:[%s6 + $0x8] sm:$0xff]
      %v3974 = vld [vmem:[%s6 + $0x10] sm:$0xff]
      %v3975 = vld [vmem:[%s6 + $0x18] sm:$0xff]
      %3977 = vset.pattern.permute.xlu0 0
      %3978 = vperm.xlu0 %3977, %v3972
      %v3979 = vpop.permute.xlu0 %3978
      %3982 = vset.pattern.permute.xlu0 0
      %3983 = vperm.xlu0 %3982, %v3973
      %v3984 = vpop.permute.xlu0 %3983
      %3987 = vset.pattern.permute.xlu0 0
      %3988 = vperm.xlu0 %3987, %v3974
      %v3989 = vpop.permute.xlu0 %3988
      %3992 = vset.pattern.permute.xlu0 0
      %3993 = vperm.xlu0 %3992, %v3975
      %v3994 = vpop.permute.xlu0 %3993
      %v3996 = vadd.f32 %v3509, %v3979
      %v3997 = vadd.f32 %v3511, %v3979
      %v3998 = vadd.f32 %v3598, %v3979
      %v3999 = vadd.f32 %v3600, %v3979
      %v4000 = vadd.f32 %v3687, %v3979
      %v4001 = vadd.f32 %v3689, %v3979
      %v4002 = vadd.f32 %v3776, %v3979
      %v4003 = vadd.f32 %v3778, %v3979
      %v4004 = vadd.f32 %v3865, %v3979
      %v4005 = vadd.f32 %v3867, %v3979
      %v4006 = vadd.f32 %v3954, %v3979
      %v4007 = vadd.f32 %v3515, %v3984
      %v4008 = vadd.f32 %v3517, %v3984
      %v4009 = vadd.f32 %v3604, %v3984
      %v4010 = vadd.f32 %v3606, %v3984
      %v4011 = vadd.f32 %v3693, %v3984
      %v4012 = vadd.f32 %v3695, %v3984
      %v4013 = vadd.f32 %v3782, %v3984
      %v4014 = vadd.f32 %v3784, %v3984
      %v4015 = vadd.f32 %v3871, %v3984
      %v4016 = vadd.f32 %v3873, %v3984
      %v4017 = vadd.f32 %v3959, %v3984
      %v4018 = vadd.f32 %v3521, %v3989
      %v4019 = vadd.f32 %v3523, %v3989
      %v4020 = vadd.f32 %v3610, %v3989
      %v4021 = vadd.f32 %v3612, %v3989
      %v4022 = vadd.f32 %v3699, %v3989
      %v4023 = vadd.f32 %v3701, %v3989
      %v4024 = vadd.f32 %v3788, %v3989
      %v4025 = vadd.f32 %v3790, %v3989
      %v4026 = vadd.f32 %v3877, %v3989
      %v4027 = vadd.f32 %v3879, %v3989
      %v4028 = vadd.f32 %v3964, %v3989
      %v4029 = vadd.f32 %v3527, %v3994
      %v4030 = vadd.f32 %v3529, %v3994
      %v4031 = vadd.f32 %v3616, %v3994
      %v4032 = vadd.f32 %v3618, %v3994
      %v4033 = vadd.f32 %v3705, %v3994
      %v4034 = vadd.f32 %v3707, %v3994
      %v4035 = vadd.f32 %v3794, %v3994
      %v4036 = vadd.f32 %v3796, %v3994
      %v4037 = vadd.f32 %v3883, %v3994
      %v4038 = vadd.f32 %v3885, %v3994
      %v4039 = vadd.f32 %v3969, %v3994
      %v4040 = vmax.f32 %v3996, 0.0
      %v4041 = vmax.f32 %v3997, 0.0
      %v4042 = vmax.f32 %v3998, 0.0
      %v4043 = vmax.f32 %v3999, 0.0
      %v4044 = vmax.f32 %v4000, 0.0
      %v4045 = vmax.f32 %v4001, 0.0
      %v4046 = vmax.f32 %v4002, 0.0
      %v4047 = vmax.f32 %v4003, 0.0
      %v4048 = vmax.f32 %v4004, 0.0
      %v4049 = vmax.f32 %v4005, 0.0
      %v4050 = vmax.f32 %v4006, 0.0
      %v4051 = vmax.f32 %v4007, 0.0
      %v4052 = vmax.f32 %v4008, 0.0
      %v4053 = vmax.f32 %v4009, 0.0
      %v4054 = vmax.f32 %v4010, 0.0
      %v4055 = vmax.f32 %v4011, 0.0
      %v4056 = vmax.f32 %v4012, 0.0
      %v4057 = vmax.f32 %v4013, 0.0
      %v4058 = vmax.f32 %v4014, 0.0
      %v4059 = vmax.f32 %v4015, 0.0
      %v4060 = vmax.f32 %v4016, 0.0
      %v4061 = vmax.f32 %v4017, 0.0
      %v4062 = vmax.f32 %v4018, 0.0
      %v4063 = vmax.f32 %v4019, 0.0
      %v4064 = vmax.f32 %v4020, 0.0
      %v4065 = vmax.f32 %v4021, 0.0
      %v4066 = vmax.f32 %v4022, 0.0
      %v4067 = vmax.f32 %v4023, 0.0
      %v4068 = vmax.f32 %v4024, 0.0
      %v4069 = vmax.f32 %v4025, 0.0
      %v4070 = vmax.f32 %v4026, 0.0
      %v4071 = vmax.f32 %v4027, 0.0
      %v4072 = vmax.f32 %v4028, 0.0
      %v4073 = vmax.f32 %v4029, 0.0
      %v4074 = vmax.f32 %v4030, 0.0
      %v4075 = vmax.f32 %v4031, 0.0
      %v4076 = vmax.f32 %v4032, 0.0
      %v4077 = vmax.f32 %v4033, 0.0
      %v4078 = vmax.f32 %v4034, 0.0
      %v4079 = vmax.f32 %v4035, 0.0
      %v4080 = vmax.f32 %v4036, 0.0
      %v4081 = vmax.f32 %v4037, 0.0
      %v4082 = vmax.f32 %v4038, 0.0
      %v4083 = vmax.f32 %v4039, 0.0
      %s4084 = scalar_lea.vmem %s4, 32
      %v4085 = vld [vmem:[%s4084] sm:$0xff]
      %v4086 = vld [vmem:[%s4084 + $0x8] sm:$0xff]
      %v4087 = vld [vmem:[%s4084 + $0x10] sm:$0xff]
      %v4088 = vld [vmem:[%s4084 + $0x18] sm:$0xff]
      %s4089 = scalar_lea.vmem %s5, 32
      %v4090 = vld [vmem:[%s4089] sm:$0xff]
      %v4091 = vld [vmem:[%s4089 + $0x8] sm:$0xff]
      %v4092 = vld [vmem:[%s4089 + $0x10] sm:$0xff]
      %v4093 = vld [vmem:[%s4089 + $0x18] sm:$0xff]
      %4118 = vrot.lane.b32.xlu0 %v4045, 64
      %v4119 = vpop.permute.xlu0 %4118
      %4120 = vrot.lane.b32.xlu0 %v4046, 64
      %v4121 = vpop.permute.xlu0 %4120
      %4122 = vrot.lane.b32.xlu0 %v4047, 64
      %v4123 = vpop.permute.xlu0 %4122
      %4124 = vrot.lane.b32.xlu0 %v4048, 64
      %v4125 = vpop.permute.xlu0 %4124
      %4126 = vrot.lane.b32.xlu0 %v4049, 64
      %v4127 = vpop.permute.xlu0 %4126
      %4128 = vrot.lane.b32.xlu0 %v4050, 64
      %v4129 = vpop.permute.xlu0 %4128
      %4130 = vrot.lane.b32.xlu0 %v4056, 64
      %v4131 = vpop.permute.xlu0 %4130
      %4132 = vrot.lane.b32.xlu0 %v4057, 64
      %v4133 = vpop.permute.xlu0 %4132
      %4134 = vrot.lane.b32.xlu0 %v4058, 64
      %v4135 = vpop.permute.xlu0 %4134
      %4136 = vrot.lane.b32.xlu0 %v4059, 64
      %v4137 = vpop.permute.xlu0 %4136
      %4138 = vrot.lane.b32.xlu0 %v4060, 64
      %v4139 = vpop.permute.xlu0 %4138
      %4140 = vrot.lane.b32.xlu0 %v4061, 64
      %v4141 = vpop.permute.xlu0 %4140
      %4142 = vrot.lane.b32.xlu0 %v4067, 64
      %v4143 = vpop.permute.xlu0 %4142
      %4144 = vrot.lane.b32.xlu0 %v4068, 64
      %v4145 = vpop.permute.xlu0 %4144
      %4146 = vrot.lane.b32.xlu0 %v4069, 64
      %v4147 = vpop.permute.xlu0 %4146
      %4148 = vrot.lane.b32.xlu0 %v4070, 64
      %v4149 = vpop.permute.xlu0 %4148
      %4150 = vrot.lane.b32.xlu0 %v4071, 64
      %v4151 = vpop.permute.xlu0 %4150
      %4152 = vrot.lane.b32.xlu0 %v4072, 64
      %v4153 = vpop.permute.xlu0 %4152
      %4154 = vrot.lane.b32.xlu0 %v4078, 64
      %v4155 = vpop.permute.xlu0 %4154
      %4156 = vrot.lane.b32.xlu0 %v4079, 64
      %v4157 = vpop.permute.xlu0 %4156
      %4158 = vrot.lane.b32.xlu0 %v4080, 64
      %v4159 = vpop.permute.xlu0 %4158
      %4160 = vrot.lane.b32.xlu0 %v4081, 64
      %v4161 = vpop.permute.xlu0 %4160
      %4162 = vrot.lane.b32.xlu0 %v4082, 64
      %v4163 = vpop.permute.xlu0 %4162
      %4164 = vrot.lane.b32.xlu0 %v4083, 64
      %v4165 = vpop.permute.xlu0 %4164
      %vm4166 = vcmask 523264
      %v4167 = vsel %vm4166, %v4119, %v4121
      %v4168 = vsel %vm4166, %v4121, %v4123
      %v4169 = vsel %vm4166, %v4123, %v4125
      %v4170 = vsel %vm4166, %v4125, %v4127
      %v4171 = vsel %vm4166, %v4127, %v4129
      %v4172 = vsel %vm4166, %v4131, %v4133
      %v4173 = vsel %vm4166, %v4133, %v4135
      %v4174 = vsel %vm4166, %v4135, %v4137
      %v4175 = vsel %vm4166, %v4137, %v4139
      %v4176 = vsel %vm4166, %v4139, %v4141
      %v4177 = vsel %vm4166, %v4143, %v4145
      %v4178 = vsel %vm4166, %v4145, %v4147
      %v4179 = vsel %vm4166, %v4147, %v4149
      %v4180 = vsel %vm4166, %v4149, %v4151
      %v4181 = vsel %vm4166, %v4151, %v4153
      %v4182 = vsel %vm4166, %v4155, %v4157
      %v4183 = vsel %vm4166, %v4157, %v4159
      %v4184 = vsel %vm4166, %v4159, %v4161
      %v4185 = vsel %vm4166, %v4161, %v4163
      %v4186 = vsel %vm4166, %v4163, %v4165
      %v4212 = vsel %vm2887, %v4090, 0
      %v4215 = vsel %vm2887, %v4091, 0
      %v4218 = vsel %vm2887, %v4092, 0
      %v4221 = vsel %vm2887, %v4093, 0
      %4223 = vmatprep.subr.mxu0 0.0
      %4224 = vmatpush1.msra.mxu0 0.0
      %4225 = vmatprep.subr.mxu0 0.0
      %4226 = vmatpush1.msra.mxu0 0.0
      %4227 = vmatprep.subr.mxu0 0.0
      %4228 = vmatpush1.msra.mxu0 0.0
      %4229 = vmatprep.subr.mxu0 0.0
      %4230 = vmatpush1.msra.mxu0 0.0
      %4231 = vmatprep.subr.mxu0 0.0
      %4232 = vmatpush1.msra.mxu0 0.0
      %4233 = vmatprep.subr.mxu0 0.0
      %4234 = vmatpush1.msra.mxu0 0.0
      %4235 = vmatprep.subr.mxu0 0.0
      %4236 = vmatpush1.msra.mxu0 0.0
      %4237 = vmatprep.subr.mxu0 0.0
      %4238 = vmatpush1.msra.mxu0 0.0
      %4239 = vmatprep.subr.mxu0 0.0
      %4240 = vmatpush1.msra.mxu0 0.0
      %4241 = vmatprep.subr.mxu0 0.0
      %4242 = vmatpush1.msra.mxu0 0.0
      %4243 = vmatprep.subr.mxu0 0.0
      %4244 = vmatpush1.msra.mxu0 0.0
      %4245 = vmatprep.subr.mxu0 0.0
      %4246 = vmatpush1.msra.mxu0 0.0
      %4247 = vmatprep.subr.mxu0 %v4183
      %4248 = vmatpush1.msra.mxu0 %v4182
      %4249 = vmatprep.subr.mxu0 %v4178
      %4250 = vmatpush1.msra.mxu0 %v4177
      %4251 = vmatprep.subr.mxu0 %v4173
      %4252 = vmatpush1.msra.mxu0 %v4172
      %4253 = vmatprep.subr.mxu0 %v4168
      %4254 = vmatpush1.msra.mxu0 %v4167
      %4255 = vmatprep.subr.mxu0 0.0
      %4256 = vmatpush2.msra.mxu0 0.0
      %4257 = vmatprep.subr.mxu0 0.0
      %4258 = vmatpush2.msra.mxu0 0.0
      %4259 = vmatprep.subr.mxu0 0.0
      %4260 = vmatpush2.msra.mxu0 0.0
      %4261 = vmatprep.subr.mxu0 0.0
      %4262 = vmatpush2.msra.mxu0 0.0
      %4263 = vmatprep.subr.mxu0 0.0
      %4264 = vmatpush2.msra.mxu0 0.0
      %4265 = vmatprep.subr.mxu0 0.0
      %4266 = vmatpush2.msra.mxu0 0.0
      %4267 = vmatprep.subr.mxu0 0.0
      %4268 = vmatpush2.msra.mxu0 0.0
      %4269 = vmatprep.subr.mxu0 0.0
      %4270 = vmatpush2.msra.mxu0 0.0
      %4271 = vmatprep.subr.mxu0 0.0
      %4272 = vmatpush2.msra.mxu0 0.0
      %4273 = vmatprep.subr.mxu0 0.0
      %4274 = vmatpush2.msra.mxu0 0.0
      %4275 = vmatprep.subr.mxu0 0.0
      %4276 = vmatpush2.msra.mxu0 0.0
      %4277 = vmatprep.subr.mxu0 0.0
      %4278 = vmatpush2.msra.mxu0 0.0
      %4279 = vmatprep.subr.mxu0 0.0
      %4280 = vmatpush2.msra.mxu0 0.0
      %4281 = vmatprep.subr.mxu0 0.0
      %4282 = vmatpush2.msra.mxu0 0.0
      %4283 = vmatprep.subr.mxu0 0.0
      %4284 = vmatpush2.msra.mxu0 0.0
      %4285 = vmatprep.subr.mxu0 0.0
      %4286 = vmatpush2.msra.mxu0 0.0
      %4287 = vmatprep.mubr.f32.mxu0 0.0
      %4288 = vmatmul.mubr.f32.gmra.mxu0 %v4212
      %v4289 = vpop.f32.mrf.mxu0
      %v4290 = vadd.f32 0.0, %v4289
      %v4291 = vpop.f32.mrf.mxu0
      %v4292 = vadd.f32 0.0, %v4291
      %4293 = vmatprep.mubr.f32.mxu0 0.0
      %4294 = vmatmul.mubr.f32.gmra.mxu0 %v4215
      %v4295 = vpop.f32.mrf.mxu0
      %v4296 = vadd.f32 0.0, %v4295
      %v4297 = vpop.f32.mrf.mxu0
      %v4298 = vadd.f32 0.0, %v4297
      %4299 = vmatprep.mubr.f32.mxu0 0.0
      %4300 = vmatmul.mubr.f32.gmra.mxu0 %v4218
      %v4301 = vpop.f32.mrf.mxu0
      %v4302 = vadd.f32 0.0, %v4301
      %v4303 = vpop.f32.mrf.mxu0
      %v4304 = vadd.f32 0.0, %v4303
      %4305 = vmatprep.mubr.f32.mxu0 0.0
      %4306 = vmatmul.mubr.f32.gmra.mxu0 %v4221
      %v4307 = vpop.f32.mrf.mxu0
      %v4308 = vadd.f32 0.0, %v4307
      %v4309 = vpop.f32.mrf.mxu0
      %v4310 = vadd.f32 0.0, %v4309
      %4311 = vdwg.mxu0
      %4312 = vmatprep.subr.mxu0 0.0
      %4313 = vmatpush1.msra.mxu0 0.0
      %4314 = vmatprep.subr.mxu0 0.0
      %4315 = vmatpush1.msra.mxu0 0.0
      %4316 = vmatprep.subr.mxu0 0.0
      %4317 = vmatpush1.msra.mxu0 0.0
      %4318 = vmatprep.subr.mxu0 0.0
      %4319 = vmatpush1.msra.mxu0 0.0
      %4320 = vmatprep.subr.mxu0 0.0
      %4321 = vmatpush1.msra.mxu0 0.0
      %4322 = vmatprep.subr.mxu0 0.0
      %4323 = vmatpush1.msra.mxu0 0.0
      %4324 = vmatprep.subr.mxu0 0.0
      %4325 = vmatpush1.msra.mxu0 0.0
      %4326 = vmatprep.subr.mxu0 0.0
      %4327 = vmatpush1.msra.mxu0 0.0
      %4328 = vmatprep.subr.mxu0 0.0
      %4329 = vmatpush1.msra.mxu0 0.0
      %4330 = vmatprep.subr.mxu0 0.0
      %4331 = vmatpush1.msra.mxu0 0.0
      %4332 = vmatprep.subr.mxu0 0.0
      %4333 = vmatpush1.msra.mxu0 0.0
      %4334 = vmatprep.subr.mxu0 0.0
      %4335 = vmatpush1.msra.mxu0 0.0
      %4336 = vmatprep.subr.mxu0 %v4185
      %4337 = vmatpush1.msra.mxu0 %v4184
      %4338 = vmatprep.subr.mxu0 %v4180
      %4339 = vmatpush1.msra.mxu0 %v4179
      %4340 = vmatprep.subr.mxu0 %v4175
      %4341 = vmatpush1.msra.mxu0 %v4174
      %4342 = vmatprep.subr.mxu0 %v4170
      %4343 = vmatpush1.msra.mxu0 %v4169
      %4344 = vmatprep.subr.mxu0 0.0
      %4345 = vmatpush2.msra.mxu0 0.0
      %4346 = vmatprep.subr.mxu0 0.0
      %4347 = vmatpush2.msra.mxu0 0.0
      %4348 = vmatprep.subr.mxu0 0.0
      %4349 = vmatpush2.msra.mxu0 0.0
      %4350 = vmatprep.subr.mxu0 0.0
      %4351 = vmatpush2.msra.mxu0 0.0
      %4352 = vmatprep.subr.mxu0 0.0
      %4353 = vmatpush2.msra.mxu0 0.0
      %4354 = vmatprep.subr.mxu0 0.0
      %4355 = vmatpush2.msra.mxu0 0.0
      %4356 = vmatprep.subr.mxu0 0.0
      %4357 = vmatpush2.msra.mxu0 0.0
      %4358 = vmatprep.subr.mxu0 0.0
      %4359 = vmatpush2.msra.mxu0 0.0
      %4360 = vmatprep.subr.mxu0 0.0
      %4361 = vmatpush2.msra.mxu0 0.0
      %4362 = vmatprep.subr.mxu0 0.0
      %4363 = vmatpush2.msra.mxu0 0.0
      %4364 = vmatprep.subr.mxu0 0.0
      %4365 = vmatpush2.msra.mxu0 0.0
      %4366 = vmatprep.subr.mxu0 0.0
      %4367 = vmatpush2.msra.mxu0 0.0
      %4368 = vmatprep.subr.mxu0 0.0
      %4369 = vmatpush2.msra.mxu0 0.0
      %4370 = vmatprep.subr.mxu0 0.0
      %4371 = vmatpush2.msra.mxu0 0.0
      %4372 = vmatprep.subr.mxu0 0.0
      %4373 = vmatpush2.msra.mxu0 0.0
      %4374 = vmatprep.subr.mxu0 0.0
      %4375 = vmatpush2.msra.mxu0 0.0
      %4376 = vmatprep.mubr.f32.mxu0 0.0
      %4377 = vmatmul.mubr.f32.gmra.mxu0 %v4212
      %v4378 = vpop.f32.mrf.mxu0
      %v4379 = vadd.f32 0.0, %v4378
      %v4380 = vpop.f32.mrf.mxu0
      %v4381 = vadd.f32 0.0, %v4380
      %4382 = vmatprep.mubr.f32.mxu0 0.0
      %4383 = vmatmul.mubr.f32.gmra.mxu0 %v4215
      %v4384 = vpop.f32.mrf.mxu0
      %v4385 = vadd.f32 0.0, %v4384
      %v4386 = vpop.f32.mrf.mxu0
      %v4387 = vadd.f32 0.0, %v4386
      %4388 = vmatprep.mubr.f32.mxu0 0.0
      %4389 = vmatmul.mubr.f32.gmra.mxu0 %v4218
      %v4390 = vpop.f32.mrf.mxu0
      %v4391 = vadd.f32 0.0, %v4390
      %v4392 = vpop.f32.mrf.mxu0
      %v4393 = vadd.f32 0.0, %v4392
      %4394 = vmatprep.mubr.f32.mxu0 0.0
      %4395 = vmatmul.mubr.f32.gmra.mxu0 %v4221
      %v4396 = vpop.f32.mrf.mxu0
      %v4397 = vadd.f32 0.0, %v4396
      %v4398 = vpop.f32.mrf.mxu0
      %v4399 = vadd.f32 0.0, %v4398
      %4400 = vdwg.mxu0
      %4401 = vmatprep.subr.mxu0 0.0
      %4402 = vmatpush1.msra.mxu0 0.0
      %4403 = vmatprep.subr.mxu0 0.0
      %4404 = vmatpush1.msra.mxu0 0.0
      %4405 = vmatprep.subr.mxu0 0.0
      %4406 = vmatpush1.msra.mxu0 0.0
      %4407 = vmatprep.subr.mxu0 0.0
      %4408 = vmatpush1.msra.mxu0 0.0
      %4409 = vmatprep.subr.mxu0 0.0
      %4410 = vmatpush1.msra.mxu0 0.0
      %4411 = vmatprep.subr.mxu0 0.0
      %4412 = vmatpush1.msra.mxu0 0.0
      %4413 = vmatprep.subr.mxu0 0.0
      %4414 = vmatpush1.msra.mxu0 0.0
      %4415 = vmatprep.subr.mxu0 0.0
      %4416 = vmatpush1.msra.mxu0 0.0
      %4417 = vmatprep.subr.mxu0 0.0
      %4418 = vmatpush1.msra.mxu0 0.0
      %4419 = vmatprep.subr.mxu0 0.0
      %4420 = vmatpush1.msra.mxu0 0.0
      %4421 = vmatprep.subr.mxu0 0.0
      %4422 = vmatpush1.msra.mxu0 0.0
      %4423 = vmatprep.subr.mxu0 0.0
      %4424 = vmatpush1.msra.mxu0 0.0
      %4425 = vmatprep.subr.mxu0 %v4165
      %4426 = vmatpush1.msra.mxu0 %v4186
      %4427 = vmatprep.subr.mxu0 %v4153
      %4428 = vmatpush1.msra.mxu0 %v4181
      %4429 = vmatprep.subr.mxu0 %v4141
      %4430 = vmatpush1.msra.mxu0 %v4176
      %4431 = vmatprep.subr.mxu0 %v4129
      %4432 = vmatpush1.msra.mxu0 %v4171
      %4433 = vmatprep.subr.mxu0 0.0
      %4434 = vmatpush2.msra.mxu0 0.0
      %4435 = vmatprep.subr.mxu0 0.0
      %4436 = vmatpush2.msra.mxu0 0.0
      %4437 = vmatprep.subr.mxu0 0.0
      %4438 = vmatpush2.msra.mxu0 0.0
      %4439 = vmatprep.subr.mxu0 0.0
      %4440 = vmatpush2.msra.mxu0 0.0
      %4441 = vmatprep.subr.mxu0 0.0
      %4442 = vmatpush2.msra.mxu0 0.0
      %4443 = vmatprep.subr.mxu0 0.0
      %4444 = vmatpush2.msra.mxu0 0.0
      %4445 = vmatprep.subr.mxu0 0.0
      %4446 = vmatpush2.msra.mxu0 0.0
      %4447 = vmatprep.subr.mxu0 0.0
      %4448 = vmatpush2.msra.mxu0 0.0
      %4449 = vmatprep.subr.mxu0 0.0
      %4450 = vmatpush2.msra.mxu0 0.0
      %4451 = vmatprep.subr.mxu0 0.0
      %4452 = vmatpush2.msra.mxu0 0.0
      %4453 = vmatprep.subr.mxu0 0.0
      %4454 = vmatpush2.msra.mxu0 0.0
      %4455 = vmatprep.subr.mxu0 0.0
      %4456 = vmatpush2.msra.mxu0 0.0
      %4457 = vmatprep.subr.mxu0 0.0
      %4458 = vmatpush2.msra.mxu0 0.0
      %4459 = vmatprep.subr.mxu0 0.0
      %4460 = vmatpush2.msra.mxu0 0.0
      %4461 = vmatprep.subr.mxu0 0.0
      %4462 = vmatpush2.msra.mxu0 0.0
      %4463 = vmatprep.subr.mxu0 0.0
      %4464 = vmatpush2.msra.mxu0 0.0
      %4465 = vmatprep.mubr.f32.mxu0 0.0
      %4466 = vmatmul.mubr.f32.gmra.mxu0 %v4212
      %v4467 = vpop.f32.mrf.mxu0
      %v4468 = vadd.f32 0.0, %v4467
      %v4469 = vpop.f32.mrf.mxu0
      %v4470 = vadd.f32 0.0, %v4469
      %4471 = vmatprep.mubr.f32.mxu0 0.0
      %4472 = vmatmul.mubr.f32.gmra.mxu0 %v4215
      %v4473 = vpop.f32.mrf.mxu0
      %v4474 = vadd.f32 0.0, %v4473
      %v4475 = vpop.f32.mrf.mxu0
      %v4476 = vadd.f32 0.0, %v4475
      %4477 = vmatprep.mubr.f32.mxu0 0.0
      %4478 = vmatmul.mubr.f32.gmra.mxu0 %v4218
      %v4479 = vpop.f32.mrf.mxu0
      %v4480 = vadd.f32 0.0, %v4479
      %v4481 = vpop.f32.mrf.mxu0
      %v4482 = vadd.f32 0.0, %v4481
      %4483 = vmatprep.mubr.f32.mxu0 0.0
      %4484 = vmatmul.mubr.f32.gmra.mxu0 %v4221
      %v4485 = vpop.f32.mrf.mxu0
      %v4486 = vadd.f32 0.0, %v4485
      %v4487 = vpop.f32.mrf.mxu0
      %v4488 = vadd.f32 0.0, %v4487
      %4489 = vdwg.mxu0
      %v4491 = vsel %vm2887, %v4085, 0
      %v4494 = vsel %vm2887, %v4086, 0
      %v4497 = vsel %vm2887, %v4087, 0
      %v4500 = vsel %vm2887, %v4088, 0
      %4502 = vmatprep.subr.mxu0 0.0
      %4503 = vmatpush1.msra.mxu0 0.0
      %4504 = vmatprep.subr.mxu0 0.0
      %4505 = vmatpush1.msra.mxu0 0.0
      %4506 = vmatprep.subr.mxu0 0.0
      %4507 = vmatpush1.msra.mxu0 0.0
      %4508 = vmatprep.subr.mxu0 0.0
      %4509 = vmatpush1.msra.mxu0 0.0
      %4510 = vmatprep.subr.mxu0 0.0
      %4511 = vmatpush1.msra.mxu0 0.0
      %4512 = vmatprep.subr.mxu0 0.0
      %4513 = vmatpush1.msra.mxu0 0.0
      %4514 = vmatprep.subr.mxu0 0.0
      %4515 = vmatpush1.msra.mxu0 0.0
      %4516 = vmatprep.subr.mxu0 0.0
      %4517 = vmatpush1.msra.mxu0 0.0
      %4518 = vmatprep.subr.mxu0 0.0
      %4519 = vmatpush1.msra.mxu0 0.0
      %4520 = vmatprep.subr.mxu0 0.0
      %4521 = vmatpush1.msra.mxu0 0.0
      %4522 = vmatprep.subr.mxu0 0.0
      %4523 = vmatpush1.msra.mxu0 0.0
      %4524 = vmatprep.subr.mxu0 0.0
      %4525 = vmatpush1.msra.mxu0 0.0
      %4526 = vmatprep.subr.mxu0 %v4074
      %4527 = vmatpush1.msra.mxu0 %v4073
      %4528 = vmatprep.subr.mxu0 %v4063
      %4529 = vmatpush1.msra.mxu0 %v4062
      %4530 = vmatprep.subr.mxu0 %v4052
      %4531 = vmatpush1.msra.mxu0 %v4051
      %4532 = vmatprep.subr.mxu0 %v4041
      %4533 = vmatpush1.msra.mxu0 %v4040
      %4534 = vmatprep.subr.mxu0 0.0
      %4535 = vmatpush2.msra.mxu0 0.0
      %4536 = vmatprep.subr.mxu0 0.0
      %4537 = vmatpush2.msra.mxu0 0.0
      %4538 = vmatprep.subr.mxu0 0.0
      %4539 = vmatpush2.msra.mxu0 0.0
      %4540 = vmatprep.subr.mxu0 0.0
      %4541 = vmatpush2.msra.mxu0 0.0
      %4542 = vmatprep.subr.mxu0 0.0
      %4543 = vmatpush2.msra.mxu0 0.0
      %4544 = vmatprep.subr.mxu0 0.0
      %4545 = vmatpush2.msra.mxu0 0.0
      %4546 = vmatprep.subr.mxu0 0.0
      %4547 = vmatpush2.msra.mxu0 0.0
      %4548 = vmatprep.subr.mxu0 0.0
      %4549 = vmatpush2.msra.mxu0 0.0
      %4550 = vmatprep.subr.mxu0 0.0
      %4551 = vmatpush2.msra.mxu0 0.0
      %4552 = vmatprep.subr.mxu0 0.0
      %4553 = vmatpush2.msra.mxu0 0.0
      %4554 = vmatprep.subr.mxu0 0.0
      %4555 = vmatpush2.msra.mxu0 0.0
      %4556 = vmatprep.subr.mxu0 0.0
      %4557 = vmatpush2.msra.mxu0 0.0
      %4558 = vmatprep.subr.mxu0 0.0
      %4559 = vmatpush2.msra.mxu0 0.0
      %4560 = vmatprep.subr.mxu0 0.0
      %4561 = vmatpush2.msra.mxu0 0.0
      %4562 = vmatprep.subr.mxu0 0.0
      %4563 = vmatpush2.msra.mxu0 0.0
      %4564 = vmatprep.subr.mxu0 0.0
      %4565 = vmatpush2.msra.mxu0 0.0
      %4566 = vmatprep.mubr.f32.mxu0 0.0
      %4567 = vmatmul.mubr.f32.gmra.mxu0 %v4491
      %v4568 = vpop.f32.mrf.mxu0
      %v4569 = vadd.f32 %v4290, %v4568
      %v4570 = vpop.f32.mrf.mxu0
      %v4571 = vadd.f32 %v4292, %v4570
      %4572 = vmatprep.mubr.f32.mxu0 0.0
      %4573 = vmatmul.mubr.f32.gmra.mxu0 %v4494
      %v4574 = vpop.f32.mrf.mxu0
      %v4575 = vadd.f32 %v4296, %v4574
      %v4576 = vpop.f32.mrf.mxu0
      %v4577 = vadd.f32 %v4298, %v4576
      %4578 = vmatprep.mubr.f32.mxu0 0.0
      %4579 = vmatmul.mubr.f32.gmra.mxu0 %v4497
      %v4580 = vpop.f32.mrf.mxu0
      %v4581 = vadd.f32 %v4302, %v4580
      %v4582 = vpop.f32.mrf.mxu0
      %v4583 = vadd.f32 %v4304, %v4582
      %4584 = vmatprep.mubr.f32.mxu0 0.0
      %4585 = vmatmul.mubr.f32.gmra.mxu0 %v4500
      %v4586 = vpop.f32.mrf.mxu0
      %v4587 = vadd.f32 %v4308, %v4586
      %v4588 = vpop.f32.mrf.mxu0
      %v4589 = vadd.f32 %v4310, %v4588
      %4590 = vdwg.mxu0
      %4591 = vmatprep.subr.mxu0 0.0
      %4592 = vmatpush1.msra.mxu0 0.0
      %4593 = vmatprep.subr.mxu0 0.0
      %4594 = vmatpush1.msra.mxu0 0.0
      %4595 = vmatprep.subr.mxu0 0.0
      %4596 = vmatpush1.msra.mxu0 0.0
      %4597 = vmatprep.subr.mxu0 0.0
      %4598 = vmatpush1.msra.mxu0 0.0
      %4599 = vmatprep.subr.mxu0 0.0
      %4600 = vmatpush1.msra.mxu0 0.0
      %4601 = vmatprep.subr.mxu0 0.0
      %4602 = vmatpush1.msra.mxu0 0.0
      %4603 = vmatprep.subr.mxu0 0.0
      %4604 = vmatpush1.msra.mxu0 0.0
      %4605 = vmatprep.subr.mxu0 0.0
      %4606 = vmatpush1.msra.mxu0 0.0
      %4607 = vmatprep.subr.mxu0 0.0
      %4608 = vmatpush1.msra.mxu0 0.0
      %4609 = vmatprep.subr.mxu0 0.0
      %4610 = vmatpush1.msra.mxu0 0.0
      %4611 = vmatprep.subr.mxu0 0.0
      %4612 = vmatpush1.msra.mxu0 0.0
      %4613 = vmatprep.subr.mxu0 0.0
      %4614 = vmatpush1.msra.mxu0 0.0
      %4615 = vmatprep.subr.mxu0 %v4076
      %4616 = vmatpush1.msra.mxu0 %v4075
      %4617 = vmatprep.subr.mxu0 %v4065
      %4618 = vmatpush1.msra.mxu0 %v4064
      %4619 = vmatprep.subr.mxu0 %v4054
      %4620 = vmatpush1.msra.mxu0 %v4053
      %4621 = vmatprep.subr.mxu0 %v4043
      %4622 = vmatpush1.msra.mxu0 %v4042
      %4623 = vmatprep.subr.mxu0 0.0
      %4624 = vmatpush2.msra.mxu0 0.0
      %4625 = vmatprep.subr.mxu0 0.0
      %4626 = vmatpush2.msra.mxu0 0.0
      %4627 = vmatprep.subr.mxu0 0.0
      %4628 = vmatpush2.msra.mxu0 0.0
      %4629 = vmatprep.subr.mxu0 0.0
      %4630 = vmatpush2.msra.mxu0 0.0
      %4631 = vmatprep.subr.mxu0 0.0
      %4632 = vmatpush2.msra.mxu0 0.0
      %4633 = vmatprep.subr.mxu0 0.0
      %4634 = vmatpush2.msra.mxu0 0.0
      %4635 = vmatprep.subr.mxu0 0.0
      %4636 = vmatpush2.msra.mxu0 0.0
      %4637 = vmatprep.subr.mxu0 0.0
      %4638 = vmatpush2.msra.mxu0 0.0
      %4639 = vmatprep.subr.mxu0 0.0
      %4640 = vmatpush2.msra.mxu0 0.0
      %4641 = vmatprep.subr.mxu0 0.0
      %4642 = vmatpush2.msra.mxu0 0.0
      %4643 = vmatprep.subr.mxu0 0.0
      %4644 = vmatpush2.msra.mxu0 0.0
      %4645 = vmatprep.subr.mxu0 0.0
      %4646 = vmatpush2.msra.mxu0 0.0
      %4647 = vmatprep.subr.mxu0 0.0
      %4648 = vmatpush2.msra.mxu0 0.0
      %4649 = vmatprep.subr.mxu0 0.0
      %4650 = vmatpush2.msra.mxu0 0.0
      %4651 = vmatprep.subr.mxu0 0.0
      %4652 = vmatpush2.msra.mxu0 0.0
      %4653 = vmatprep.subr.mxu0 0.0
      %4654 = vmatpush2.msra.mxu0 0.0
      %4655 = vmatprep.mubr.f32.mxu0 0.0
      %4656 = vmatmul.mubr.f32.gmra.mxu0 %v4491
      %v4657 = vpop.f32.mrf.mxu0
      %v4658 = vadd.f32 %v4379, %v4657
      %v4659 = vpop.f32.mrf.mxu0
      %v4660 = vadd.f32 %v4381, %v4659
      %4661 = vmatprep.mubr.f32.mxu0 0.0
      %4662 = vmatmul.mubr.f32.gmra.mxu0 %v4494
      %v4663 = vpop.f32.mrf.mxu0
      %v4664 = vadd.f32 %v4385, %v4663
      %v4665 = vpop.f32.mrf.mxu0
      %v4666 = vadd.f32 %v4387, %v4665
      %4667 = vmatprep.mubr.f32.mxu0 0.0
      %4668 = vmatmul.mubr.f32.gmra.mxu0 %v4497
      %v4669 = vpop.f32.mrf.mxu0
      %v4670 = vadd.f32 %v4391, %v4669
      %v4671 = vpop.f32.mrf.mxu0
      %v4672 = vadd.f32 %v4393, %v4671
      %4673 = vmatprep.mubr.f32.mxu0 0.0
      %4674 = vmatmul.mubr.f32.gmra.mxu0 %v4500
      %v4675 = vpop.f32.mrf.mxu0
      %v4676 = vadd.f32 %v4397, %v4675
      %v4677 = vpop.f32.mrf.mxu0
      %v4678 = vadd.f32 %v4399, %v4677
      %4679 = vdwg.mxu0
      %4680 = vmatprep.subr.mxu0 0.0
      %4681 = vmatpush1.msra.mxu0 0.0
      %4682 = vmatprep.subr.mxu0 0.0
      %4683 = vmatpush1.msra.mxu0 0.0
      %4684 = vmatprep.subr.mxu0 0.0
      %4685 = vmatpush1.msra.mxu0 0.0
      %4686 = vmatprep.subr.mxu0 0.0
      %4687 = vmatpush1.msra.mxu0 0.0
      %4688 = vmatprep.subr.mxu0 0.0
      %4689 = vmatpush1.msra.mxu0 0.0
      %4690 = vmatprep.subr.mxu0 0.0
      %4691 = vmatpush1.msra.mxu0 0.0
      %4692 = vmatprep.subr.mxu0 0.0
      %4693 = vmatpush1.msra.mxu0 0.0
      %4694 = vmatprep.subr.mxu0 0.0
      %4695 = vmatpush1.msra.mxu0 0.0
      %4696 = vmatprep.subr.mxu0 0.0
      %4697 = vmatpush1.msra.mxu0 0.0
      %4698 = vmatprep.subr.mxu0 0.0
      %4699 = vmatpush1.msra.mxu0 0.0
      %4700 = vmatprep.subr.mxu0 0.0
      %4701 = vmatpush1.msra.mxu0 0.0
      %4702 = vmatprep.subr.mxu0 0.0
      %4703 = vmatpush1.msra.mxu0 0.0
      %4704 = vmatprep.subr.mxu0 %v4078
      %4705 = vmatpush1.msra.mxu0 %v4077
      %4706 = vmatprep.subr.mxu0 %v4067
      %4707 = vmatpush1.msra.mxu0 %v4066
      %4708 = vmatprep.subr.mxu0 %v4056
      %4709 = vmatpush1.msra.mxu0 %v4055
      %4710 = vmatprep.subr.mxu0 %v4045
      %4711 = vmatpush1.msra.mxu0 %v4044
      %4712 = vmatprep.subr.mxu0 0.0
      %4713 = vmatpush2.msra.mxu0 0.0
      %4714 = vmatprep.subr.mxu0 0.0
      %4715 = vmatpush2.msra.mxu0 0.0
      %4716 = vmatprep.subr.mxu0 0.0
      %4717 = vmatpush2.msra.mxu0 0.0
      %4718 = vmatprep.subr.mxu0 0.0
      %4719 = vmatpush2.msra.mxu0 0.0
      %4720 = vmatprep.subr.mxu0 0.0
      %4721 = vmatpush2.msra.mxu0 0.0
      %4722 = vmatprep.subr.mxu0 0.0
      %4723 = vmatpush2.msra.mxu0 0.0
      %4724 = vmatprep.subr.mxu0 0.0
      %4725 = vmatpush2.msra.mxu0 0.0
      %4726 = vmatprep.subr.mxu0 0.0
      %4727 = vmatpush2.msra.mxu0 0.0
      %4728 = vmatprep.subr.mxu0 0.0
      %4729 = vmatpush2.msra.mxu0 0.0
      %4730 = vmatprep.subr.mxu0 0.0
      %4731 = vmatpush2.msra.mxu0 0.0
      %4732 = vmatprep.subr.mxu0 0.0
      %4733 = vmatpush2.msra.mxu0 0.0
      %4734 = vmatprep.subr.mxu0 0.0
      %4735 = vmatpush2.msra.mxu0 0.0
      %4736 = vmatprep.subr.mxu0 0.0
      %4737 = vmatpush2.msra.mxu0 0.0
      %4738 = vmatprep.subr.mxu0 0.0
      %4739 = vmatpush2.msra.mxu0 0.0
      %4740 = vmatprep.subr.mxu0 0.0
      %4741 = vmatpush2.msra.mxu0 0.0
      %4742 = vmatprep.subr.mxu0 0.0
      %4743 = vmatpush2.msra.mxu0 0.0
      %4744 = vmatprep.mubr.f32.mxu0 0.0
      %4745 = vmatmul.mubr.f32.gmra.mxu0 %v4491
      %v4746 = vpop.f32.mrf.mxu0
      %v4747 = vadd.f32 %v4468, %v4746
      %v4748 = vpop.f32.mrf.mxu0
      %v4749 = vadd.f32 %v4470, %v4748
      %4750 = vmatprep.mubr.f32.mxu0 0.0
      %4751 = vmatmul.mubr.f32.gmra.mxu0 %v4494
      %v4752 = vpop.f32.mrf.mxu0
      %v4753 = vadd.f32 %v4474, %v4752
      %v4754 = vpop.f32.mrf.mxu0
      %v4755 = vadd.f32 %v4476, %v4754
      %4756 = vmatprep.mubr.f32.mxu0 0.0
      %4757 = vmatmul.mubr.f32.gmra.mxu0 %v4497
      %v4758 = vpop.f32.mrf.mxu0
      %v4759 = vadd.f32 %v4480, %v4758
      %v4760 = vpop.f32.mrf.mxu0
      %v4761 = vadd.f32 %v4482, %v4760
      %4762 = vmatprep.mubr.f32.mxu0 0.0
      %4763 = vmatmul.mubr.f32.gmra.mxu0 %v4500
      %v4764 = vpop.f32.mrf.mxu0
      %v4765 = vadd.f32 %v4486, %v4764
      %v4766 = vpop.f32.mrf.mxu0
      %v4767 = vadd.f32 %v4488, %v4766
      %4768 = vdwg.mxu0
      %s4769 = scalar_lea.vmem %s6, 32
      %v4770 = vld [vmem:[%s4769] sm:$0xff]
      %v4771 = vld [vmem:[%s4769 + $0x8] sm:$0xff]
      %v4772 = vld [vmem:[%s4769 + $0x10] sm:$0xff]
      %v4773 = vld [vmem:[%s4769 + $0x18] sm:$0xff]
      %4775 = vset.pattern.permute.xlu0 0
      %4776 = vperm.xlu0 %4775, %v4770
      %v4777 = vpop.permute.xlu0 %4776
      %4780 = vset.pattern.permute.xlu0 0
      %4781 = vperm.xlu0 %4780, %v4771
      %v4782 = vpop.permute.xlu0 %4781
      %4785 = vset.pattern.permute.xlu0 0
      %4786 = vperm.xlu0 %4785, %v4772
      %v4787 = vpop.permute.xlu0 %4786
      %4790 = vset.pattern.permute.xlu0 0
      %4791 = vperm.xlu0 %4790, %v4773
      %v4792 = vpop.permute.xlu0 %4791
      %v4794 = vadd.f32 %v4569, %v4777
      %v4795 = vadd.f32 %v4571, %v4777
      %v4796 = vadd.f32 %v4658, %v4777
      %v4797 = vadd.f32 %v4660, %v4777
      %v4798 = vadd.f32 %v4747, %v4777
      %v4799 = vadd.f32 %v4749, %v4777
      %v4800 = vadd.f32 %v4575, %v4782
      %v4801 = vadd.f32 %v4577, %v4782
      %v4802 = vadd.f32 %v4664, %v4782
      %v4803 = vadd.f32 %v4666, %v4782
      %v4804 = vadd.f32 %v4753, %v4782
      %v4805 = vadd.f32 %v4755, %v4782
      %v4806 = vadd.f32 %v4581, %v4787
      %v4807 = vadd.f32 %v4583, %v4787
      %v4808 = vadd.f32 %v4670, %v4787
      %v4809 = vadd.f32 %v4672, %v4787
      %v4810 = vadd.f32 %v4759, %v4787
      %v4811 = vadd.f32 %v4761, %v4787
      %v4812 = vadd.f32 %v4587, %v4792
      %v4813 = vadd.f32 %v4589, %v4792
      %v4814 = vadd.f32 %v4676, %v4792
      %v4815 = vadd.f32 %v4678, %v4792
      %v4816 = vadd.f32 %v4765, %v4792
      %v4817 = vadd.f32 %v4767, %v4792
      %v4818 = vmax.f32 %v4794, 0.0
      %v4819 = vmax.f32 %v4795, 0.0
      %v4820 = vmax.f32 %v4796, 0.0
      %v4821 = vmax.f32 %v4797, 0.0
      %v4822 = vmax.f32 %v4798, 0.0
      %v4823 = vmax.f32 %v4799, 0.0
      %v4824 = vmax.f32 %v4800, 0.0
      %v4825 = vmax.f32 %v4801, 0.0
      %v4826 = vmax.f32 %v4802, 0.0
      %v4827 = vmax.f32 %v4803, 0.0
      %v4828 = vmax.f32 %v4804, 0.0
      %v4829 = vmax.f32 %v4805, 0.0
      %v4830 = vmax.f32 %v4806, 0.0
      %v4831 = vmax.f32 %v4807, 0.0
      %v4832 = vmax.f32 %v4808, 0.0
      %v4833 = vmax.f32 %v4809, 0.0
      %v4834 = vmax.f32 %v4810, 0.0
      %v4835 = vmax.f32 %v4811, 0.0
      %v4836 = vmax.f32 %v4812, 0.0
      %v4837 = vmax.f32 %v4813, 0.0
      %v4838 = vmax.f32 %v4814, 0.0
      %v4839 = vmax.f32 %v4815, 0.0
      %v4840 = vmax.f32 %v4816, 0.0
      %v4841 = vmax.f32 %v4817, 0.0
      %s4842 = scalar_lea.vmem %s4, 64
      %v4843 = vld [vmem:[%s4842] sm:$0xff]
      %v4844 = vld [vmem:[%s4842 + $0x8] sm:$0xff]
      %v4845 = vld [vmem:[%s4842 + $0x10] sm:$0xff]
      %v4846 = vld [vmem:[%s4842 + $0x18] sm:$0xff]
      %s4847 = scalar_lea.vmem %s5, 64
      %v4848 = vld [vmem:[%s4847] sm:$0xff]
      %v4849 = vld [vmem:[%s4847 + $0x8] sm:$0xff]
      %v4850 = vld [vmem:[%s4847 + $0x10] sm:$0xff]
      %v4851 = vld [vmem:[%s4847 + $0x18] sm:$0xff]
      %4868 = vrot.lane.b32.xlu0 %v4820, 32
      %v4869 = vpop.permute.xlu0 %4868
      %4870 = vrot.lane.b32.xlu0 %v4821, 32
      %v4871 = vpop.permute.xlu0 %4870
      %4872 = vrot.lane.b32.xlu0 %v4822, 32
      %v4873 = vpop.permute.xlu0 %4872
      %4874 = vrot.lane.b32.xlu0 %v4823, 32
      %v4875 = vpop.permute.xlu0 %4874
      %4876 = vrot.lane.b32.xlu0 %v4826, 32
      %v4877 = vpop.permute.xlu0 %4876
      %4878 = vrot.lane.b32.xlu0 %v4827, 32
      %v4879 = vpop.permute.xlu0 %4878
      %4880 = vrot.lane.b32.xlu0 %v4828, 32
      %v4881 = vpop.permute.xlu0 %4880
      %4882 = vrot.lane.b32.xlu0 %v4829, 32
      %v4883 = vpop.permute.xlu0 %4882
      %4884 = vrot.lane.b32.xlu0 %v4832, 32
      %v4885 = vpop.permute.xlu0 %4884
      %4886 = vrot.lane.b32.xlu0 %v4833, 32
      %v4887 = vpop.permute.xlu0 %4886
      %4888 = vrot.lane.b32.xlu0 %v4834, 32
      %v4889 = vpop.permute.xlu0 %4888
      %4890 = vrot.lane.b32.xlu0 %v4835, 32
      %v4891 = vpop.permute.xlu0 %4890
      %4892 = vrot.lane.b32.xlu0 %v4838, 32
      %v4893 = vpop.permute.xlu0 %4892
      %4894 = vrot.lane.b32.xlu0 %v4839, 32
      %v4895 = vpop.permute.xlu0 %4894
      %4896 = vrot.lane.b32.xlu0 %v4840, 32
      %v4897 = vpop.permute.xlu0 %4896
      %4898 = vrot.lane.b32.xlu0 %v4841, 32
      %v4899 = vpop.permute.xlu0 %4898
      %v4900 = vsel %vm2887, %v4869, %v4871
      %v4901 = vsel %vm2887, %v4871, %v4873
      %v4902 = vsel %vm2887, %v4873, %v4875
      %v4903 = vsel %vm2887, %v4877, %v4879
      %v4904 = vsel %vm2887, %v4879, %v4881
      %v4905 = vsel %vm2887, %v4881, %v4883
      %v4906 = vsel %vm2887, %v4885, %v4887
      %v4907 = vsel %vm2887, %v4887, %v4889
      %v4908 = vsel %vm2887, %v4889, %v4891
      %v4909 = vsel %vm2887, %v4893, %v4895
      %v4910 = vsel %vm2887, %v4895, %v4897
      %v4911 = vsel %vm2887, %v4897, %v4899
      %v4925 = vsel %vm2887, %v4848, 0
      %v4928 = vsel %vm2887, %v4849, 0
      %v4931 = vsel %vm2887, %v4850, 0
      %v4934 = vsel %vm2887, %v4851, 0
      %4936 = vmatprep.subr.mxu0 0.0
      %4937 = vmatpush1.msra.mxu0 0.0
      %4938 = vmatprep.subr.mxu0 0.0
      %4939 = vmatpush1.msra.mxu0 0.0
      %4940 = vmatprep.subr.mxu0 0.0
      %4941 = vmatpush1.msra.mxu0 0.0
      %4942 = vmatprep.subr.mxu0 0.0
      %4943 = vmatpush1.msra.mxu0 0.0
      %4944 = vmatprep.subr.mxu0 0.0
      %4945 = vmatpush1.msra.mxu0 0.0
      %4946 = vmatprep.subr.mxu0 0.0
      %4947 = vmatpush1.msra.mxu0 0.0
      %4948 = vmatprep.subr.mxu0 0.0
      %4949 = vmatpush1.msra.mxu0 0.0
      %4950 = vmatprep.subr.mxu0 0.0
      %4951 = vmatpush1.msra.mxu0 0.0
      %4952 = vmatprep.subr.mxu0 0.0
      %4953 = vmatpush1.msra.mxu0 0.0
      %4954 = vmatprep.subr.mxu0 0.0
      %4955 = vmatpush1.msra.mxu0 0.0
      %4956 = vmatprep.subr.mxu0 0.0
      %4957 = vmatpush1.msra.mxu0 0.0
      %4958 = vmatprep.subr.mxu0 0.0
      %4959 = vmatpush1.msra.mxu0 0.0
      %4960 = vmatprep.subr.mxu0 %v4910
      %4961 = vmatpush1.msra.mxu0 %v4909
      %4962 = vmatprep.subr.mxu0 %v4907
      %4963 = vmatpush1.msra.mxu0 %v4906
      %4964 = vmatprep.subr.mxu0 %v4904
      %4965 = vmatpush1.msra.mxu0 %v4903
      %4966 = vmatprep.subr.mxu0 %v4901
      %4967 = vmatpush1.msra.mxu0 %v4900
      %4968 = vmatprep.subr.mxu0 0.0
      %4969 = vmatpush2.msra.mxu0 0.0
      %4970 = vmatprep.subr.mxu0 0.0
      %4971 = vmatpush2.msra.mxu0 0.0
      %4972 = vmatprep.subr.mxu0 0.0
      %4973 = vmatpush2.msra.mxu0 0.0
      %4974 = vmatprep.subr.mxu0 0.0
      %4975 = vmatpush2.msra.mxu0 0.0
      %4976 = vmatprep.subr.mxu0 0.0
      %4977 = vmatpush2.msra.mxu0 0.0
      %4978 = vmatprep.subr.mxu0 0.0
      %4979 = vmatpush2.msra.mxu0 0.0
      %4980 = vmatprep.subr.mxu0 0.0
      %4981 = vmatpush2.msra.mxu0 0.0
      %4982 = vmatprep.subr.mxu0 0.0
      %4983 = vmatpush2.msra.mxu0 0.0
      %4984 = vmatprep.subr.mxu0 0.0
      %4985 = vmatpush2.msra.mxu0 0.0
      %4986 = vmatprep.subr.mxu0 0.0
      %4987 = vmatpush2.msra.mxu0 0.0
      %4988 = vmatprep.subr.mxu0 0.0
      %4989 = vmatpush2.msra.mxu0 0.0
      %4990 = vmatprep.subr.mxu0 0.0
      %4991 = vmatpush2.msra.mxu0 0.0
      %4992 = vmatprep.subr.mxu0 0.0
      %4993 = vmatpush2.msra.mxu0 0.0
      %4994 = vmatprep.subr.mxu0 0.0
      %4995 = vmatpush2.msra.mxu0 0.0
      %4996 = vmatprep.subr.mxu0 0.0
      %4997 = vmatpush2.msra.mxu0 0.0
      %4998 = vmatprep.subr.mxu0 0.0
      %4999 = vmatpush2.msra.mxu0 0.0
      %5000 = vmatprep.mubr.f32.mxu0 0.0
      %5001 = vmatmul.mubr.f32.gmra.mxu0 %v4925
      %v5002 = vpop.f32.mrf.mxu0
      %v5003 = vadd.f32 0.0, %v5002
      %v5004 = vpop.f32.mrf.mxu0
      %v5005 = vadd.f32 0.0, %v5004
      %5006 = vmatprep.mubr.f32.mxu0 0.0
      %5007 = vmatmul.mubr.f32.gmra.mxu0 %v4928
      %v5008 = vpop.f32.mrf.mxu0
      %v5009 = vadd.f32 0.0, %v5008
      %v5010 = vpop.f32.mrf.mxu0
      %v5011 = vadd.f32 0.0, %v5010
      %5012 = vmatprep.mubr.f32.mxu0 0.0
      %5013 = vmatmul.mubr.f32.gmra.mxu0 %v4931
      %v5014 = vpop.f32.mrf.mxu0
      %v5015 = vadd.f32 0.0, %v5014
      %v5016 = vpop.f32.mrf.mxu0
      %v5017 = vadd.f32 0.0, %v5016
      %5018 = vmatprep.mubr.f32.mxu0 0.0
      %5019 = vmatmul.mubr.f32.gmra.mxu0 %v4934
      %v5020 = vpop.f32.mrf.mxu0
      %v5021 = vadd.f32 0.0, %v5020
      %v5022 = vpop.f32.mrf.mxu0
      %v5023 = vadd.f32 0.0, %v5022
      %5024 = vdwg.mxu0
      %5025 = vmatprep.subr.mxu0 0.0
      %5026 = vmatpush1.msra.mxu0 0.0
      %5027 = vmatprep.subr.mxu0 0.0
      %5028 = vmatpush1.msra.mxu0 0.0
      %5029 = vmatprep.subr.mxu0 0.0
      %5030 = vmatpush1.msra.mxu0 0.0
      %5031 = vmatprep.subr.mxu0 0.0
      %5032 = vmatpush1.msra.mxu0 0.0
      %5033 = vmatprep.subr.mxu0 0.0
      %5034 = vmatpush1.msra.mxu0 0.0
      %5035 = vmatprep.subr.mxu0 0.0
      %5036 = vmatpush1.msra.mxu0 0.0
      %5037 = vmatprep.subr.mxu0 0.0
      %5038 = vmatpush1.msra.mxu0 0.0
      %5039 = vmatprep.subr.mxu0 0.0
      %5040 = vmatpush1.msra.mxu0 0.0
      %5041 = vmatprep.subr.mxu0 0.0
      %5042 = vmatpush1.msra.mxu0 0.0
      %5043 = vmatprep.subr.mxu0 0.0
      %5044 = vmatpush1.msra.mxu0 0.0
      %5045 = vmatprep.subr.mxu0 0.0
      %5046 = vmatpush1.msra.mxu0 0.0
      %5047 = vmatprep.subr.mxu0 0.0
      %5048 = vmatpush1.msra.mxu0 0.0
      %5049 = vmatprep.subr.mxu0 0.0
      %5050 = vmatpush1.msra.mxu0 %v4911
      %5051 = vmatprep.subr.mxu0 0.0
      %5052 = vmatpush1.msra.mxu0 %v4908
      %5053 = vmatprep.subr.mxu0 0.0
      %5054 = vmatpush1.msra.mxu0 %v4905
      %5055 = vmatprep.subr.mxu0 0.0
      %5056 = vmatpush1.msra.mxu0 %v4902
      %5057 = vmatprep.subr.mxu0 0.0
      %5058 = vmatpush2.msra.mxu0 0.0
      %5059 = vmatprep.subr.mxu0 0.0
      %5060 = vmatpush2.msra.mxu0 0.0
      %5061 = vmatprep.subr.mxu0 0.0
      %5062 = vmatpush2.msra.mxu0 0.0
      %5063 = vmatprep.subr.mxu0 0.0
      %5064 = vmatpush2.msra.mxu0 0.0
      %5065 = vmatprep.subr.mxu0 0.0
      %5066 = vmatpush2.msra.mxu0 0.0
      %5067 = vmatprep.subr.mxu0 0.0
      %5068 = vmatpush2.msra.mxu0 0.0
      %5069 = vmatprep.subr.mxu0 0.0
      %5070 = vmatpush2.msra.mxu0 0.0
      %5071 = vmatprep.subr.mxu0 0.0
      %5072 = vmatpush2.msra.mxu0 0.0
      %5073 = vmatprep.subr.mxu0 0.0
      %5074 = vmatpush2.msra.mxu0 0.0
      %5075 = vmatprep.subr.mxu0 0.0
      %5076 = vmatpush2.msra.mxu0 0.0
      %5077 = vmatprep.subr.mxu0 0.0
      %5078 = vmatpush2.msra.mxu0 0.0
      %5079 = vmatprep.subr.mxu0 0.0
      %5080 = vmatpush2.msra.mxu0 0.0
      %5081 = vmatprep.subr.mxu0 0.0
      %5082 = vmatpush2.msra.mxu0 0.0
      %5083 = vmatprep.subr.mxu0 0.0
      %5084 = vmatpush2.msra.mxu0 0.0
      %5085 = vmatprep.subr.mxu0 0.0
      %5086 = vmatpush2.msra.mxu0 0.0
      %5087 = vmatprep.subr.mxu0 0.0
      %5088 = vmatpush2.msra.mxu0 0.0
      %5089 = vmatprep.mubr.f32.mxu0 0.0
      %5090 = vmatmul.mubr.f32.gmra.mxu0 %v4925
      %v5091 = vpop.f32.mrf.mxu0
      %v5092 = vadd.f32 0.0, %v5091
      %v5093 = vpop.f32.mrf.mxu0
      %5094 = vmatprep.mubr.f32.mxu0 0.0
      %5095 = vmatmul.mubr.f32.gmra.mxu0 %v4928
      %v5096 = vpop.f32.mrf.mxu0
      %v5097 = vadd.f32 0.0, %v5096
      %v5098 = vpop.f32.mrf.mxu0
      %5099 = vmatprep.mubr.f32.mxu0 0.0
      %5100 = vmatmul.mubr.f32.gmra.mxu0 %v4931
      %v5101 = vpop.f32.mrf.mxu0
      %v5102 = vadd.f32 0.0, %v5101
      %v5103 = vpop.f32.mrf.mxu0
      %5104 = vmatprep.mubr.f32.mxu0 0.0
      %5105 = vmatmul.mubr.f32.gmra.mxu0 %v4934
      %v5106 = vpop.f32.mrf.mxu0
      %v5107 = vadd.f32 0.0, %v5106
      %v5108 = vpop.f32.mrf.mxu0
      %5109 = vdwg.mxu0
      %v5111 = vsel %vm2887, %v4843, 0
      %v5114 = vsel %vm2887, %v4844, 0
      %v5117 = vsel %vm2887, %v4845, 0
      %v5120 = vsel %vm2887, %v4846, 0
      %5122 = vmatprep.subr.mxu0 0.0
      %5123 = vmatpush1.msra.mxu0 0.0
      %5124 = vmatprep.subr.mxu0 0.0
      %5125 = vmatpush1.msra.mxu0 0.0
      %5126 = vmatprep.subr.mxu0 0.0
      %5127 = vmatpush1.msra.mxu0 0.0
      %5128 = vmatprep.subr.mxu0 0.0
      %5129 = vmatpush1.msra.mxu0 0.0
      %5130 = vmatprep.subr.mxu0 0.0
      %5131 = vmatpush1.msra.mxu0 0.0
      %5132 = vmatprep.subr.mxu0 0.0
      %5133 = vmatpush1.msra.mxu0 0.0
      %5134 = vmatprep.subr.mxu0 0.0
      %5135 = vmatpush1.msra.mxu0 0.0
      %5136 = vmatprep.subr.mxu0 0.0
      %5137 = vmatpush1.msra.mxu0 0.0
      %5138 = vmatprep.subr.mxu0 0.0
      %5139 = vmatpush1.msra.mxu0 0.0
      %5140 = vmatprep.subr.mxu0 0.0
      %5141 = vmatpush1.msra.mxu0 0.0
      %5142 = vmatprep.subr.mxu0 0.0
      %5143 = vmatpush1.msra.mxu0 0.0
      %5144 = vmatprep.subr.mxu0 0.0
      %5145 = vmatpush1.msra.mxu0 0.0
      %5146 = vmatprep.subr.mxu0 %v4837
      %5147 = vmatpush1.msra.mxu0 %v4836
      %5148 = vmatprep.subr.mxu0 %v4831
      %5149 = vmatpush1.msra.mxu0 %v4830
      %5150 = vmatprep.subr.mxu0 %v4825
      %5151 = vmatpush1.msra.mxu0 %v4824
      %5152 = vmatprep.subr.mxu0 %v4819
      %5153 = vmatpush1.msra.mxu0 %v4818
      %5154 = vmatprep.subr.mxu0 0.0
      %5155 = vmatpush2.msra.mxu0 0.0
      %5156 = vmatprep.subr.mxu0 0.0
      %5157 = vmatpush2.msra.mxu0 0.0
      %5158 = vmatprep.subr.mxu0 0.0
      %5159 = vmatpush2.msra.mxu0 0.0
      %5160 = vmatprep.subr.mxu0 0.0
      %5161 = vmatpush2.msra.mxu0 0.0
      %5162 = vmatprep.subr.mxu0 0.0
      %5163 = vmatpush2.msra.mxu0 0.0
      %5164 = vmatprep.subr.mxu0 0.0
      %5165 = vmatpush2.msra.mxu0 0.0
      %5166 = vmatprep.subr.mxu0 0.0
      %5167 = vmatpush2.msra.mxu0 0.0
      %5168 = vmatprep.subr.mxu0 0.0
      %5169 = vmatpush2.msra.mxu0 0.0
      %5170 = vmatprep.subr.mxu0 0.0
      %5171 = vmatpush2.msra.mxu0 0.0
      %5172 = vmatprep.subr.mxu0 0.0
      %5173 = vmatpush2.msra.mxu0 0.0
      %5174 = vmatprep.subr.mxu0 0.0
      %5175 = vmatpush2.msra.mxu0 0.0
      %5176 = vmatprep.subr.mxu0 0.0
      %5177 = vmatpush2.msra.mxu0 0.0
      %5178 = vmatprep.subr.mxu0 0.0
      %5179 = vmatpush2.msra.mxu0 0.0
      %5180 = vmatprep.subr.mxu0 0.0
      %5181 = vmatpush2.msra.mxu0 0.0
      %5182 = vmatprep.subr.mxu0 0.0
      %5183 = vmatpush2.msra.mxu0 0.0
      %5184 = vmatprep.subr.mxu0 0.0
      %5185 = vmatpush2.msra.mxu0 0.0
      %5186 = vmatprep.mubr.f32.mxu0 0.0
      %5187 = vmatmul.mubr.f32.gmra.mxu0 %v5111
      %v5188 = vpop.f32.mrf.mxu0
      %v5189 = vadd.f32 %v5003, %v5188
      %v5190 = vpop.f32.mrf.mxu0
      %v5191 = vadd.f32 %v5005, %v5190
      %5192 = vmatprep.mubr.f32.mxu0 0.0
      %5193 = vmatmul.mubr.f32.gmra.mxu0 %v5114
      %v5194 = vpop.f32.mrf.mxu0
      %v5195 = vadd.f32 %v5009, %v5194
      %v5196 = vpop.f32.mrf.mxu0
      %v5197 = vadd.f32 %v5011, %v5196
      %5198 = vmatprep.mubr.f32.mxu0 0.0
      %5199 = vmatmul.mubr.f32.gmra.mxu0 %v5117
      %v5200 = vpop.f32.mrf.mxu0
      %v5201 = vadd.f32 %v5015, %v5200
      %v5202 = vpop.f32.mrf.mxu0
      %v5203 = vadd.f32 %v5017, %v5202
      %5204 = vmatprep.mubr.f32.mxu0 0.0
      %5205 = vmatmul.mubr.f32.gmra.mxu0 %v5120
      %v5206 = vpop.f32.mrf.mxu0
      %v5207 = vadd.f32 %v5021, %v5206
      %v5208 = vpop.f32.mrf.mxu0
      %v5209 = vadd.f32 %v5023, %v5208
      %5210 = vdwg.mxu0
      %5211 = vmatprep.subr.mxu0 0.0
      %5212 = vmatpush1.msra.mxu0 0.0
      %5213 = vmatprep.subr.mxu0 0.0
      %5214 = vmatpush1.msra.mxu0 0.0
      %5215 = vmatprep.subr.mxu0 0.0
      %5216 = vmatpush1.msra.mxu0 0.0
      %5217 = vmatprep.subr.mxu0 0.0
      %5218 = vmatpush1.msra.mxu0 0.0
      %5219 = vmatprep.subr.mxu0 0.0
      %5220 = vmatpush1.msra.mxu0 0.0
      %5221 = vmatprep.subr.mxu0 0.0
      %5222 = vmatpush1.msra.mxu0 0.0
      %5223 = vmatprep.subr.mxu0 0.0
      %5224 = vmatpush1.msra.mxu0 0.0
      %5225 = vmatprep.subr.mxu0 0.0
      %5226 = vmatpush1.msra.mxu0 0.0
      %5227 = vmatprep.subr.mxu0 0.0
      %5228 = vmatpush1.msra.mxu0 0.0
      %5229 = vmatprep.subr.mxu0 0.0
      %5230 = vmatpush1.msra.mxu0 0.0
      %5231 = vmatprep.subr.mxu0 0.0
      %5232 = vmatpush1.msra.mxu0 0.0
      %5233 = vmatprep.subr.mxu0 0.0
      %5234 = vmatpush1.msra.mxu0 0.0
      %5235 = vmatprep.subr.mxu0 0.0
      %5236 = vmatpush1.msra.mxu0 %v4838
      %5237 = vmatprep.subr.mxu0 0.0
      %5238 = vmatpush1.msra.mxu0 %v4832
      %5239 = vmatprep.subr.mxu0 0.0
      %5240 = vmatpush1.msra.mxu0 %v4826
      %5241 = vmatprep.subr.mxu0 0.0
      %5242 = vmatpush1.msra.mxu0 %v4820
      %5243 = vmatprep.subr.mxu0 0.0
      %5244 = vmatpush2.msra.mxu0 0.0
      %5245 = vmatprep.subr.mxu0 0.0
      %5246 = vmatpush2.msra.mxu0 0.0
      %5247 = vmatprep.subr.mxu0 0.0
      %5248 = vmatpush2.msra.mxu0 0.0
      %5249 = vmatprep.subr.mxu0 0.0
      %5250 = vmatpush2.msra.mxu0 0.0
      %5251 = vmatprep.subr.mxu0 0.0
      %5252 = vmatpush2.msra.mxu0 0.0
      %5253 = vmatprep.subr.mxu0 0.0
      %5254 = vmatpush2.msra.mxu0 0.0
      %5255 = vmatprep.subr.mxu0 0.0
      %5256 = vmatpush2.msra.mxu0 0.0
      %5257 = vmatprep.subr.mxu0 0.0
      %5258 = vmatpush2.msra.mxu0 0.0
      %5259 = vmatprep.subr.mxu0 0.0
      %5260 = vmatpush2.msra.mxu0 0.0
      %5261 = vmatprep.subr.mxu0 0.0
      %5262 = vmatpush2.msra.mxu0 0.0
      %5263 = vmatprep.subr.mxu0 0.0
      %5264 = vmatpush2.msra.mxu0 0.0
      %5265 = vmatprep.subr.mxu0 0.0
      %5266 = vmatpush2.msra.mxu0 0.0
      %5267 = vmatprep.subr.mxu0 0.0
      %5268 = vmatpush2.msra.mxu0 0.0
      %5269 = vmatprep.subr.mxu0 0.0
      %5270 = vmatpush2.msra.mxu0 0.0
      %5271 = vmatprep.subr.mxu0 0.0
      %5272 = vmatpush2.msra.mxu0 0.0
      %5273 = vmatprep.subr.mxu0 0.0
      %5274 = vmatpush2.msra.mxu0 0.0
      %5275 = vmatprep.mubr.f32.mxu0 0.0
      %5276 = vmatmul.mubr.f32.gmra.mxu0 %v5111
      %v5277 = vpop.f32.mrf.mxu0
      %v5278 = vadd.f32 %v5092, %v5277
      %v5279 = vpop.f32.mrf.mxu0
      %5280 = vmatprep.mubr.f32.mxu0 0.0
      %5281 = vmatmul.mubr.f32.gmra.mxu0 %v5114
      %v5282 = vpop.f32.mrf.mxu0
      %v5283 = vadd.f32 %v5097, %v5282
      %v5284 = vpop.f32.mrf.mxu0
      %5285 = vmatprep.mubr.f32.mxu0 0.0
      %5286 = vmatmul.mubr.f32.gmra.mxu0 %v5117
      %v5287 = vpop.f32.mrf.mxu0
      %v5288 = vadd.f32 %v5102, %v5287
      %v5289 = vpop.f32.mrf.mxu0
      %5290 = vmatprep.mubr.f32.mxu0 0.0
      %5291 = vmatmul.mubr.f32.gmra.mxu0 %v5120
      %v5292 = vpop.f32.mrf.mxu0
      %v5293 = vadd.f32 %v5107, %v5292
      %v5294 = vpop.f32.mrf.mxu0
      %5295 = vdwg.mxu0
      %s5296 = scalar_lea.vmem %s6, 64
      %v5297 = vld [vmem:[%s5296] sm:$0xff]
      %v5298 = vld [vmem:[%s5296 + $0x8] sm:$0xff]
      %v5299 = vld [vmem:[%s5296 + $0x10] sm:$0xff]
      %v5300 = vld [vmem:[%s5296 + $0x18] sm:$0xff]
      %5302 = vset.pattern.permute.xlu0 0
      %5303 = vperm.xlu0 %5302, %v5297
      %v5304 = vpop.permute.xlu0 %5303
      %5307 = vset.pattern.permute.xlu0 0
      %5308 = vperm.xlu0 %5307, %v5298
      %v5309 = vpop.permute.xlu0 %5308
      %5312 = vset.pattern.permute.xlu0 0
      %5313 = vperm.xlu0 %5312, %v5299
      %v5314 = vpop.permute.xlu0 %5313
      %5317 = vset.pattern.permute.xlu0 0
      %5318 = vperm.xlu0 %5317, %v5300
      %v5319 = vpop.permute.xlu0 %5318
      %v5321 = vadd.f32 %v5189, %v5304
      %v5322 = vadd.f32 %v5191, %v5304
      %v5323 = vadd.f32 %v5278, %v5304
      %v5324 = vadd.f32 %v5195, %v5309
      %v5325 = vadd.f32 %v5197, %v5309
      %v5326 = vadd.f32 %v5283, %v5309
      %v5327 = vadd.f32 %v5201, %v5314
      %v5328 = vadd.f32 %v5203, %v5314
      %v5329 = vadd.f32 %v5288, %v5314
      %v5330 = vadd.f32 %v5207, %v5319
      %v5331 = vadd.f32 %v5209, %v5319
      %v5332 = vadd.f32 %v5293, %v5319
      %v5333 = vmax.f32 %v5321, 0.0
      %v5334 = vmax.f32 %v5322, 0.0
      %v5335 = vmax.f32 %v5323, 0.0
      %v5336 = vmax.f32 %v5324, 0.0
      %v5337 = vmax.f32 %v5325, 0.0
      %v5338 = vmax.f32 %v5326, 0.0
      %v5339 = vmax.f32 %v5327, 0.0
      %v5340 = vmax.f32 %v5328, 0.0
      %v5341 = vmax.f32 %v5329, 0.0
      %v5342 = vmax.f32 %v5330, 0.0
      %v5343 = vmax.f32 %v5331, 0.0
      %v5344 = vmax.f32 %v5332, 0.0
      %s5345 = scalar_lea.vmem %s4, 96
      %v5346 = vld [vmem:[%s5345] sm:$0xff]
      %v5347 = vld [vmem:[%s5345 + $0x8] sm:$0xff]
      %v5348 = vld [vmem:[%s5345 + $0x10] sm:$0xff]
      %v5349 = vld [vmem:[%s5345 + $0x18] sm:$0xff]
      %s5350 = scalar_lea.vmem %s5, 96
      %v5351 = vld [vmem:[%s5350] sm:$0xff]
      %v5352 = vld [vmem:[%s5350 + $0x8] sm:$0xff]
      %v5353 = vld [vmem:[%s5350 + $0x10] sm:$0xff]
      %v5354 = vld [vmem:[%s5350 + $0x18] sm:$0xff]
      %5363 = vrot.lane.b32.xlu0 %v5334, 80
      %v5364 = vpop.permute.xlu0 %5363
      %5365 = vrot.lane.b32.xlu0 %v5335, 80
      %v5366 = vpop.permute.xlu0 %5365
      %5367 = vrot.lane.b32.xlu0 %v5337, 80
      %v5368 = vpop.permute.xlu0 %5367
      %5369 = vrot.lane.b32.xlu0 %v5338, 80
      %v5370 = vpop.permute.xlu0 %5369
      %5371 = vrot.lane.b32.xlu0 %v5340, 80
      %v5372 = vpop.permute.xlu0 %5371
      %5373 = vrot.lane.b32.xlu0 %v5341, 80
      %v5374 = vpop.permute.xlu0 %5373
      %5375 = vrot.lane.b32.xlu0 %v5343, 80
      %v5376 = vpop.permute.xlu0 %5375
      %5377 = vrot.lane.b32.xlu0 %v5344, 80
      %v5378 = vpop.permute.xlu0 %5377
      %vm5379 = vcmask 654336
      %v5380 = vsel %vm5379, %v5364, %v5366
      %v5381 = vsel %vm5379, %v5368, %v5370
      %v5382 = vsel %vm5379, %v5372, %v5374
      %v5383 = vsel %vm5379, %v5376, %v5378
      %v5393 = vsel %vm2887, %v5351, 0
      %v5396 = vsel %vm2887, %v5352, 0
      %v5399 = vsel %vm2887, %v5353, 0
      %v5402 = vsel %vm2887, %v5354, 0
      %5404 = vmatprep.subr.mxu0 0.0
      %5405 = vmatpush1.msra.mxu0 0.0
      %5406 = vmatprep.subr.mxu0 0.0
      %5407 = vmatpush1.msra.mxu0 0.0
      %5408 = vmatprep.subr.mxu0 0.0
      %5409 = vmatpush1.msra.mxu0 0.0
      %5410 = vmatprep.subr.mxu0 0.0
      %5411 = vmatpush1.msra.mxu0 0.0
      %5412 = vmatprep.subr.mxu0 0.0
      %5413 = vmatpush1.msra.mxu0 0.0
      %5414 = vmatprep.subr.mxu0 0.0
      %5415 = vmatpush1.msra.mxu0 0.0
      %5416 = vmatprep.subr.mxu0 0.0
      %5417 = vmatpush1.msra.mxu0 0.0
      %5418 = vmatprep.subr.mxu0 0.0
      %5419 = vmatpush1.msra.mxu0 0.0
      %5420 = vmatprep.subr.mxu0 0.0
      %5421 = vmatpush1.msra.mxu0 0.0
      %5422 = vmatprep.subr.mxu0 0.0
      %5423 = vmatpush1.msra.mxu0 0.0
      %5424 = vmatprep.subr.mxu0 0.0
      %5425 = vmatpush1.msra.mxu0 0.0
      %5426 = vmatprep.subr.mxu0 0.0
      %5427 = vmatpush1.msra.mxu0 0.0
      %5428 = vmatprep.subr.mxu0 %v5378
      %5429 = vmatpush1.msra.mxu0 %v5383
      %5430 = vmatprep.subr.mxu0 %v5374
      %5431 = vmatpush1.msra.mxu0 %v5382
      %5432 = vmatprep.subr.mxu0 %v5370
      %5433 = vmatpush1.msra.mxu0 %v5381
      %5434 = vmatprep.subr.mxu0 %v5366
      %5435 = vmatpush1.msra.mxu0 %v5380
      %5436 = vmatprep.subr.mxu0 0.0
      %5437 = vmatpush2.msra.mxu0 0.0
      %5438 = vmatprep.subr.mxu0 0.0
      %5439 = vmatpush2.msra.mxu0 0.0
      %5440 = vmatprep.subr.mxu0 0.0
      %5441 = vmatpush2.msra.mxu0 0.0
      %5442 = vmatprep.subr.mxu0 0.0
      %5443 = vmatpush2.msra.mxu0 0.0
      %5444 = vmatprep.subr.mxu0 0.0
      %5445 = vmatpush2.msra.mxu0 0.0
      %5446 = vmatprep.subr.mxu0 0.0
      %5447 = vmatpush2.msra.mxu0 0.0
      %5448 = vmatprep.subr.mxu0 0.0
      %5449 = vmatpush2.msra.mxu0 0.0
      %5450 = vmatprep.subr.mxu0 0.0
      %5451 = vmatpush2.msra.mxu0 0.0
      %5452 = vmatprep.subr.mxu0 0.0
      %5453 = vmatpush2.msra.mxu0 0.0
      %5454 = vmatprep.subr.mxu0 0.0
      %5455 = vmatpush2.msra.mxu0 0.0
      %5456 = vmatprep.subr.mxu0 0.0
      %5457 = vmatpush2.msra.mxu0 0.0
      %5458 = vmatprep.subr.mxu0 0.0
      %5459 = vmatpush2.msra.mxu0 0.0
      %5460 = vmatprep.subr.mxu0 0.0
      %5461 = vmatpush2.msra.mxu0 0.0
      %5462 = vmatprep.subr.mxu0 0.0
      %5463 = vmatpush2.msra.mxu0 0.0
      %5464 = vmatprep.subr.mxu0 0.0
      %5465 = vmatpush2.msra.mxu0 0.0
      %5466 = vmatprep.subr.mxu0 0.0
      %5467 = vmatpush2.msra.mxu0 0.0
      %5468 = vmatprep.mubr.f32.mxu0 0.0
      %5469 = vmatmul.mubr.f32.gmra.mxu0 %v5393
      %v5470 = vpop.f32.mrf.mxu0
      %v5471 = vadd.f32 0.0, %v5470
      %v5472 = vpop.f32.mrf.mxu0
      %v5473 = vadd.f32 0.0, %v5472
      %5474 = vmatprep.mubr.f32.mxu0 0.0
      %5475 = vmatmul.mubr.f32.gmra.mxu0 %v5396
      %v5476 = vpop.f32.mrf.mxu0
      %v5477 = vadd.f32 0.0, %v5476
      %v5478 = vpop.f32.mrf.mxu0
      %v5479 = vadd.f32 0.0, %v5478
      %5480 = vmatprep.mubr.f32.mxu0 0.0
      %5481 = vmatmul.mubr.f32.gmra.mxu0 %v5399
      %v5482 = vpop.f32.mrf.mxu0
      %v5483 = vadd.f32 0.0, %v5482
      %v5484 = vpop.f32.mrf.mxu0
      %v5485 = vadd.f32 0.0, %v5484
      %5486 = vmatprep.mubr.f32.mxu0 0.0
      %5487 = vmatmul.mubr.f32.gmra.mxu0 %v5402
      %v5488 = vpop.f32.mrf.mxu0
      %v5489 = vadd.f32 0.0, %v5488
      %v5490 = vpop.f32.mrf.mxu0
      %v5491 = vadd.f32 0.0, %v5490
      %5492 = vdwg.mxu0
      %v5494 = vsel %vm2887, %v5346, 0
      %v5497 = vsel %vm2887, %v5347, 0
      %v5500 = vsel %vm2887, %v5348, 0
      %v5503 = vsel %vm2887, %v5349, 0
      %5505 = vmatprep.subr.mxu0 0.0
      %5506 = vmatpush1.msra.mxu0 0.0
      %5507 = vmatprep.subr.mxu0 0.0
      %5508 = vmatpush1.msra.mxu0 0.0
      %5509 = vmatprep.subr.mxu0 0.0
      %5510 = vmatpush1.msra.mxu0 0.0
      %5511 = vmatprep.subr.mxu0 0.0
      %5512 = vmatpush1.msra.mxu0 0.0
      %5513 = vmatprep.subr.mxu0 0.0
      %5514 = vmatpush1.msra.mxu0 0.0
      %5515 = vmatprep.subr.mxu0 0.0
      %5516 = vmatpush1.msra.mxu0 0.0
      %5517 = vmatprep.subr.mxu0 0.0
      %5518 = vmatpush1.msra.mxu0 0.0
      %5519 = vmatprep.subr.mxu0 0.0
      %5520 = vmatpush1.msra.mxu0 0.0
      %5521 = vmatprep.subr.mxu0 0.0
      %5522 = vmatpush1.msra.mxu0 0.0
      %5523 = vmatprep.subr.mxu0 0.0
      %5524 = vmatpush1.msra.mxu0 0.0
      %5525 = vmatprep.subr.mxu0 0.0
      %5526 = vmatpush1.msra.mxu0 0.0
      %5527 = vmatprep.subr.mxu0 0.0
      %5528 = vmatpush1.msra.mxu0 0.0
      %5529 = vmatprep.subr.mxu0 %v5343
      %5530 = vmatpush1.msra.mxu0 %v5342
      %5531 = vmatprep.subr.mxu0 %v5340
      %5532 = vmatpush1.msra.mxu0 %v5339
      %5533 = vmatprep.subr.mxu0 %v5337
      %5534 = vmatpush1.msra.mxu0 %v5336
      %5535 = vmatprep.subr.mxu0 %v5334
      %5536 = vmatpush1.msra.mxu0 %v5333
      %5537 = vmatprep.subr.mxu0 0.0
      %5538 = vmatpush2.msra.mxu0 0.0
      %5539 = vmatprep.subr.mxu0 0.0
      %5540 = vmatpush2.msra.mxu0 0.0
      %5541 = vmatprep.subr.mxu0 0.0
      %5542 = vmatpush2.msra.mxu0 0.0
      %5543 = vmatprep.subr.mxu0 0.0
      %5544 = vmatpush2.msra.mxu0 0.0
      %5545 = vmatprep.subr.mxu0 0.0
      %5546 = vmatpush2.msra.mxu0 0.0
      %5547 = vmatprep.subr.mxu0 0.0
      %5548 = vmatpush2.msra.mxu0 0.0
      %5549 = vmatprep.subr.mxu0 0.0
      %5550 = vmatpush2.msra.mxu0 0.0
      %5551 = vmatprep.subr.mxu0 0.0
      %5552 = vmatpush2.msra.mxu0 0.0
      %5553 = vmatprep.subr.mxu0 0.0
      %5554 = vmatpush2.msra.mxu0 0.0
      %5555 = vmatprep.subr.mxu0 0.0
      %5556 = vmatpush2.msra.mxu0 0.0
      %5557 = vmatprep.subr.mxu0 0.0
      %5558 = vmatpush2.msra.mxu0 0.0
      %5559 = vmatprep.subr.mxu0 0.0
      %5560 = vmatpush2.msra.mxu0 0.0
      %5561 = vmatprep.subr.mxu0 0.0
      %5562 = vmatpush2.msra.mxu0 0.0
      %5563 = vmatprep.subr.mxu0 0.0
      %5564 = vmatpush2.msra.mxu0 0.0
      %5565 = vmatprep.subr.mxu0 0.0
      %5566 = vmatpush2.msra.mxu0 0.0
      %5567 = vmatprep.subr.mxu0 0.0
      %5568 = vmatpush2.msra.mxu0 0.0
      %5569 = vmatprep.mubr.f32.mxu0 0.0
      %5570 = vmatmul.mubr.f32.gmra.mxu0 %v5494
      %v5571 = vpop.f32.mrf.mxu0
      %v5572 = vadd.f32 %v5471, %v5571
      %v5573 = vpop.f32.mrf.mxu0
      %v5574 = vadd.f32 %v5473, %v5573
      %5575 = vmatprep.mubr.f32.mxu0 0.0
      %5576 = vmatmul.mubr.f32.gmra.mxu0 %v5497
      %v5577 = vpop.f32.mrf.mxu0
      %v5578 = vadd.f32 %v5477, %v5577
      %v5579 = vpop.f32.mrf.mxu0
      %v5580 = vadd.f32 %v5479, %v5579
      %5581 = vmatprep.mubr.f32.mxu0 0.0
      %5582 = vmatmul.mubr.f32.gmra.mxu0 %v5500
      %v5583 = vpop.f32.mrf.mxu0
      %v5584 = vadd.f32 %v5483, %v5583
      %v5585 = vpop.f32.mrf.mxu0
      %v5586 = vadd.f32 %v5485, %v5585
      %5587 = vmatprep.mubr.f32.mxu0 0.0
      %5588 = vmatmul.mubr.f32.gmra.mxu0 %v5503
      %v5589 = vpop.f32.mrf.mxu0
      %v5590 = vadd.f32 %v5489, %v5589
      %v5591 = vpop.f32.mrf.mxu0
      %v5592 = vadd.f32 %v5491, %v5591
      %5593 = vdwg.mxu0
      %s5594 = scalar_lea.vmem %s6, 96
      %v5595 = vld [vmem:[%s5594] sm:$0xff]
      %v5596 = vld [vmem:[%s5594 + $0x8] sm:$0xff]
      %v5597 = vld [vmem:[%s5594 + $0x10] sm:$0xff]
      %v5598 = vld [vmem:[%s5594 + $0x18] sm:$0xff]
      %5600 = vset.pattern.permute.xlu0 0
      %5601 = vperm.xlu0 %5600, %v5595
      %v5602 = vpop.permute.xlu0 %5601
      %5605 = vset.pattern.permute.xlu0 0
      %5606 = vperm.xlu0 %5605, %v5596
      %v5607 = vpop.permute.xlu0 %5606
      %5610 = vset.pattern.permute.xlu0 0
      %5611 = vperm.xlu0 %5610, %v5597
      %v5612 = vpop.permute.xlu0 %5611
      %5615 = vset.pattern.permute.xlu0 0
      %5616 = vperm.xlu0 %5615, %v5598
      %v5617 = vpop.permute.xlu0 %5616
      %v5619 = vadd.f32 %v5572, %v5602
      %v5620 = vadd.f32 %v5574, %v5602
      %v5621 = vadd.f32 %v5578, %v5607
      %v5622 = vadd.f32 %v5580, %v5607
      %v5623 = vadd.f32 %v5584, %v5612
      %v5624 = vadd.f32 %v5586, %v5612
      %v5625 = vadd.f32 %v5590, %v5617
      %v5626 = vadd.f32 %v5592, %v5617
      %v5627 = vmax.f32 %v5619, 0.0
      %v5628 = vmax.f32 %v5620, 0.0
      %v5629 = vmax.f32 %v5621, 0.0
      %v5630 = vmax.f32 %v5622, 0.0
      %v5631 = vmax.f32 %v5623, 0.0
      %v5632 = vmax.f32 %v5624, 0.0
      %v5633 = vmax.f32 %v5625, 0.0
      %v5634 = vmax.f32 %v5626, 0.0
      %s5635 = scalar_lea.vmem %s4, 128
      %v5636 = vld [vmem:[%s5635] sm:$0xff]
      %v5637 = vld [vmem:[%s5635 + $0x8] sm:$0xff]
      %v5638 = vld [vmem:[%s5635 + $0x10] sm:$0xff]
      %v5639 = vld [vmem:[%s5635 + $0x18] sm:$0xff]
      %s5640 = scalar_lea.vmem %s5, 128
      %v5641 = vld [vmem:[%s5640] sm:$0xff]
      %v5642 = vld [vmem:[%s5640 + $0x8] sm:$0xff]
      %v5643 = vld [vmem:[%s5640 + $0x10] sm:$0xff]
      %v5644 = vld [vmem:[%s5640 + $0x18] sm:$0xff]
      %5653 = vrot.lane.b32.xlu0 %v5627, 40
      %v5654 = vpop.permute.xlu0 %5653
      %5655 = vrot.lane.b32.xlu0 %v5628, 40
      %v5656 = vpop.permute.xlu0 %5655
      %5657 = vrot.lane.b32.xlu0 %v5629, 40
      %v5658 = vpop.permute.xlu0 %5657
      %5659 = vrot.lane.b32.xlu0 %v5630, 40
      %v5660 = vpop.permute.xlu0 %5659
      %5661 = vrot.lane.b32.xlu0 %v5631, 40
      %v5662 = vpop.permute.xlu0 %5661
      %5663 = vrot.lane.b32.xlu0 %v5632, 40
      %v5664 = vpop.permute.xlu0 %5663
      %5665 = vrot.lane.b32.xlu0 %v5633, 40
      %v5666 = vpop.permute.xlu0 %5665
      %5667 = vrot.lane.b32.xlu0 %v5634, 40
      %v5668 = vpop.permute.xlu0 %5667
      %vm5669 = vcmask 326656
      %v5670 = vsel %vm5669, %v5654, %v5656
      %v5671 = vsel %vm5669, %v5658, %v5660
      %v5672 = vsel %vm5669, %v5662, %v5664
      %v5673 = vsel %vm5669, %v5666, %v5668
      %v5679 = vsel %vm2887, %v5641, 0
      %v5682 = vsel %vm2887, %v5642, 0
      %v5685 = vsel %vm2887, %v5643, 0
      %v5688 = vsel %vm2887, %v5644, 0
      %5690 = vmatprep.subr.mxu0 0.0
      %5691 = vmatpush1.msra.mxu0 0.0
      %5692 = vmatprep.subr.mxu0 0.0
      %5693 = vmatpush1.msra.mxu0 0.0
      %5694 = vmatprep.subr.mxu0 0.0
      %5695 = vmatpush1.msra.mxu0 0.0
      %5696 = vmatprep.subr.mxu0 0.0
      %5697 = vmatpush1.msra.mxu0 0.0
      %5698 = vmatprep.subr.mxu0 0.0
      %5699 = vmatpush1.msra.mxu0 0.0
      %5700 = vmatprep.subr.mxu0 0.0
      %5701 = vmatpush1.msra.mxu0 0.0
      %5702 = vmatprep.subr.mxu0 0.0
      %5703 = vmatpush1.msra.mxu0 0.0
      %5704 = vmatprep.subr.mxu0 0.0
      %5705 = vmatpush1.msra.mxu0 0.0
      %5706 = vmatprep.subr.mxu0 0.0
      %5707 = vmatpush1.msra.mxu0 0.0
      %5708 = vmatprep.subr.mxu0 0.0
      %5709 = vmatpush1.msra.mxu0 0.0
      %5710 = vmatprep.subr.mxu0 0.0
      %5711 = vmatpush1.msra.mxu0 0.0
      %5712 = vmatprep.subr.mxu0 0.0
      %5713 = vmatpush1.msra.mxu0 0.0
      %5714 = vmatprep.subr.mxu0 0.0
      %5715 = vmatpush1.msra.mxu0 %v5673
      %5716 = vmatprep.subr.mxu0 0.0
      %5717 = vmatpush1.msra.mxu0 %v5672
      %5718 = vmatprep.subr.mxu0 0.0
      %5719 = vmatpush1.msra.mxu0 %v5671
      %5720 = vmatprep.subr.mxu0 0.0
      %5721 = vmatpush1.msra.mxu0 %v5670
      %5722 = vmatprep.subr.mxu0 0.0
      %5723 = vmatpush2.msra.mxu0 0.0
      %5724 = vmatprep.subr.mxu0 0.0
      %5725 = vmatpush2.msra.mxu0 0.0
      %5726 = vmatprep.subr.mxu0 0.0
      %5727 = vmatpush2.msra.mxu0 0.0
      %5728 = vmatprep.subr.mxu0 0.0
      %5729 = vmatpush2.msra.mxu0 0.0
      %5730 = vmatprep.subr.mxu0 0.0
      %5731 = vmatpush2.msra.mxu0 0.0
      %5732 = vmatprep.subr.mxu0 0.0
      %5733 = vmatpush2.msra.mxu0 0.0
      %5734 = vmatprep.subr.mxu0 0.0
      %5735 = vmatpush2.msra.mxu0 0.0
      %5736 = vmatprep.subr.mxu0 0.0
      %5737 = vmatpush2.msra.mxu0 0.0
      %5738 = vmatprep.subr.mxu0 0.0
      %5739 = vmatpush2.msra.mxu0 0.0
      %5740 = vmatprep.subr.mxu0 0.0
      %5741 = vmatpush2.msra.mxu0 0.0
      %5742 = vmatprep.subr.mxu0 0.0
      %5743 = vmatpush2.msra.mxu0 0.0
      %5744 = vmatprep.subr.mxu0 0.0
      %5745 = vmatpush2.msra.mxu0 0.0
      %5746 = vmatprep.subr.mxu0 0.0
      %5747 = vmatpush2.msra.mxu0 0.0
      %5748 = vmatprep.subr.mxu0 0.0
      %5749 = vmatpush2.msra.mxu0 0.0
      %5750 = vmatprep.subr.mxu0 0.0
      %5751 = vmatpush2.msra.mxu0 0.0
      %5752 = vmatprep.subr.mxu0 0.0
      %5753 = vmatpush2.msra.mxu0 0.0
      %5754 = vmatprep.mubr.f32.mxu0 0.0
      %5755 = vmatmul.mubr.f32.gmra.mxu0 %v5679
      %v5756 = vpop.f32.mrf.mxu0
      %v5757 = vadd.f32 0.0, %v5756
      %v5758 = vpop.f32.mrf.mxu0
      %5759 = vmatprep.mubr.f32.mxu0 0.0
      %5760 = vmatmul.mubr.f32.gmra.mxu0 %v5682
      %v5761 = vpop.f32.mrf.mxu0
      %v5762 = vadd.f32 0.0, %v5761
      %v5763 = vpop.f32.mrf.mxu0
      %5764 = vmatprep.mubr.f32.mxu0 0.0
      %5765 = vmatmul.mubr.f32.gmra.mxu0 %v5685
      %v5766 = vpop.f32.mrf.mxu0
      %v5767 = vadd.f32 0.0, %v5766
      %v5768 = vpop.f32.mrf.mxu0
      %5769 = vmatprep.mubr.f32.mxu0 0.0
      %5770 = vmatmul.mubr.f32.gmra.mxu0 %v5688
      %v5771 = vpop.f32.mrf.mxu0
      %v5772 = vadd.f32 0.0, %v5771
      %v5773 = vpop.f32.mrf.mxu0
      %5774 = vdwg.mxu0
      %v5776 = vsel %vm2887, %v5636, 0
      %v5779 = vsel %vm2887, %v5637, 0
      %v5782 = vsel %vm2887, %v5638, 0
      %v5785 = vsel %vm2887, %v5639, 0
      %5787 = vmatprep.subr.mxu0 0.0
      %5788 = vmatpush1.msra.mxu0 0.0
      %5789 = vmatprep.subr.mxu0 0.0
      %5790 = vmatpush1.msra.mxu0 0.0
      %5791 = vmatprep.subr.mxu0 0.0
      %5792 = vmatpush1.msra.mxu0 0.0
      %5793 = vmatprep.subr.mxu0 0.0
      %5794 = vmatpush1.msra.mxu0 0.0
      %5795 = vmatprep.subr.mxu0 0.0
      %5796 = vmatpush1.msra.mxu0 0.0
      %5797 = vmatprep.subr.mxu0 0.0
      %5798 = vmatpush1.msra.mxu0 0.0
      %5799 = vmatprep.subr.mxu0 0.0
      %5800 = vmatpush1.msra.mxu0 0.0
      %5801 = vmatprep.subr.mxu0 0.0
      %5802 = vmatpush1.msra.mxu0 0.0
      %5803 = vmatprep.subr.mxu0 0.0
      %5804 = vmatpush1.msra.mxu0 0.0
      %5805 = vmatprep.subr.mxu0 0.0
      %5806 = vmatpush1.msra.mxu0 0.0
      %5807 = vmatprep.subr.mxu0 0.0
      %5808 = vmatpush1.msra.mxu0 0.0
      %5809 = vmatprep.subr.mxu0 0.0
      %5810 = vmatpush1.msra.mxu0 0.0
      %5811 = vmatprep.subr.mxu0 0.0
      %5812 = vmatpush1.msra.mxu0 %v5633
      %5813 = vmatprep.subr.mxu0 0.0
      %5814 = vmatpush1.msra.mxu0 %v5631
      %5815 = vmatprep.subr.mxu0 0.0
      %5816 = vmatpush1.msra.mxu0 %v5629
      %5817 = vmatprep.subr.mxu0 0.0
      %5818 = vmatpush1.msra.mxu0 %v5627
      %5819 = vmatprep.subr.mxu0 0.0
      %5820 = vmatpush2.msra.mxu0 0.0
      %5821 = vmatprep.subr.mxu0 0.0
      %5822 = vmatpush2.msra.mxu0 0.0
      %5823 = vmatprep.subr.mxu0 0.0
      %5824 = vmatpush2.msra.mxu0 0.0
      %5825 = vmatprep.subr.mxu0 0.0
      %5826 = vmatpush2.msra.mxu0 0.0
      %5827 = vmatprep.subr.mxu0 0.0
      %5828 = vmatpush2.msra.mxu0 0.0
      %5829 = vmatprep.subr.mxu0 0.0
      %5830 = vmatpush2.msra.mxu0 0.0
      %5831 = vmatprep.subr.mxu0 0.0
      %5832 = vmatpush2.msra.mxu0 0.0
      %5833 = vmatprep.subr.mxu0 0.0
      %5834 = vmatpush2.msra.mxu0 0.0
      %5835 = vmatprep.subr.mxu0 0.0
      %5836 = vmatpush2.msra.mxu0 0.0
      %5837 = vmatprep.subr.mxu0 0.0
      %5838 = vmatpush2.msra.mxu0 0.0
      %5839 = vmatprep.subr.mxu0 0.0
      %5840 = vmatpush2.msra.mxu0 0.0
      %5841 = vmatprep.subr.mxu0 0.0
      %5842 = vmatpush2.msra.mxu0 0.0
      %5843 = vmatprep.subr.mxu0 0.0
      %5844 = vmatpush2.msra.mxu0 0.0
      %5845 = vmatprep.subr.mxu0 0.0
      %5846 = vmatpush2.msra.mxu0 0.0
      %5847 = vmatprep.subr.mxu0 0.0
      %5848 = vmatpush2.msra.mxu0 0.0
      %5849 = vmatprep.subr.mxu0 0.0
      %5850 = vmatpush2.msra.mxu0 0.0
      %5851 = vmatprep.mubr.f32.mxu0 0.0
      %5852 = vmatmul.mubr.f32.gmra.mxu0 %v5776
      %v5853 = vpop.f32.mrf.mxu0
      %v5854 = vadd.f32 %v5757, %v5853
      %v5855 = vpop.f32.mrf.mxu0
      %5856 = vmatprep.mubr.f32.mxu0 0.0
      %5857 = vmatmul.mubr.f32.gmra.mxu0 %v5779
      %v5858 = vpop.f32.mrf.mxu0
      %v5859 = vadd.f32 %v5762, %v5858
      %v5860 = vpop.f32.mrf.mxu0
      %5861 = vmatprep.mubr.f32.mxu0 0.0
      %5862 = vmatmul.mubr.f32.gmra.mxu0 %v5782
      %v5863 = vpop.f32.mrf.mxu0
      %v5864 = vadd.f32 %v5767, %v5863
      %v5865 = vpop.f32.mrf.mxu0
      %5866 = vmatprep.mubr.f32.mxu0 0.0
      %5867 = vmatmul.mubr.f32.gmra.mxu0 %v5785
      %v5868 = vpop.f32.mrf.mxu0
      %v5869 = vadd.f32 %v5772, %v5868
      %v5870 = vpop.f32.mrf.mxu0
      %5871 = vdwg.mxu0
      %s5872 = scalar_lea.vmem %s6, 128
      %v5873 = vld [vmem:[%s5872] sm:$0xff]
      %v5874 = vld [vmem:[%s5872 + $0x8] sm:$0xff]
      %v5875 = vld [vmem:[%s5872 + $0x10] sm:$0xff]
      %v5876 = vld [vmem:[%s5872 + $0x18] sm:$0xff]
      %5878 = vset.pattern.permute.xlu0 0
      %5879 = vperm.xlu0 %5878, %v5873
      %v5880 = vpop.permute.xlu0 %5879
      %5883 = vset.pattern.permute.xlu0 0
      %5884 = vperm.xlu0 %5883, %v5874
      %v5885 = vpop.permute.xlu0 %5884
      %5888 = vset.pattern.permute.xlu0 0
      %5889 = vperm.xlu0 %5888, %v5875
      %v5890 = vpop.permute.xlu0 %5889
      %5893 = vset.pattern.permute.xlu0 0
      %5894 = vperm.xlu0 %5893, %v5876
      %v5895 = vpop.permute.xlu0 %5894
      %v5897 = vadd.f32 %v5854, %v5880
      %v5898 = vadd.f32 %v5859, %v5885
      %v5899 = vadd.f32 %v5864, %v5890
      %v5900 = vadd.f32 %v5869, %v5895
      %v5901 = vmax.f32 %v5897, 0.0
      %v5902 = vmax.f32 %v5898, 0.0
      %v5903 = vmax.f32 %v5899, 0.0
      %v5904 = vmax.f32 %v5900, 0.0
      %s5905 = scalar_lea.vmem %s4, 160
      %v5906 = vld [vmem:[%s5905] sm:$0xff]
      %v5907 = vld [vmem:[%s5905 + $0x8] sm:$0xff]
      %v5908 = vld [vmem:[%s5905 + $0x10] sm:$0xff]
      %v5909 = vld [vmem:[%s5905 + $0x18] sm:$0xff]
      %s5910 = scalar_lea.vmem %s5, 160
      %v5911 = vld [vmem:[%s5910] sm:$0xff]
      %v5912 = vld [vmem:[%s5910 + $0x8] sm:$0xff]
      %v5913 = vld [vmem:[%s5910 + $0x10] sm:$0xff]
      %v5914 = vld [vmem:[%s5910 + $0x18] sm:$0xff]
      %5919 = vrot.lane.b32.xlu0 %v5901, 84
      %v5920 = vpop.permute.xlu0 %5919
      %5921 = vrot.lane.b32.xlu0 %v5902, 84
      %v5922 = vpop.permute.xlu0 %5921
      %5923 = vrot.lane.b32.xlu0 %v5903, 84
      %v5924 = vpop.permute.xlu0 %5923
      %5925 = vrot.lane.b32.xlu0 %v5904, 84
      %v5926 = vpop.permute.xlu0 %5925
      %v5932 = vsel %vm2887, %v5911, 0
      %v5935 = vsel %vm2887, %v5912, 0
      %v5938 = vsel %vm2887, %v5913, 0
      %v5941 = vsel %vm2887, %v5914, 0
      %5943 = vmatprep.subr.mxu0 0.0
      %5944 = vmatpush1.msra.mxu0 0.0
      %5945 = vmatprep.subr.mxu0 0.0
      %5946 = vmatpush1.msra.mxu0 0.0
      %5947 = vmatprep.subr.mxu0 0.0
      %5948 = vmatpush1.msra.mxu0 0.0
      %5949 = vmatprep.subr.mxu0 0.0
      %5950 = vmatpush1.msra.mxu0 0.0
      %5951 = vmatprep.subr.mxu0 0.0
      %5952 = vmatpush1.msra.mxu0 0.0
      %5953 = vmatprep.subr.mxu0 0.0
      %5954 = vmatpush1.msra.mxu0 0.0
      %5955 = vmatprep.subr.mxu0 0.0
      %5956 = vmatpush1.msra.mxu0 0.0
      %5957 = vmatprep.subr.mxu0 0.0
      %5958 = vmatpush1.msra.mxu0 0.0
      %5959 = vmatprep.subr.mxu0 0.0
      %5960 = vmatpush1.msra.mxu0 0.0
      %5961 = vmatprep.subr.mxu0 0.0
      %5962 = vmatpush1.msra.mxu0 0.0
      %5963 = vmatprep.subr.mxu0 0.0
      %5964 = vmatpush1.msra.mxu0 0.0
      %5965 = vmatprep.subr.mxu0 0.0
      %5966 = vmatpush1.msra.mxu0 0.0
      %5967 = vmatprep.subr.mxu0 0.0
      %5968 = vmatpush1.msra.mxu0 %v5926
      %5969 = vmatprep.subr.mxu0 0.0
      %5970 = vmatpush1.msra.mxu0 %v5924
      %5971 = vmatprep.subr.mxu0 0.0
      %5972 = vmatpush1.msra.mxu0 %v5922
      %5973 = vmatprep.subr.mxu0 0.0
      %5974 = vmatpush1.msra.mxu0 %v5920
      %5975 = vmatprep.subr.mxu0 0.0
      %5976 = vmatpush2.msra.mxu0 0.0
      %5977 = vmatprep.subr.mxu0 0.0
      %5978 = vmatpush2.msra.mxu0 0.0
      %5979 = vmatprep.subr.mxu0 0.0
      %5980 = vmatpush2.msra.mxu0 0.0
      %5981 = vmatprep.subr.mxu0 0.0
      %5982 = vmatpush2.msra.mxu0 0.0
      %5983 = vmatprep.subr.mxu0 0.0
      %5984 = vmatpush2.msra.mxu0 0.0
      %5985 = vmatprep.subr.mxu0 0.0
      %5986 = vmatpush2.msra.mxu0 0.0
      %5987 = vmatprep.subr.mxu0 0.0
      %5988 = vmatpush2.msra.mxu0 0.0
      %5989 = vmatprep.subr.mxu0 0.0
      %5990 = vmatpush2.msra.mxu0 0.0
      %5991 = vmatprep.subr.mxu0 0.0
      %5992 = vmatpush2.msra.mxu0 0.0
      %5993 = vmatprep.subr.mxu0 0.0
      %5994 = vmatpush2.msra.mxu0 0.0
      %5995 = vmatprep.subr.mxu0 0.0
      %5996 = vmatpush2.msra.mxu0 0.0
      %5997 = vmatprep.subr.mxu0 0.0
      %5998 = vmatpush2.msra.mxu0 0.0
      %5999 = vmatprep.subr.mxu0 0.0
      %6000 = vmatpush2.msra.mxu0 0.0
      %6001 = vmatprep.subr.mxu0 0.0
      %6002 = vmatpush2.msra.mxu0 0.0
      %6003 = vmatprep.subr.mxu0 0.0
      %6004 = vmatpush2.msra.mxu0 0.0
      %6005 = vmatprep.subr.mxu0 0.0
      %6006 = vmatpush2.msra.mxu0 0.0
      %6007 = vmatprep.mubr.f32.mxu0 0.0
      %6008 = vmatmul.mubr.f32.gmra.mxu0 %v5932
      %v6009 = vpop.f32.mrf.mxu0
      %v6010 = vadd.f32 0.0, %v6009
      %v6011 = vpop.f32.mrf.mxu0
      %6012 = vmatprep.mubr.f32.mxu0 0.0
      %6013 = vmatmul.mubr.f32.gmra.mxu0 %v5935
      %v6014 = vpop.f32.mrf.mxu0
      %v6015 = vadd.f32 0.0, %v6014
      %v6016 = vpop.f32.mrf.mxu0
      %6017 = vmatprep.mubr.f32.mxu0 0.0
      %6018 = vmatmul.mubr.f32.gmra.mxu0 %v5938
      %v6019 = vpop.f32.mrf.mxu0
      %v6020 = vadd.f32 0.0, %v6019
      %v6021 = vpop.f32.mrf.mxu0
      %6022 = vmatprep.mubr.f32.mxu0 0.0
      %6023 = vmatmul.mubr.f32.gmra.mxu0 %v5941
      %v6024 = vpop.f32.mrf.mxu0
      %v6025 = vadd.f32 0.0, %v6024
      %v6026 = vpop.f32.mrf.mxu0
      %6027 = vdwg.mxu0
      %v6029 = vsel %vm2887, %v5906, 0
      %v6032 = vsel %vm2887, %v5907, 0
      %v6035 = vsel %vm2887, %v5908, 0
      %v6038 = vsel %vm2887, %v5909, 0
      %6040 = vmatprep.subr.mxu0 0.0
      %6041 = vmatpush1.msra.mxu0 0.0
      %6042 = vmatprep.subr.mxu0 0.0
      %6043 = vmatpush1.msra.mxu0 0.0
      %6044 = vmatprep.subr.mxu0 0.0
      %6045 = vmatpush1.msra.mxu0 0.0
      %6046 = vmatprep.subr.mxu0 0.0
      %6047 = vmatpush1.msra.mxu0 0.0
      %6048 = vmatprep.subr.mxu0 0.0
      %6049 = vmatpush1.msra.mxu0 0.0
      %6050 = vmatprep.subr.mxu0 0.0
      %6051 = vmatpush1.msra.mxu0 0.0
      %6052 = vmatprep.subr.mxu0 0.0
      %6053 = vmatpush1.msra.mxu0 0.0
      %6054 = vmatprep.subr.mxu0 0.0
      %6055 = vmatpush1.msra.mxu0 0.0
      %6056 = vmatprep.subr.mxu0 0.0
      %6057 = vmatpush1.msra.mxu0 0.0
      %6058 = vmatprep.subr.mxu0 0.0
      %6059 = vmatpush1.msra.mxu0 0.0
      %6060 = vmatprep.subr.mxu0 0.0
      %6061 = vmatpush1.msra.mxu0 0.0
      %6062 = vmatprep.subr.mxu0 0.0
      %6063 = vmatpush1.msra.mxu0 0.0
      %6064 = vmatprep.subr.mxu0 0.0
      %6065 = vmatpush1.msra.mxu0 %v5904
      %6066 = vmatprep.subr.mxu0 0.0
      %6067 = vmatpush1.msra.mxu0 %v5903
      %6068 = vmatprep.subr.mxu0 0.0
      %6069 = vmatpush1.msra.mxu0 %v5902
      %6070 = vmatprep.subr.mxu0 0.0
      %6071 = vmatpush1.msra.mxu0 %v5901
      %6072 = vmatprep.subr.mxu0 0.0
      %6073 = vmatpush2.msra.mxu0 0.0
      %6074 = vmatprep.subr.mxu0 0.0
      %6075 = vmatpush2.msra.mxu0 0.0
      %6076 = vmatprep.subr.mxu0 0.0
      %6077 = vmatpush2.msra.mxu0 0.0
      %6078 = vmatprep.subr.mxu0 0.0
      %6079 = vmatpush2.msra.mxu0 0.0
      %6080 = vmatprep.subr.mxu0 0.0
      %6081 = vmatpush2.msra.mxu0 0.0
      %6082 = vmatprep.subr.mxu0 0.0
      %6083 = vmatpush2.msra.mxu0 0.0
      %6084 = vmatprep.subr.mxu0 0.0
      %6085 = vmatpush2.msra.mxu0 0.0
      %6086 = vmatprep.subr.mxu0 0.0
      %6087 = vmatpush2.msra.mxu0 0.0
      %6088 = vmatprep.subr.mxu0 0.0
      %6089 = vmatpush2.msra.mxu0 0.0
      %6090 = vmatprep.subr.mxu0 0.0
      %6091 = vmatpush2.msra.mxu0 0.0
      %6092 = vmatprep.subr.mxu0 0.0
      %6093 = vmatpush2.msra.mxu0 0.0
      %6094 = vmatprep.subr.mxu0 0.0
      %6095 = vmatpush2.msra.mxu0 0.0
      %6096 = vmatprep.subr.mxu0 0.0
      %6097 = vmatpush2.msra.mxu0 0.0
      %6098 = vmatprep.subr.mxu0 0.0
      %6099 = vmatpush2.msra.mxu0 0.0
      %6100 = vmatprep.subr.mxu0 0.0
      %6101 = vmatpush2.msra.mxu0 0.0
      %6102 = vmatprep.subr.mxu0 0.0
      %6103 = vmatpush2.msra.mxu0 0.0
      %6104 = vmatprep.mubr.f32.mxu0 0.0
      %6105 = vmatmul.mubr.f32.gmra.mxu0 %v6029
      %v6106 = vpop.f32.mrf.mxu0
      %v6107 = vadd.f32 %v6010, %v6106
      %v6108 = vpop.f32.mrf.mxu0
      %6109 = vmatprep.mubr.f32.mxu0 0.0
      %6110 = vmatmul.mubr.f32.gmra.mxu0 %v6032
      %v6111 = vpop.f32.mrf.mxu0
      %v6112 = vadd.f32 %v6015, %v6111
      %v6113 = vpop.f32.mrf.mxu0
      %6114 = vmatprep.mubr.f32.mxu0 0.0
      %6115 = vmatmul.mubr.f32.gmra.mxu0 %v6035
      %v6116 = vpop.f32.mrf.mxu0
      %v6117 = vadd.f32 %v6020, %v6116
      %v6118 = vpop.f32.mrf.mxu0
      %6119 = vmatprep.mubr.f32.mxu0 0.0
      %6120 = vmatmul.mubr.f32.gmra.mxu0 %v6038
      %v6121 = vpop.f32.mrf.mxu0
      %v6122 = vadd.f32 %v6025, %v6121
      %v6123 = vpop.f32.mrf.mxu0
      %6124 = vdwg.mxu0
      %s6125 = scalar_lea.vmem %s6, 160
      %v6126 = vld [vmem:[%s6125] sm:$0xff]
      %v6127 = vld [vmem:[%s6125 + $0x8] sm:$0xff]
      %v6128 = vld [vmem:[%s6125 + $0x10] sm:$0xff]
      %v6129 = vld [vmem:[%s6125 + $0x18] sm:$0xff]
      %6131 = vset.pattern.permute.xlu0 0
      %6132 = vperm.xlu0 %6131, %v6126
      %v6133 = vpop.permute.xlu0 %6132
      %6136 = vset.pattern.permute.xlu0 0
      %6137 = vperm.xlu0 %6136, %v6127
      %v6138 = vpop.permute.xlu0 %6137
      %6141 = vset.pattern.permute.xlu0 0
      %6142 = vperm.xlu0 %6141, %v6128
      %v6143 = vpop.permute.xlu0 %6142
      %6146 = vset.pattern.permute.xlu0 0
      %6147 = vperm.xlu0 %6146, %v6129
      %v6148 = vpop.permute.xlu0 %6147
      %v6150 = vadd.f32 %v6107, %v6133
      %v6151 = vadd.f32 %v6112, %v6138
      %v6152 = vadd.f32 %v6117, %v6143
      %v6153 = vadd.f32 %v6122, %v6148
      %v6154 = vmax.f32 %v6150, 0.0
      %v6155 = vmax.f32 %v6151, 0.0
      %v6156 = vmax.f32 %v6152, 0.0
      %v6157 = vmax.f32 %v6153, 0.0
      %s6158 = scalar_lea.vmem %s4, 192
      %v6159 = vld [vmem:[%s6158] sm:$0xff]
      %v6160 = vld [vmem:[%s6158 + $0x8] sm:$0xff]
      %v6161 = vld [vmem:[%s6158 + $0x10] sm:$0xff]
      %v6162 = vld [vmem:[%s6158 + $0x18] sm:$0xff]
      %s6163 = scalar_lea.vmem %s5, 192
      %v6164 = vld [vmem:[%s6163] sm:$0xff]
      %v6165 = vld [vmem:[%s6163 + $0x8] sm:$0xff]
      %v6166 = vld [vmem:[%s6163 + $0x10] sm:$0xff]
      %v6167 = vld [vmem:[%s6163 + $0x18] sm:$0xff]
      %6172 = vrot.lane.b32.xlu0 %v6154, 106
      %v6173 = vpop.permute.xlu0 %6172
      %6174 = vrot.lane.b32.xlu0 %v6155, 106
      %v6175 = vpop.permute.xlu0 %6174
      %6176 = vrot.lane.b32.xlu0 %v6156, 106
      %v6177 = vpop.permute.xlu0 %6176
      %6178 = vrot.lane.b32.xlu0 %v6157, 106
      %v6179 = vpop.permute.xlu0 %6178
      %v6185 = vsel %vm2887, %v6164, 0
      %v6188 = vsel %vm2887, %v6165, 0
      %v6191 = vsel %vm2887, %v6166, 0
      %v6194 = vsel %vm2887, %v6167, 0
      %6196 = vmatprep.subr.mxu0 0.0
      %6197 = vmatpush1.msra.mxu0 0.0
      %6198 = vmatprep.subr.mxu0 0.0
      %6199 = vmatpush1.msra.mxu0 0.0
      %6200 = vmatprep.subr.mxu0 0.0
      %6201 = vmatpush1.msra.mxu0 0.0
      %6202 = vmatprep.subr.mxu0 0.0
      %6203 = vmatpush1.msra.mxu0 0.0
      %6204 = vmatprep.subr.mxu0 0.0
      %6205 = vmatpush1.msra.mxu0 0.0
      %6206 = vmatprep.subr.mxu0 0.0
      %6207 = vmatpush1.msra.mxu0 0.0
      %6208 = vmatprep.subr.mxu0 0.0
      %6209 = vmatpush1.msra.mxu0 0.0
      %6210 = vmatprep.subr.mxu0 0.0
      %6211 = vmatpush1.msra.mxu0 0.0
      %6212 = vmatprep.subr.mxu0 0.0
      %6213 = vmatpush1.msra.mxu0 0.0
      %6214 = vmatprep.subr.mxu0 0.0
      %6215 = vmatpush1.msra.mxu0 0.0
      %6216 = vmatprep.subr.mxu0 0.0
      %6217 = vmatpush1.msra.mxu0 0.0
      %6218 = vmatprep.subr.mxu0 0.0
      %6219 = vmatpush1.msra.mxu0 0.0
      %6220 = vmatprep.subr.mxu0 0.0
      %6221 = vmatpush1.msra.mxu0 %v6179
      %6222 = vmatprep.subr.mxu0 0.0
      %6223 = vmatpush1.msra.mxu0 %v6177
      %6224 = vmatprep.subr.mxu0 0.0
      %6225 = vmatpush1.msra.mxu0 %v6175
      %6226 = vmatprep.subr.mxu0 0.0
      %6227 = vmatpush1.msra.mxu0 %v6173
      %6228 = vmatprep.subr.mxu0 0.0
      %6229 = vmatpush2.msra.mxu0 0.0
      %6230 = vmatprep.subr.mxu0 0.0
      %6231 = vmatpush2.msra.mxu0 0.0
      %6232 = vmatprep.subr.mxu0 0.0
      %6233 = vmatpush2.msra.mxu0 0.0
      %6234 = vmatprep.subr.mxu0 0.0
      %6235 = vmatpush2.msra.mxu0 0.0
      %6236 = vmatprep.subr.mxu0 0.0
      %6237 = vmatpush2.msra.mxu0 0.0
      %6238 = vmatprep.subr.mxu0 0.0
      %6239 = vmatpush2.msra.mxu0 0.0
      %6240 = vmatprep.subr.mxu0 0.0
      %6241 = vmatpush2.msra.mxu0 0.0
      %6242 = vmatprep.subr.mxu0 0.0
      %6243 = vmatpush2.msra.mxu0 0.0
      %6244 = vmatprep.subr.mxu0 0.0
      %6245 = vmatpush2.msra.mxu0 0.0
      %6246 = vmatprep.subr.mxu0 0.0
      %6247 = vmatpush2.msra.mxu0 0.0
      %6248 = vmatprep.subr.mxu0 0.0
      %6249 = vmatpush2.msra.mxu0 0.0
      %6250 = vmatprep.subr.mxu0 0.0
      %6251 = vmatpush2.msra.mxu0 0.0
      %6252 = vmatprep.subr.mxu0 0.0
      %6253 = vmatpush2.msra.mxu0 0.0
      %6254 = vmatprep.subr.mxu0 0.0
      %6255 = vmatpush2.msra.mxu0 0.0
      %6256 = vmatprep.subr.mxu0 0.0
      %6257 = vmatpush2.msra.mxu0 0.0
      %6258 = vmatprep.subr.mxu0 0.0
      %6259 = vmatpush2.msra.mxu0 0.0
      %6260 = vmatprep.mubr.f32.mxu0 0.0
      %6261 = vmatmul.mubr.f32.gmra.mxu0 %v6185
      %v6262 = vpop.f32.mrf.mxu0
      %v6263 = vadd.f32 0.0, %v6262
      %v6264 = vpop.f32.mrf.mxu0
      %6265 = vmatprep.mubr.f32.mxu0 0.0
      %6266 = vmatmul.mubr.f32.gmra.mxu0 %v6188
      %v6267 = vpop.f32.mrf.mxu0
      %v6268 = vadd.f32 0.0, %v6267
      %v6269 = vpop.f32.mrf.mxu0
      %6270 = vmatprep.mubr.f32.mxu0 0.0
      %6271 = vmatmul.mubr.f32.gmra.mxu0 %v6191
      %v6272 = vpop.f32.mrf.mxu0
      %v6273 = vadd.f32 0.0, %v6272
      %v6274 = vpop.f32.mrf.mxu0
      %6275 = vmatprep.mubr.f32.mxu0 0.0
      %6276 = vmatmul.mubr.f32.gmra.mxu0 %v6194
      %v6277 = vpop.f32.mrf.mxu0
      %v6278 = vadd.f32 0.0, %v6277
      %v6279 = vpop.f32.mrf.mxu0
      %6280 = vdwg.mxu0
      %v6282 = vsel %vm2887, %v6159, 0
      %v6285 = vsel %vm2887, %v6160, 0
      %v6288 = vsel %vm2887, %v6161, 0
      %v6291 = vsel %vm2887, %v6162, 0
      %6293 = vmatprep.subr.mxu0 0.0
      %6294 = vmatpush1.msra.mxu0 0.0
      %6295 = vmatprep.subr.mxu0 0.0
      %6296 = vmatpush1.msra.mxu0 0.0
      %6297 = vmatprep.subr.mxu0 0.0
      %6298 = vmatpush1.msra.mxu0 0.0
      %6299 = vmatprep.subr.mxu0 0.0
      %6300 = vmatpush1.msra.mxu0 0.0
      %6301 = vmatprep.subr.mxu0 0.0
      %6302 = vmatpush1.msra.mxu0 0.0
      %6303 = vmatprep.subr.mxu0 0.0
      %6304 = vmatpush1.msra.mxu0 0.0
      %6305 = vmatprep.subr.mxu0 0.0
      %6306 = vmatpush1.msra.mxu0 0.0
      %6307 = vmatprep.subr.mxu0 0.0
      %6308 = vmatpush1.msra.mxu0 0.0
      %6309 = vmatprep.subr.mxu0 0.0
      %6310 = vmatpush1.msra.mxu0 0.0
      %6311 = vmatprep.subr.mxu0 0.0
      %6312 = vmatpush1.msra.mxu0 0.0
      %6313 = vmatprep.subr.mxu0 0.0
      %6314 = vmatpush1.msra.mxu0 0.0
      %6315 = vmatprep.subr.mxu0 0.0
      %6316 = vmatpush1.msra.mxu0 0.0
      %6317 = vmatprep.subr.mxu0 0.0
      %6318 = vmatpush1.msra.mxu0 %v6157
      %6319 = vmatprep.subr.mxu0 0.0
      %6320 = vmatpush1.msra.mxu0 %v6156
      %6321 = vmatprep.subr.mxu0 0.0
      %6322 = vmatpush1.msra.mxu0 %v6155
      %6323 = vmatprep.subr.mxu0 0.0
      %6324 = vmatpush1.msra.mxu0 %v6154
      %6325 = vmatprep.subr.mxu0 0.0
      %6326 = vmatpush2.msra.mxu0 0.0
      %6327 = vmatprep.subr.mxu0 0.0
      %6328 = vmatpush2.msra.mxu0 0.0
      %6329 = vmatprep.subr.mxu0 0.0
      %6330 = vmatpush2.msra.mxu0 0.0
      %6331 = vmatprep.subr.mxu0 0.0
      %6332 = vmatpush2.msra.mxu0 0.0
      %6333 = vmatprep.subr.mxu0 0.0
      %6334 = vmatpush2.msra.mxu0 0.0
      %6335 = vmatprep.subr.mxu0 0.0
      %6336 = vmatpush2.msra.mxu0 0.0
      %6337 = vmatprep.subr.mxu0 0.0
      %6338 = vmatpush2.msra.mxu0 0.0
      %6339 = vmatprep.subr.mxu0 0.0
      %6340 = vmatpush2.msra.mxu0 0.0
      %6341 = vmatprep.subr.mxu0 0.0
      %6342 = vmatpush2.msra.mxu0 0.0
      %6343 = vmatprep.subr.mxu0 0.0
      %6344 = vmatpush2.msra.mxu0 0.0
      %6345 = vmatprep.subr.mxu0 0.0
      %6346 = vmatpush2.msra.mxu0 0.0
      %6347 = vmatprep.subr.mxu0 0.0
      %6348 = vmatpush2.msra.mxu0 0.0
      %6349 = vmatprep.subr.mxu0 0.0
      %6350 = vmatpush2.msra.mxu0 0.0
      %6351 = vmatprep.subr.mxu0 0.0
      %6352 = vmatpush2.msra.mxu0 0.0
      %6353 = vmatprep.subr.mxu0 0.0
      %6354 = vmatpush2.msra.mxu0 0.0
      %6355 = vmatprep.subr.mxu0 0.0
      %6356 = vmatpush2.msra.mxu0 0.0
      %6357 = vmatprep.mubr.f32.mxu0 0.0
      %6358 = vmatmul.mubr.f32.gmra.mxu0 %v6282
      %v6359 = vpop.f32.mrf.mxu0
      %v6360 = vadd.f32 %v6263, %v6359
      %v6361 = vpop.f32.mrf.mxu0
      %6362 = vmatprep.mubr.f32.mxu0 0.0
      %6363 = vmatmul.mubr.f32.gmra.mxu0 %v6285
      %v6364 = vpop.f32.mrf.mxu0
      %v6365 = vadd.f32 %v6268, %v6364
      %v6366 = vpop.f32.mrf.mxu0
      %6367 = vmatprep.mubr.f32.mxu0 0.0
      %6368 = vmatmul.mubr.f32.gmra.mxu0 %v6288
      %v6369 = vpop.f32.mrf.mxu0
      %v6370 = vadd.f32 %v6273, %v6369
      %v6371 = vpop.f32.mrf.mxu0
      %6372 = vmatprep.mubr.f32.mxu0 0.0
      %6373 = vmatmul.mubr.f32.gmra.mxu0 %v6291
      %v6374 = vpop.f32.mrf.mxu0
      %v6375 = vadd.f32 %v6278, %v6374
      %v6376 = vpop.f32.mrf.mxu0
      %6377 = vdwg.mxu0
      %s6378 = scalar_lea.vmem %s6, 192
      %v6379 = vld [vmem:[%s6378] sm:$0xff]
      %v6380 = vld [vmem:[%s6378 + $0x8] sm:$0xff]
      %v6381 = vld [vmem:[%s6378 + $0x10] sm:$0xff]
      %v6382 = vld [vmem:[%s6378 + $0x18] sm:$0xff]
      %6384 = vset.pattern.permute.xlu0 0
      %6385 = vperm.xlu0 %6384, %v6379
      %v6386 = vpop.permute.xlu0 %6385
      %6389 = vset.pattern.permute.xlu0 0
      %6390 = vperm.xlu0 %6389, %v6380
      %v6391 = vpop.permute.xlu0 %6390
      %6394 = vset.pattern.permute.xlu0 0
      %6395 = vperm.xlu0 %6394, %v6381
      %v6396 = vpop.permute.xlu0 %6395
      %6399 = vset.pattern.permute.xlu0 0
      %6400 = vperm.xlu0 %6399, %v6382
      %v6401 = vpop.permute.xlu0 %6400
      %v6403 = vadd.f32 %v6360, %v6386
      %v6404 = vadd.f32 %v6365, %v6391
      %v6405 = vadd.f32 %v6370, %v6396
      %v6406 = vadd.f32 %v6375, %v6401
      %v6407 = vmax.f32 %v6403, 0.0
      %v6408 = vmax.f32 %v6404, 0.0
      %v6409 = vmax.f32 %v6405, 0.0
      %v6410 = vmax.f32 %v6406, 0.0
      %s6411 = scalar_lea.vmem %s4, 224
      %v6412 = vld [vmem:[%s6411] sm:$0xff]
      %v6413 = vld [vmem:[%s6411 + $0x8] sm:$0xff]
      %v6414 = vld [vmem:[%s6411 + $0x10] sm:$0xff]
      %v6415 = vld [vmem:[%s6411 + $0x18] sm:$0xff]
      %s6416 = scalar_lea.vmem %s5, 224
      %v6417 = vld [vmem:[%s6416] sm:$0xff]
      %v6418 = vld [vmem:[%s6416 + $0x8] sm:$0xff]
      %v6419 = vld [vmem:[%s6416 + $0x10] sm:$0xff]
      %v6420 = vld [vmem:[%s6416 + $0x18] sm:$0xff]
      %6425 = vrot.lane.b32.xlu0 %v6407, 117
      %v6426 = vpop.permute.xlu0 %6425
      %6427 = vrot.lane.b32.xlu0 %v6408, 117
      %v6428 = vpop.permute.xlu0 %6427
      %6429 = vrot.lane.b32.xlu0 %v6409, 117
      %v6430 = vpop.permute.xlu0 %6429
      %6431 = vrot.lane.b32.xlu0 %v6410, 117
      %v6432 = vpop.permute.xlu0 %6431
      %v6438 = vsel %vm2887, %v6417, 0
      %v6441 = vsel %vm2887, %v6418, 0
      %v6444 = vsel %vm2887, %v6419, 0
      %v6447 = vsel %vm2887, %v6420, 0
      %6449 = vmatprep.subr.mxu0 0.0
      %6450 = vmatpush1.msra.mxu0 0.0
      %6451 = vmatprep.subr.mxu0 0.0
      %6452 = vmatpush1.msra.mxu0 0.0
      %6453 = vmatprep.subr.mxu0 0.0
      %6454 = vmatpush1.msra.mxu0 0.0
      %6455 = vmatprep.subr.mxu0 0.0
      %6456 = vmatpush1.msra.mxu0 0.0
      %6457 = vmatprep.subr.mxu0 0.0
      %6458 = vmatpush1.msra.mxu0 0.0
      %6459 = vmatprep.subr.mxu0 0.0
      %6460 = vmatpush1.msra.mxu0 0.0
      %6461 = vmatprep.subr.mxu0 0.0
      %6462 = vmatpush1.msra.mxu0 0.0
      %6463 = vmatprep.subr.mxu0 0.0
      %6464 = vmatpush1.msra.mxu0 0.0
      %6465 = vmatprep.subr.mxu0 0.0
      %6466 = vmatpush1.msra.mxu0 0.0
      %6467 = vmatprep.subr.mxu0 0.0
      %6468 = vmatpush1.msra.mxu0 0.0
      %6469 = vmatprep.subr.mxu0 0.0
      %6470 = vmatpush1.msra.mxu0 0.0
      %6471 = vmatprep.subr.mxu0 0.0
      %6472 = vmatpush1.msra.mxu0 0.0
      %6473 = vmatprep.subr.mxu0 0.0
      %6474 = vmatpush1.msra.mxu0 %v6432
      %6475 = vmatprep.subr.mxu0 0.0
      %6476 = vmatpush1.msra.mxu0 %v6430
      %6477 = vmatprep.subr.mxu0 0.0
      %6478 = vmatpush1.msra.mxu0 %v6428
      %6479 = vmatprep.subr.mxu0 0.0
      %6480 = vmatpush1.msra.mxu0 %v6426
      %6481 = vmatprep.subr.mxu0 0.0
      %6482 = vmatpush2.msra.mxu0 0.0
      %6483 = vmatprep.subr.mxu0 0.0
      %6484 = vmatpush2.msra.mxu0 0.0
      %6485 = vmatprep.subr.mxu0 0.0
      %6486 = vmatpush2.msra.mxu0 0.0
      %6487 = vmatprep.subr.mxu0 0.0
      %6488 = vmatpush2.msra.mxu0 0.0
      %6489 = vmatprep.subr.mxu0 0.0
      %6490 = vmatpush2.msra.mxu0 0.0
      %6491 = vmatprep.subr.mxu0 0.0
      %6492 = vmatpush2.msra.mxu0 0.0
      %6493 = vmatprep.subr.mxu0 0.0
      %6494 = vmatpush2.msra.mxu0 0.0
      %6495 = vmatprep.subr.mxu0 0.0
      %6496 = vmatpush2.msra.mxu0 0.0
      %6497 = vmatprep.subr.mxu0 0.0
      %6498 = vmatpush2.msra.mxu0 0.0
      %6499 = vmatprep.subr.mxu0 0.0
      %6500 = vmatpush2.msra.mxu0 0.0
      %6501 = vmatprep.subr.mxu0 0.0
      %6502 = vmatpush2.msra.mxu0 0.0
      %6503 = vmatprep.subr.mxu0 0.0
      %6504 = vmatpush2.msra.mxu0 0.0
      %6505 = vmatprep.subr.mxu0 0.0
      %6506 = vmatpush2.msra.mxu0 0.0
      %6507 = vmatprep.subr.mxu0 0.0
      %6508 = vmatpush2.msra.mxu0 0.0
      %6509 = vmatprep.subr.mxu0 0.0
      %6510 = vmatpush2.msra.mxu0 0.0
      %6511 = vmatprep.subr.mxu0 0.0
      %6512 = vmatpush2.msra.mxu0 0.0
      %6513 = vmatprep.mubr.f32.mxu0 0.0
      %6514 = vmatmul.mubr.f32.gmra.mxu0 %v6438
      %v6515 = vpop.f32.mrf.mxu0
      %v6516 = vadd.f32 0.0, %v6515
      %v6517 = vpop.f32.mrf.mxu0
      %6518 = vmatprep.mubr.f32.mxu0 0.0
      %6519 = vmatmul.mubr.f32.gmra.mxu0 %v6441
      %v6520 = vpop.f32.mrf.mxu0
      %v6521 = vadd.f32 0.0, %v6520
      %v6522 = vpop.f32.mrf.mxu0
      %6523 = vmatprep.mubr.f32.mxu0 0.0
      %6524 = vmatmul.mubr.f32.gmra.mxu0 %v6444
      %v6525 = vpop.f32.mrf.mxu0
      %v6526 = vadd.f32 0.0, %v6525
      %v6527 = vpop.f32.mrf.mxu0
      %6528 = vmatprep.mubr.f32.mxu0 0.0
      %6529 = vmatmul.mubr.f32.gmra.mxu0 %v6447
      %v6530 = vpop.f32.mrf.mxu0
      %v6531 = vadd.f32 0.0, %v6530
      %v6532 = vpop.f32.mrf.mxu0
      %6533 = vdwg.mxu0
      %v6535 = vsel %vm2887, %v6412, 0
      %v6538 = vsel %vm2887, %v6413, 0
      %v6541 = vsel %vm2887, %v6414, 0
      %v6544 = vsel %vm2887, %v6415, 0
      %6546 = vmatprep.subr.mxu0 0.0
      %6547 = vmatpush1.msra.mxu0 0.0
      %6548 = vmatprep.subr.mxu0 0.0
      %6549 = vmatpush1.msra.mxu0 0.0
      %6550 = vmatprep.subr.mxu0 0.0
      %6551 = vmatpush1.msra.mxu0 0.0
      %6552 = vmatprep.subr.mxu0 0.0
      %6553 = vmatpush1.msra.mxu0 0.0
      %6554 = vmatprep.subr.mxu0 0.0
      %6555 = vmatpush1.msra.mxu0 0.0
      %6556 = vmatprep.subr.mxu0 0.0
      %6557 = vmatpush1.msra.mxu0 0.0
      %6558 = vmatprep.subr.mxu0 0.0
      %6559 = vmatpush1.msra.mxu0 0.0
      %6560 = vmatprep.subr.mxu0 0.0
      %6561 = vmatpush1.msra.mxu0 0.0
      %6562 = vmatprep.subr.mxu0 0.0
      %6563 = vmatpush1.msra.mxu0 0.0
      %6564 = vmatprep.subr.mxu0 0.0
      %6565 = vmatpush1.msra.mxu0 0.0
      %6566 = vmatprep.subr.mxu0 0.0
      %6567 = vmatpush1.msra.mxu0 0.0
      %6568 = vmatprep.subr.mxu0 0.0
      %6569 = vmatpush1.msra.mxu0 0.0
      %6570 = vmatprep.subr.mxu0 0.0
      %6571 = vmatpush1.msra.mxu0 %v6410
      %6572 = vmatprep.subr.mxu0 0.0
      %6573 = vmatpush1.msra.mxu0 %v6409
      %6574 = vmatprep.subr.mxu0 0.0
      %6575 = vmatpush1.msra.mxu0 %v6408
      %6576 = vmatprep.subr.mxu0 0.0
      %6577 = vmatpush1.msra.mxu0 %v6407
      %6578 = vmatprep.subr.mxu0 0.0
      %6579 = vmatpush2.msra.mxu0 0.0
      %6580 = vmatprep.subr.mxu0 0.0
      %6581 = vmatpush2.msra.mxu0 0.0
      %6582 = vmatprep.subr.mxu0 0.0
      %6583 = vmatpush2.msra.mxu0 0.0
      %6584 = vmatprep.subr.mxu0 0.0
      %6585 = vmatpush2.msra.mxu0 0.0
      %6586 = vmatprep.subr.mxu0 0.0
      %6587 = vmatpush2.msra.mxu0 0.0
      %6588 = vmatprep.subr.mxu0 0.0
      %6589 = vmatpush2.msra.mxu0 0.0
      %6590 = vmatprep.subr.mxu0 0.0
      %6591 = vmatpush2.msra.mxu0 0.0
      %6592 = vmatprep.subr.mxu0 0.0
      %6593 = vmatpush2.msra.mxu0 0.0
      %6594 = vmatprep.subr.mxu0 0.0
      %6595 = vmatpush2.msra.mxu0 0.0
      %6596 = vmatprep.subr.mxu0 0.0
      %6597 = vmatpush2.msra.mxu0 0.0
      %6598 = vmatprep.subr.mxu0 0.0
      %6599 = vmatpush2.msra.mxu0 0.0
      %6600 = vmatprep.subr.mxu0 0.0
      %6601 = vmatpush2.msra.mxu0 0.0
      %6602 = vmatprep.subr.mxu0 0.0
      %6603 = vmatpush2.msra.mxu0 0.0
      %6604 = vmatprep.subr.mxu0 0.0
      %6605 = vmatpush2.msra.mxu0 0.0
      %6606 = vmatprep.subr.mxu0 0.0
      %6607 = vmatpush2.msra.mxu0 0.0
      %6608 = vmatprep.subr.mxu0 0.0
      %6609 = vmatpush2.msra.mxu0 0.0
      %6610 = vmatprep.mubr.f32.mxu0 0.0
      %6611 = vmatmul.mubr.f32.gmra.mxu0 %v6535
      %v6612 = vpop.f32.mrf.mxu0
      %v6613 = vadd.f32 %v6516, %v6612
      %v6614 = vpop.f32.mrf.mxu0
      %6615 = vmatprep.mubr.f32.mxu0 0.0
      %6616 = vmatmul.mubr.f32.gmra.mxu0 %v6538
      %v6617 = vpop.f32.mrf.mxu0
      %v6618 = vadd.f32 %v6521, %v6617
      %v6619 = vpop.f32.mrf.mxu0
      %6620 = vmatprep.mubr.f32.mxu0 0.0
      %6621 = vmatmul.mubr.f32.gmra.mxu0 %v6541
      %v6622 = vpop.f32.mrf.mxu0
      %v6623 = vadd.f32 %v6526, %v6622
      %v6624 = vpop.f32.mrf.mxu0
      %6625 = vmatprep.mubr.f32.mxu0 0.0
      %6626 = vmatmul.mubr.f32.gmra.mxu0 %v6544
      %v6627 = vpop.f32.mrf.mxu0
      %v6628 = vadd.f32 %v6531, %v6627
      %v6629 = vpop.f32.mrf.mxu0
      %6630 = vdwg.mxu0
      %s6631 = scalar_lea.vmem %s6, 224
      %v6632 = vld [vmem:[%s6631] sm:$0xff]
      %v6633 = vld [vmem:[%s6631 + $0x8] sm:$0xff]
      %v6634 = vld [vmem:[%s6631 + $0x10] sm:$0xff]
      %v6635 = vld [vmem:[%s6631 + $0x18] sm:$0xff]
      %6637 = vset.pattern.permute.xlu0 0
      %6638 = vperm.xlu0 %6637, %v6632
      %v6639 = vpop.permute.xlu0 %6638
      %6642 = vset.pattern.permute.xlu0 0
      %6643 = vperm.xlu0 %6642, %v6633
      %v6644 = vpop.permute.xlu0 %6643
      %6647 = vset.pattern.permute.xlu0 0
      %6648 = vperm.xlu0 %6647, %v6634
      %v6649 = vpop.permute.xlu0 %6648
      %6652 = vset.pattern.permute.xlu0 0
      %6653 = vperm.xlu0 %6652, %v6635
      %v6654 = vpop.permute.xlu0 %6653
      %v6656 = vadd.f32 %v6613, %v6639
      %v6657 = vadd.f32 %v6618, %v6644
      %v6658 = vadd.f32 %v6623, %v6649
      %v6659 = vadd.f32 %v6628, %v6654
      %v6660 = vld [vmem:[%s7] sm:$0xff]
      %v6661 = vld [vmem:[%s7 + $0x8] sm:$0xff]
      %v6662 = vld [vmem:[%s7 + $0x10] sm:$0xff]
      %v6663 = vld [vmem:[%s7 + $0x18] sm:$0xff]
      %v6664 = vmul.f32 %v6656, %v6660
      %v6665 = vmul.f32 %v6657, %v6661
      %v6666 = vmul.f32 %v6658, %v6662
      %v6667 = vmul.f32 %v6659, %v6663
      %vm6668 = vcmask 89088
      %v6669 = vsel %vm6668, %v6664, 0.0
      %v6670 = vsel %vm6668, %v6665, 0.0
      %v6671 = vadd.f32 %v6669, %v6670
      %v6672 = vsel %vm6668, %v6666, 0.0
      %v6673 = vadd.f32 %v6671, %v6672
      %v6674 = vsel %vm6668, %v6667, 0.0
      %v6675 = vadd.f32 %v6673, %v6674
      %6676 = vadd.xlane.f32.xlu0 %v6675
      %v6677 = vpop.xlane.xlu0 %6676
      %v6678 = vrot.slane %v6677, 4
      %v6679 = vadd.f32 %v6677, %v6678
      %v6680 = vrot.slane %v6679, 2
      %v6681 = vadd.f32 %v6679, %v6680
      %v6682 = vrot.slane %v6681, 1
      %v6683 = vadd.f32 %v6681, %v6682
      %s6684 = vtos %v6683
      %v6685 = vstv %s6684
      %v6686 = vld [vmem:[#allocation2] sm:$0x1]
      %v6687 = vadd.f32 %v6685, %v6686
      %6689 = vset.pattern.permute.xlu0 0
      %6690 = vperm.xlu0 %6689, %v6687
      %v6691 = vpop.permute.xlu0 %6690
      %v6693 = vlaneseq
      %v6694 = vshrl.u32 %v6693, 7
      %v6695 = vsub.s32 0, %v6694
      %v6696 = vrot.slane %v6691, %v6695
      %6697 = vst [vmem:[%s330] sm:$0x1] %v6696
      %p6698 = scmp.lt.s32.totalorder %s22, 1
      %s6699 = scalar_select %p6698, %s22, 1
      %s6700 = scalar_lea.vmem %s9, %s6699
      // Predicated region
      $region57: #{convnet_quake_ingv_forward.1} parent=55 // pred_check
        %p6701 = pneg %p234
      $region58: #{convnet_quake_ingv_forward.1} parent=55 // pred_check_branch
        %6703 = sbr.rel (%p6701) target = $region60
      $region59: #{convnet_quake_ingv_forward.1} parent=55 // pred_region
        _
      $region60: #{convnet_quake_ingv_forward.1} parent=55 // pred_fallthru
        _
    $region56: #{convnet_quake_ingv_forward.1} parent=5 // pred_fallthru
      _
    %p6704 = scmp.le.s32.totalorder 2, %s17
    // Predicated region
    $region61: #{convnet_quake_ingv_forward.1} parent=5 // pred_check
      %p6705 = pneg %p6704
    $region62: #{convnet_quake_ingv_forward.1} parent=5 // pred_check_branch
      %6707 = sbr.rel (%p6705) target = $region64
    $region63: #{convnet_quake_ingv_forward.1} parent=5 // pred_region
      %s6708 = ssub.s32 %s17, 2
      // Predicated region
      $region65: #{convnet_quake_ingv_forward.1} parent=63 // pred_check
        %p6709 = pneg %p240
      $region66: #{convnet_quake_ingv_forward.1} parent=63 // pred_check_branch
        %6711 = sbr.rel (%p6709) target = $region68
      $region67: #{convnet_quake_ingv_forward.1} parent=63 // pred_region
        %p6712 = scmp.lt.s32.totalorder %s23, 1
        %s6713 = scalar_select %p6712, %s23, 1
        %s6714 = scalar_lea.vmem %s9, %s6713
      $region68: #{convnet_quake_ingv_forward.1} parent=63 // pred_fallthru
        _
    $region64: #{convnet_quake_ingv_forward.1} parent=5 // pred_fallthru
      _
  $region6: #{convnet_quake_ingv_forward.1} parent=0 // loop_footer
    %s21 = sadd.s32 1, %s17
  $region7: #{convnet_quake_ingv_forward.1} parent=0 // loop_footer_branch
    %16 = sbr.rel target = $region3
  $region8: #{convnet_quake_ingv_forward.1} parent=0 // loop_exit
    _

</llo_original>
